<compile_context>
chip_gen: v7x
topology: tpu7x:2x2x1
jax: 0.10.0
libtpu: 0.0.40
codegen_flags: <defaults>
</compile_context>

<pallas_src>
import functools

import jax
import jax.numpy as jnp
from jax.experimental import pallas as pl
from jax.experimental.pallas import tpu as pltpu


LANE = 128


def _round_up(x, m):
    return (x + m - 1) // m * m


# ----------------------------- Pallas kernels ------------------------------

def _conv_relu_pool_kernel(p_ref, w_ref, b_ref, o_ref):
    """Fused conv-as-matmul + bias + ReLU + 2x2 max-pool epilogue.

    p_ref: (4, tm, Kp)  im2col patches; leading axis = the 2x2 pool window
    w_ref: (Kp, Np)     zero-padded (kh*kw*cin, cout) filter (lane-dense)
    b_ref: (1, Np)      zero-padded bias row
    o_ref: (tm, Np)     one pooled + ReLU'd output row per pool window
    """
    w = w_ref[...]
    acc = jnp.dot(p_ref[0], w, preferred_element_type=jnp.float32)
    acc = jnp.maximum(acc, jnp.dot(p_ref[1], w, preferred_element_type=jnp.float32))
    acc = jnp.maximum(acc, jnp.dot(p_ref[2], w, preferred_element_type=jnp.float32))
    acc = jnp.maximum(acc, jnp.dot(p_ref[3], w, preferred_element_type=jnp.float32))
    # relu(max_w(acc_w) + b) == max_w(relu(acc_w + b)): +bias and relu are monotone.
    o_ref[...] = jnp.maximum(acc + b_ref[...], 0.0)


def conv_relu_pool(patches, w_mat, b_row, *, tm=512):
    """patches: (4, M, Kp), w_mat: (Kp, Np), b_row: (1, Np) -> (M, Np).

    M = B * Hp * Wp pooled output positions (batch merged into the matmul M
    dimension), tiled with `tm`-row blocks.
    """
    _, m_tot, kp = patches.shape
    np_ = w_mat.shape[1]
    tm = min(tm, _round_up(m_tot, 8))
    m_pad = _round_up(m_tot, tm)
    if m_pad != m_tot:
        patches = jnp.pad(patches, ((0, 0), (0, m_pad - m_tot), (0, 0)))
    out = pl.pallas_call(
        _conv_relu_pool_kernel,
        out_shape=jax.ShapeDtypeStruct((m_pad, np_), jnp.float32),
        grid=(m_pad // tm,),
        in_specs=[
            pl.BlockSpec((4, tm, kp), lambda i: (0, i, 0)),
            pl.BlockSpec((kp, np_), lambda i: (0, 0)),   # weight stays VMEM-resident
            pl.BlockSpec((1, np_), lambda i: (0, 0)),
        ],
        out_specs=pl.BlockSpec((tm, np_), lambda i: (i, 0)),
        compiler_params=pltpu.CompilerParams(
            dimension_semantics=("parallel",)),
    )(patches, w_mat, b_row)
    return out[:m_tot] if m_pad != m_tot else out


def _fc_head_kernel(x_ref, w0_ref, b0_ref, w1_ref, b1_ref, w2_ref, b2_ref,
                    logp_ref, x1_ref):
    # x_ref: (tb, 3200); all weights pre-transposed to (in, out) and padded to
    # 128-wide lane-dense tiles.  Padded logit lanes carry a -1e30 bias so the
    # log-softmax over the padded width equals the true one.
    x = x_ref[...]
    h0 = jnp.dot(x, w0_ref[...], preferred_element_type=jnp.float32) + b0_ref[...]
    h0 = jnp.maximum(h0, 0.0)
    x1_ref[...] = h0
    h1 = jnp.dot(h0, w1_ref[...], preferred_element_type=jnp.float32) + b1_ref[...]
    h1 = jnp.maximum(h1, 0.0)
    logits = jnp.dot(h1, w2_ref[...], preferred_element_type=jnp.float32) + b2_ref[...]
    m = jnp.max(logits, axis=-1, keepdims=True)
    lse = jnp.log(jnp.sum(jnp.exp(logits - m), axis=-1, keepdims=True)) + m
    logp_ref[...] = logits - lse


def fc_head(xf, w0, b0, w1, b1, w2, b2, *, tb=256):
    """xf: (B, 3200) -> (log_softmax padded to 128, x1 padded to 128)."""
    b_sz, k = xf.shape
    h = w0.shape[1]
    tb = min(tb, _round_up(b_sz, 8))
    b_pad = _round_up(b_sz, tb)
    if b_pad != b_sz:
        xf = jnp.pad(xf, ((0, b_pad - b_sz), (0, 0)))
    logp, x1 = pl.pallas_call(
        _fc_head_kernel,
        out_shape=(jax.ShapeDtypeStruct((b_pad, LANE), jnp.float32),
                   jax.ShapeDtypeStruct((b_pad, h), jnp.float32)),
        grid=(b_pad // tb,),
        in_specs=[
            pl.BlockSpec((tb, k), lambda i: (i, 0)),
            pl.BlockSpec((k, h), lambda i: (0, 0)),
            pl.BlockSpec((1, h), lambda i: (0, 0)),
            pl.BlockSpec((h, h), lambda i: (0, 0)),
            pl.BlockSpec((1, h), lambda i: (0, 0)),
            pl.BlockSpec((h, LANE), lambda i: (0, 0)),
            pl.BlockSpec((1, LANE), lambda i: (0, 0)),
        ],
        out_specs=(pl.BlockSpec((tb, LANE), lambda i: (i, 0)),
                   pl.BlockSpec((tb, h), lambda i: (i, 0))),
        compiler_params=pltpu.CompilerParams(
            dimension_semantics=("parallel",)),
    )(xf, w0, b0, w1, b1, w2, b2)
    return logp[:b_sz], x1[:b_sz]


# ------------------------------- JAX glue ----------------------------------
# im2col patch gather / input layout transpose are plain-JAX reindexing glue
# feeding the Pallas matmul kernels (no compute of their own).

def im2col_pooled(x_nhwc, k, k_pad):
    """im2col patches pre-grouped by 2x2 pool window.

    Returns (4, B*Hp*Wp, k_pad): row = (b, ph, pw), leading axis = pool-window
    offset (dy, dx), columns = (kh, kw, cin) flattened, zero-padded to k_pad.
    """
    b_sz, hh, ww, c = x_nhwc.shape
    ho, wo = hh - k + 1, ww - k + 1
    hp, wp = ho // 2, wo // 2
    cols = []
    for kh in range(k):
        for kw in range(k):
            cols.append(x_nhwc[:, kh:kh + ho, kw:kw + wo, :])
    p = jnp.stack(cols, axis=3).reshape(b_sz, ho, wo, k * k * c)
    wins = []
    for dy in range(2):
        for dx in range(2):
            wins.append(p[:, dy:2 * hp:2, dx:2 * wp:2, :])
    pw = jnp.stack(wins, axis=0).reshape(4, b_sz * hp * wp, k * k * c)
    if k_pad > k * k * c:
        pw = jnp.pad(pw, ((0, 0), (0, 0), (0, k_pad - k * k * c)))
    return pw, hp, wp


def prepare_params(params):
    """One-time transpose / zero-pad of PyTorch-layout params to lane-dense
    (128-multiple) TPU layouts.  Also folds the NCHW flatten before fc0 into a
    permutation of fc0's weight rows so the forward needs no runtime transpose."""
    def pad_to(a, shape):
        return jnp.pad(a, [(0, s - d) for s, d in zip(shape, a.shape)])

    nc = params["fc2_w"].shape[0]
    c1, c2 = 6, 16

    # conv1: OIHW -> (kh*kw*cin, cout); K 75 -> 128, N 6 -> 128
    w1 = jnp.transpose(params["conv1_w"], (2, 3, 1, 0)).reshape(25 * 3, c1)
    w1 = pad_to(w1, (LANE, LANE))
    b1 = pad_to(params["conv1_b"].reshape(1, c1), (1, LANE))

    # conv2: K 150 -> 256, N 16 -> 128
    w2 = jnp.transpose(params["conv2_w"], (2, 3, 1, 0)).reshape(25 * c1, c2)
    w2 = pad_to(w2, (2 * LANE, LANE))
    b2 = pad_to(params["conv2_b"].reshape(1, c2), (1, LANE))

    # fc0: PyTorch (120, 400) with inputs in NCHW (c, h, w) order.  Re-order
    # rows to (h, w, c_padded) so the channel-padded NHWC conv2 output feeds it
    # with a plain reshape; pad 120 -> 128 outputs.
    w0 = params["fc0_w"].reshape(120, c2, 5, 5)            # (out, c, h, w)
    w0 = jnp.transpose(w0, (2, 3, 1, 0))                   # (h, w, c, out)
    w0 = pad_to(w0, (5, 5, LANE, LANE)).reshape(25 * LANE, LANE)
    b0 = pad_to(params["fc0_b"].reshape(1, 120), (1, LANE))

    # fc1: 120 -> 84, padded to 128x128
    wf1 = pad_to(params["fc1_w"].T, (LANE, LANE))
    bf1 = pad_to(params["fc1_b"].reshape(1, 84), (1, LANE))

    # fc2: 84 -> nc, padded to 128; padded class lanes get -1e30 bias so they
    # drop out of the in-kernel log-softmax.
    wf2 = pad_to(params["fc2_w"].T, (LANE, LANE))
    bf2 = jnp.full((1, LANE), -1e30, jnp.float32)
    bf2 = bf2.at[0, :nc].set(params["fc2_b"].astype(jnp.float32))

    return {
        "conv1_w": w1, "conv1_b": b1,
        "conv2_w": w2, "conv2_b": b2,
        "fc0_w": w0, "fc0_b": b0,
        "fc1_w": wf1, "fc1_b": bf1,
        "fc2_w": wf2, "fc2_b": bf2,
    }


def init_params(key, num_classes=10):
    ks = jax.random.split(key, 10)

    def u(k, shape, fan_in):
        bound = 1.0 / jnp.sqrt(jnp.float32(fan_in))
        return jax.random.uniform(k, shape, jnp.float32, -bound, bound)

    p = {}
    p["conv1_w"] = u(ks[0], (6, 3, 5, 5), 3 * 25)     # PyTorch OIHW
    p["conv1_b"] = u(ks[1], (6,), 3 * 25)
    p["conv2_w"] = u(ks[2], (16, 6, 5, 5), 6 * 25)
    p["conv2_b"] = u(ks[3], (16,), 6 * 25)
    p["fc0_w"]   = u(ks[4], (120, 400), 400)          # PyTorch (out, in)
    p["fc0_b"]   = u(ks[5], (120,), 400)
    p["fc1_w"]   = u(ks[6], (84, 120), 120)
    p["fc1_b"]   = u(ks[7], (84,), 120)
    p["fc2_w"]   = u(ks[8], (num_classes, 84), 84)
    p["fc2_b"]   = u(ks[9], (num_classes,), 84)
    return p


def cnn_cifar_forward(prep, x_nchw, num_classes=10):
    """Forward pass.  `prep` = prepare_params(pytorch_style_params)."""
    b_sz = x_nchw.shape[0]
    x = jnp.transpose(x_nchw, (0, 2, 3, 1))                 # NCHW -> NHWC

    # conv1 + relu + 2x2 pool (fused):  (B,32,32,3) -> (B*14*14, 128)
    p1, hp1, wp1 = im2col_pooled(x, 5, LANE)
    y1 = conv_relu_pool(p1, prep["conv1_w"], prep["conv1_b"])
    y1 = y1[:, :6].reshape(b_sz, hp1, wp1, 6)               # drop pad channels

    # conv2 + relu + 2x2 pool (fused):  (B,14,14,6) -> (B*5*5, 128)
    p2, hp2, wp2 = im2col_pooled(y1, 5, 2 * LANE)
    y2 = conv_relu_pool(p2, prep["conv2_w"], prep["conv2_b"])

    # The module's NCHW flatten (x.view(-1, 16*5*5)) is folded into fc0's
    # weight rows, so the pooled output feeds the FC head with a plain reshape.
    xf = y2.reshape(b_sz, hp2 * wp2 * LANE)

    logp_pad, x1_pad = fc_head(
        xf,
        prep["fc0_w"], prep["fc0_b"],
        prep["fc1_w"], prep["fc1_b"],
        prep["fc2_w"], prep["fc2_b"],
    )
    return logp_pad[:, :num_classes], x1_pad[:, :120]


# Pure-JAX reference (for correctness verification only).
def reference_forward(params, x_nchw):
    def conv(x, w, b):
        y = jax.lax.conv_general_dilated(
            x, w, (1, 1), "VALID",
            dimension_numbers=("NCHW", "OIHW", "NCHW"))
        return y + b.reshape(1, -1, 1, 1)

    def pool(x):
        return jax.lax.reduce_window(x, -jnp.inf, jax.lax.max,
                                     (1, 1, 2, 2), (1, 1, 2, 2), "VALID")

    x = pool(jax.nn.relu(conv(x_nchw, params["conv1_w"], params["conv1_b"])))
    x = pool(jax.nn.relu(conv(x, params["conv2_w"], params["conv2_b"])))
    x = x.reshape(x.shape[0], -1)
    x1 = jax.nn.relu(x @ params["fc0_w"].T + params["fc0_b"])
    h = jax.nn.relu(x1 @ params["fc1_w"].T + params["fc1_b"])
    logits = h @ params["fc2_w"].T + params["fc2_b"]
    return jax.nn.log_softmax(logits, axis=1), x1


if __name__ == "__main__":
    key = jax.random.PRNGKey(0)
    kx, kp = jax.random.split(key)

    # CIFAR-shaped input: the 16*5*5 flatten in the module requires 32x32 spatial.
    B, num_classes = 2, 10
    x = jax.random.normal(kx, (B, 3, 32, 32), jnp.float32)
    params = init_params(kp, num_classes=num_classes)

    # One-time parameter prep (pad / transpose / fold flatten into fc0 rows).
    prep = prepare_params(params)

    fwd = jax.jit(functools.partial(cnn_cifar_forward, num_classes=num_classes))
    logp, x1 = fwd(prep, x)
    jax.block_until_ready((logp, x1))

    ref_logp, ref_x1 = reference_forward(params, x)
    assert logp.shape == (B, num_classes) and x1.shape == (B, 120)
    assert jnp.allclose(logp, ref_logp, atol=1e-4, rtol=1e-4)
    assert jnp.allclose(x1, ref_x1, atol=1e-4, rtol=1e-4)

    print("KERNEL_OK")
</pallas_src>

<mosaic_0001>
module attributes {stable_mosaic.version = 11 : i64} {
  func.func @_conv_relu_pool_kernel(%arg0: i32, %arg1: memref<4x392x128xf32, #tpu.memory_space<vmem>>, %arg2: memref<128x128xf32, #tpu.memory_space<vmem>>, %arg3: memref<1x128xf32, #tpu.memory_space<vmem>>, %arg4: memref<392x128xf32, #tpu.memory_space<vmem>>) attributes {dimension_semantics = [#tpu.dimension_semantics<parallel>], iteration_bounds = array<i64: 1>, scalar_prefetch = 0 : i64, scratch_operands = 0 : i64, tpu.core_type = #tpu.core_type<tc>, window_params = [{transform_indices = @transform_0, window_bounds = array<i64: 4, 392, 128>}, {pipeline_mode = #tpu.pipeline_mode<synchronous>, transform_indices = @transform_1, window_bounds = array<i64: 128, 128>}, {pipeline_mode = #tpu.pipeline_mode<synchronous>, transform_indices = @transform_2, window_bounds = array<i64: 1, 128>}, {transform_indices = @transform_3, window_bounds = array<i64: 392, 128>}]} {
    %c0 = arith.constant 0 : index
    %c0_0 = arith.constant 0 : index
    %0 = vector.load %arg2[%c0, %c0_0] : memref<128x128xf32, #tpu.memory_space<vmem>>, vector<128x128xf32>
    %c0_1 = arith.constant 0 : index
    %c0_2 = arith.constant 0 : index
    %c0_3 = arith.constant 0 : index
    %1 = vector.load %arg1[%c0_1, %c0_2, %c0_3] : memref<4x392x128xf32, #tpu.memory_space<vmem>>, vector<1x392x128xf32>
    %2 = vector.shape_cast %1 : vector<1x392x128xf32> to vector<392x128xf32>
    %cst = arith.constant dense<0.000000e+00> : vector<392x128xf32>
    %3 = tpu.matmul %2, %0, %cst {dimension_numbers = #tpu.dot_dimension_numbers<[1], [0], [0], [1], [0, 0, 1, 1], [], []>} : vector<392x128xf32>, vector<128x128xf32>, vector<392x128xf32> -> vector<392x128xf32>
    %c1 = arith.constant 1 : index
    %c0_4 = arith.constant 0 : index
    %c0_5 = arith.constant 0 : index
    %4 = vector.load %arg1[%c1, %c0_4, %c0_5] : memref<4x392x128xf32, #tpu.memory_space<vmem>>, vector<1x392x128xf32>
    %5 = vector.shape_cast %4 : vector<1x392x128xf32> to vector<392x128xf32>
    %cst_6 = arith.constant dense<0.000000e+00> : vector<392x128xf32>
    %6 = tpu.matmul %5, %0, %cst_6 {dimension_numbers = #tpu.dot_dimension_numbers<[1], [0], [0], [1], [0, 0, 1, 1], [], []>} : vector<392x128xf32>, vector<128x128xf32>, vector<392x128xf32> -> vector<392x128xf32>
    %7 = arith.maximumf %3, %6 : vector<392x128xf32>
    %c2 = arith.constant 2 : index
    %c0_7 = arith.constant 0 : index
    %c0_8 = arith.constant 0 : index
    %8 = vector.load %arg1[%c2, %c0_7, %c0_8] : memref<4x392x128xf32, #tpu.memory_space<vmem>>, vector<1x392x128xf32>
    %9 = vector.shape_cast %8 : vector<1x392x128xf32> to vector<392x128xf32>
    %cst_9 = arith.constant dense<0.000000e+00> : vector<392x128xf32>
    %10 = tpu.matmul %9, %0, %cst_9 {dimension_numbers = #tpu.dot_dimension_numbers<[1], [0], [0], [1], [0, 0, 1, 1], [], []>} : vector<392x128xf32>, vector<128x128xf32>, vector<392x128xf32> -> vector<392x128xf32>
    %11 = arith.maximumf %7, %10 : vector<392x128xf32>
    %c3 = arith.constant 3 : index
    %c0_10 = arith.constant 0 : index
    %c0_11 = arith.constant 0 : index
    %12 = vector.load %arg1[%c3, %c0_10, %c0_11] : memref<4x392x128xf32, #tpu.memory_space<vmem>>, vector<1x392x128xf32>
    %13 = vector.shape_cast %12 : vector<1x392x128xf32> to vector<392x128xf32>
    %cst_12 = arith.constant dense<0.000000e+00> : vector<392x128xf32>
    %14 = tpu.matmul %13, %0, %cst_12 {dimension_numbers = #tpu.dot_dimension_numbers<[1], [0], [0], [1], [0, 0, 1, 1], [], []>} : vector<392x128xf32>, vector<128x128xf32>, vector<392x128xf32> -> vector<392x128xf32>
    %15 = arith.maximumf %11, %14 : vector<392x128xf32>
    %c0_13 = arith.constant 0 : index
    %c0_14 = arith.constant 0 : index
    %16 = vector.load %arg3[%c0_13, %c0_14] : memref<1x128xf32, #tpu.memory_space<vmem>>, vector<1x128xf32>
    %17 = vector.broadcast %16 : vector<1x128xf32> to vector<392x128xf32>
    %18 = arith.addf %15, %17 : vector<392x128xf32>
    %cst_15 = arith.constant 0.000000e+00 : f32
    %19 = vector.broadcast %cst_15 : f32 to vector<392x128xf32>
    %20 = arith.maximumf %18, %19 : vector<392x128xf32>
    %c0_16 = arith.constant 0 : index
    %c0_17 = arith.constant 0 : index
    %21 = vector.load %arg4[%c0_16, %c0_17] : memref<392x128xf32, #tpu.memory_space<vmem>>, vector<392x128xf32>
    tpu.vector_store %arg4[%c0_16, %c0_17], %20 {strides = array<i32>} : memref<392x128xf32, #tpu.memory_space<vmem>>, vector<392x128xf32>,
    return
  }
  func.func @transform_0(%arg0: i32) -> (i32, i32, i32) {
    %c0_i32 = arith.constant 0 : i32
    %c0_i32_0 = arith.constant 0 : i32
    %c0_i32_1 = arith.constant 0 : i32
    return %c0_i32, %arg0, %c0_i32_0 : i32, i32, i32
  }
  func.func @transform_1(%arg0: i32) -> (i32, i32) {
    %c0_i32 = arith.constant 0 : i32
    %c0_i32_0 = arith.constant 0 : i32
    %c0_i32_1 = arith.constant 0 : i32
    return %c0_i32, %c0_i32_0 : i32, i32
  }
  func.func @transform_2(%arg0: i32) -> (i32, i32) {
    %c0_i32 = arith.constant 0 : i32
    %c0_i32_0 = arith.constant 0 : i32
    %c0_i32_1 = arith.constant 0 : i32
    return %c0_i32, %c0_i32_0 : i32, i32
  }
  func.func @transform_3(%arg0: i32) -> (i32, i32) {
    %c0_i32 = arith.constant 0 : i32
    %c0_i32_0 = arith.constant 0 : i32
    return %arg0, %c0_i32 : i32, i32
  }
}

module attributes {stable_mosaic.version = 11 : i64} {
  func.func @_conv_relu_pool_kernel(%arg0: i32, %arg1: memref<4x56x256xf32, #tpu.memory_space<vmem>>, %arg2: memref<256x128xf32, #tpu.memory_space<vmem>>, %arg3: memref<1x128xf32, #tpu.memory_space<vmem>>, %arg4: memref<56x128xf32, #tpu.memory_space<vmem>>) attributes {dimension_semantics = [#tpu.dimension_semantics<parallel>], iteration_bounds = array<i64: 1>, scalar_prefetch = 0 : i64, scratch_operands = 0 : i64, tpu.core_type = #tpu.core_type<tc>, window_params = [{transform_indices = @transform_0, window_bounds = array<i64: 4, 56, 256>}, {pipeline_mode = #tpu.pipeline_mode<synchronous>, transform_indices = @transform_1, window_bounds = array<i64: 256, 128>}, {pipeline_mode = #tpu.pipeline_mode<synchronous>, transform_indices = @transform_2, window_bounds = array<i64: 1, 128>}, {transform_indices = @transform_3, window_bounds = array<i64: 56, 128>}]} {
    %c0 = arith.constant 0 : index
    %c0_0 = arith.constant 0 : index
    %0 = vector.load %arg2[%c0, %c0_0] : memref<256x128xf32, #tpu.memory_space<vmem>>, vector<256x128xf32>
    %c0_1 = arith.constant 0 : index
    %c0_2 = arith.constant 0 : index
    %c0_3 = arith.constant 0 : index
    %1 = vector.load %arg1[%c0_1, %c0_2, %c0_3] : memref<4x56x256xf32, #tpu.memory_space<vmem>>, vector<1x56x256xf32>
    %2 = vector.shape_cast %1 : vector<1x56x256xf32> to vector<56x256xf32>
    %cst = arith.constant dense<0.000000e+00> : vector<56x128xf32>
    %3 = tpu.matmul %2, %0, %cst {dimension_numbers = #tpu.dot_dimension_numbers<[1], [0], [0], [1], [0, 0, 1, 1], [], []>} : vector<56x256xf32>, vector<256x128xf32>, vector<56x128xf32> -> vector<56x128xf32>
    %c1 = arith.constant 1 : index
    %c0_4 = arith.constant 0 : index
    %c0_5 = arith.constant 0 : index
    %4 = vector.load %arg1[%c1, %c0_4, %c0_5] : memref<4x56x256xf32, #tpu.memory_space<vmem>>, vector<1x56x256xf32>
    %5 = vector.shape_cast %4 : vector<1x56x256xf32> to vector<56x256xf32>
    %cst_6 = arith.constant dense<0.000000e+00> : vector<56x128xf32>
    %6 = tpu.matmul %5, %0, %cst_6 {dimension_numbers = #tpu.dot_dimension_numbers<[1], [0], [0], [1], [0, 0, 1, 1], [], []>} : vector<56x256xf32>, vector<256x128xf32>, vector<56x128xf32> -> vector<56x128xf32>
    %7 = arith.maximumf %3, %6 : vector<56x128xf32>
    %c2 = arith.constant 2 : index
    %c0_7 = arith.constant 0 : index
    %c0_8 = arith.constant 0 : index
    %8 = vector.load %arg1[%c2, %c0_7, %c0_8] : memref<4x56x256xf32, #tpu.memory_space<vmem>>, vector<1x56x256xf32>
    %9 = vector.shape_cast %8 : vector<1x56x256xf32> to vector<56x256xf32>
    %cst_9 = arith.constant dense<0.000000e+00> : vector<56x128xf32>
    %10 = tpu.matmul %9, %0, %cst_9 {dimension_numbers = #tpu.dot_dimension_numbers<[1], [0], [0], [1], [0, 0, 1, 1], [], []>} : vector<56x256xf32>, vector<256x128xf32>, vector<56x128xf32> -> vector<56x128xf32>
    %11 = arith.maximumf %7, %10 : vector<56x128xf32>
    %c3 = arith.constant 3 : index
    %c0_10 = arith.constant 0 : index
    %c0_11 = arith.constant 0 : index
    %12 = vector.load %arg1[%c3, %c0_10, %c0_11] : memref<4x56x256xf32, #tpu.memory_space<vmem>>, vector<1x56x256xf32>
    %13 = vector.shape_cast %12 : vector<1x56x256xf32> to vector<56x256xf32>
    %cst_12 = arith.constant dense<0.000000e+00> : vector<56x128xf32>
    %14 = tpu.matmul %13, %0, %cst_12 {dimension_numbers = #tpu.dot_dimension_numbers<[1], [0], [0], [1], [0, 0, 1, 1], [], []>} : vector<56x256xf32>, vector<256x128xf32>, vector<56x128xf32> -> vector<56x128xf32>
    %15 = arith.maximumf %11, %14 : vector<56x128xf32>
    %c0_13 = arith.constant 0 : index
    %c0_14 = arith.constant 0 : index
    %16 = vector.load %arg3[%c0_13, %c0_14] : memref<1x128xf32, #tpu.memory_space<vmem>>, vector<1x128xf32>
    %17 = vector.broadcast %16 : vector<1x128xf32> to vector<56x128xf32>
    %18 = arith.addf %15, %17 : vector<56x128xf32>
    %cst_15 = arith.constant 0.000000e+00 : f32
    %19 = vector.broadcast %cst_15 : f32 to vector<56x128xf32>
    %20 = arith.maximumf %18, %19 : vector<56x128xf32>
    %c0_16 = arith.constant 0 : index
    %c0_17 = arith.constant 0 : index
    %21 = vector.load %arg4[%c0_16, %c0_17] : memref<56x128xf32, #tpu.memory_space<vmem>>, vector<56x128xf32>
    tpu.vector_store %arg4[%c0_16, %c0_17], %20 {strides = array<i32>} : memref<56x128xf32, #tpu.memory_space<vmem>>, vector<56x128xf32>,
    return
  }
  func.func @transform_0(%arg0: i32) -> (i32, i32, i32) {
    %c0_i32 = arith.constant 0 : i32
    %c0_i32_0 = arith.constant 0 : i32
    %c0_i32_1 = arith.constant 0 : i32
    return %c0_i32, %arg0, %c0_i32_0 : i32, i32, i32
  }
  func.func @transform_1(%arg0: i32) -> (i32, i32) {
    %c0_i32 = arith.constant 0 : i32
    %c0_i32_0 = arith.constant 0 : i32
    %c0_i32_1 = arith.constant 0 : i32
    return %c0_i32, %c0_i32_0 : i32, i32
  }
  func.func @transform_2(%arg0: i32) -> (i32, i32) {
    %c0_i32 = arith.constant 0 : i32
    %c0_i32_0 = arith.constant 0 : i32
    %c0_i32_1 = arith.constant 0 : i32
    return %c0_i32, %c0_i32_0 : i32, i32
  }
  func.func @transform_3(%arg0: i32) -> (i32, i32) {
    %c0_i32 = arith.constant 0 : i32
    %c0_i32_0 = arith.constant 0 : i32
    return %arg0, %c0_i32 : i32, i32
  }
}

module attributes {stable_mosaic.version = 11 : i64} {
  func.func @_fc_head_kernel(%arg0: i32, %arg1: memref<8x3200xf32, #tpu.memory_space<vmem>>, %arg2: memref<3200x128xf32, #tpu.memory_space<vmem>>, %arg3: memref<1x128xf32, #tpu.memory_space<vmem>>, %arg4: memref<128x128xf32, #tpu.memory_space<vmem>>, %arg5: memref<1x128xf32, #tpu.memory_space<vmem>>, %arg6: memref<128x128xf32, #tpu.memory_space<vmem>>, %arg7: memref<1x128xf32, #tpu.memory_space<vmem>>, %arg8: memref<8x128xf32, #tpu.memory_space<vmem>>, %arg9: memref<8x128xf32, #tpu.memory_space<vmem>>) attributes {dimension_semantics = [#tpu.dimension_semantics<parallel>], iteration_bounds = array<i64: 1>, scalar_prefetch = 0 : i64, scratch_operands = 0 : i64, tpu.core_type = #tpu.core_type<tc>, window_params = [{transform_indices = @transform_0, window_bounds = array<i64: 8, 3200>}, {pipeline_mode = #tpu.pipeline_mode<synchronous>, transform_indices = @transform_1, window_bounds = array<i64: 3200, 128>}, {pipeline_mode = #tpu.pipeline_mode<synchronous>, transform_indices = @transform_2, window_bounds = array<i64: 1, 128>}, {pipeline_mode = #tpu.pipeline_mode<synchronous>, transform_indices = @transform_3, window_bounds = array<i64: 128, 128>}, {pipeline_mode = #tpu.pipeline_mode<synchronous>, transform_indices = @transform_4, window_bounds = array<i64: 1, 128>}, {pipeline_mode = #tpu.pipeline_mode<synchronous>, transform_indices = @transform_5, window_bounds = array<i64: 128, 128>}, {pipeline_mode = #tpu.pipeline_mode<synchronous>, transform_indices = @transform_6, window_bounds = array<i64: 1, 128>}, {transform_indices = @transform_7, window_bounds = array<i64: 8, 128>}, {transform_indices = @transform_8, window_bounds = array<i64: 8, 128>}]} {
    %c0 = arith.constant 0 : index
    %c0_0 = arith.constant 0 : index
    %0 = vector.load %arg1[%c0, %c0_0] : memref<8x3200xf32, #tpu.memory_space<vmem>>, vector<8x3200xf32>
    %c0_1 = arith.constant 0 : index
    %c0_2 = arith.constant 0 : index
    %1 = vector.load %arg2[%c0_1, %c0_2] : memref<3200x128xf32, #tpu.memory_space<vmem>>, vector<3200x128xf32>
    %cst = arith.constant dense<0.000000e+00> : vector<8x128xf32>
    %2 = tpu.matmul %0, %1, %cst {dimension_numbers = #tpu.dot_dimension_numbers<[1], [0], [0], [1], [0, 0, 1, 1], [], []>} : vector<8x3200xf32>, vector<3200x128xf32>, vector<8x128xf32> -> vector<8x128xf32>
    %c0_3 = arith.constant 0 : index
    %c0_4 = arith.constant 0 : index
    %3 = vector.load %arg3[%c0_3, %c0_4] : memref<1x128xf32, #tpu.memory_space<vmem>>, vector<1x128xf32>
    %4 = vector.broadcast %3 : vector<1x128xf32> to vector<8x128xf32>
    %5 = arith.addf %2, %4 : vector<8x128xf32>
    %cst_5 = arith.constant 0.000000e+00 : f32
    %6 = vector.broadcast %cst_5 : f32 to vector<8x128xf32>
    %7 = arith.maximumf %5, %6 : vector<8x128xf32>
    %c0_6 = arith.constant 0 : index
    %c0_7 = arith.constant 0 : index
    %8 = vector.load %arg9[%c0_6, %c0_7] : memref<8x128xf32, #tpu.memory_space<vmem>>, vector<8x128xf32>
    tpu.vector_store %arg9[%c0_6, %c0_7], %7 {strides = array<i32>} : memref<8x128xf32, #tpu.memory_space<vmem>>, vector<8x128xf32>,
    %c0_8 = arith.constant 0 : index
    %c0_9 = arith.constant 0 : index
    %9 = vector.load %arg4[%c0_8, %c0_9] : memref<128x128xf32, #tpu.memory_space<vmem>>, vector<128x128xf32>
    %cst_10 = arith.constant dense<0.000000e+00> : vector<8x128xf32>
    %10 = tpu.matmul %7, %9, %cst_10 {dimension_numbers = #tpu.dot_dimension_numbers<[1], [0], [0], [1], [0, 0, 1, 1], [], []>} : vector<8x128xf32>, vector<128x128xf32>, vector<8x128xf32> -> vector<8x128xf32>
    %c0_11 = arith.constant 0 : index
    %c0_12 = arith.constant 0 : index
    %11 = vector.load %arg5[%c0_11, %c0_12] : memref<1x128xf32, #tpu.memory_space<vmem>>, vector<1x128xf32>
    %12 = vector.broadcast %11 : vector<1x128xf32> to vector<8x128xf32>
    %13 = arith.addf %10, %12 : vector<8x128xf32>
    %cst_13 = arith.constant 0.000000e+00 : f32
    %14 = vector.broadcast %cst_13 : f32 to vector<8x128xf32>
    %15 = arith.maximumf %13, %14 : vector<8x128xf32>
    %c0_14 = arith.constant 0 : index
    %c0_15 = arith.constant 0 : index
    %16 = vector.load %arg6[%c0_14, %c0_15] : memref<128x128xf32, #tpu.memory_space<vmem>>, vector<128x128xf32>
    %cst_16 = arith.constant dense<0.000000e+00> : vector<8x128xf32>
    %17 = tpu.matmul %15, %16, %cst_16 {dimension_numbers = #tpu.dot_dimension_numbers<[1], [0], [0], [1], [0, 0, 1, 1], [], []>} : vector<8x128xf32>, vector<128x128xf32>, vector<8x128xf32> -> vector<8x128xf32>
    %c0_17 = arith.constant 0 : index
    %c0_18 = arith.constant 0 : index
    %18 = vector.load %arg7[%c0_17, %c0_18] : memref<1x128xf32, #tpu.memory_space<vmem>>, vector<1x128xf32>
    %19 = vector.broadcast %18 : vector<1x128xf32> to vector<8x128xf32>
    %20 = arith.addf %17, %19 : vector<8x128xf32>
    %cst_19 = arith.constant dense<0xFF800000> : vector<8xf32>
    %21 = vector.multi_reduction <maximumf>, %20, %cst_19 [1] : vector<8x128xf32> to vector<8xf32>
    %22 = vector.shape_cast %21 : vector<8xf32> to vector<8x1xf32>
    %23 = vector.broadcast %22 : vector<8x1xf32> to vector<8x128xf32>
    %24 = arith.subf %20, %23 : vector<8x128xf32>
    %25 = math.exp %24 : vector<8x128xf32>
    %cst_20 = arith.constant dense<0.000000e+00> : vector<8xf32>
    %26 = vector.multi_reduction <add>, %25, %cst_20 [1] : vector<8x128xf32> to vector<8xf32>
    %27 = vector.shape_cast %26 : vector<8xf32> to vector<8x1xf32>
    %28 = math.log %27 : vector<8x1xf32>
    %29 = arith.addf %28, %22 : vector<8x1xf32>
    %30 = vector.broadcast %29 : vector<8x1xf32> to vector<8x128xf32>
    %31 = arith.subf %20, %30 : vector<8x128xf32>
    %c0_21 = arith.constant 0 : index
    %c0_22 = arith.constant 0 : index
    %32 = vector.load %arg8[%c0_21, %c0_22] : memref<8x128xf32, #tpu.memory_space<vmem>>, vector<8x128xf32>
    tpu.vector_store %arg8[%c0_21, %c0_22], %31 {strides = array<i32>} : memref<8x128xf32, #tpu.memory_space<vmem>>, vector<8x128xf32>,
    return
  }
  func.func @transform_0(%arg0: i32) -> (i32, i32) {
    %c0_i32 = arith.constant 0 : i32
    %c0_i32_0 = arith.constant 0 : i32
    return %arg0, %c0_i32 : i32, i32
  }
  func.func @transform_1(%arg0: i32) -> (i32, i32) {
    %c0_i32 = arith.constant 0 : i32
    %c0_i32_0 = arith.constant 0 : i32
    %c0_i32_1 = arith.constant 0 : i32
    return %c0_i32, %c0_i32_0 : i32, i32
  }
  func.func @transform_2(%arg0: i32) -> (i32, i32) {
    %c0_i32 = arith.constant 0 : i32
    %c0_i32_0 = arith.constant 0 : i32
    %c0_i32_1 = arith.constant 0 : i32
    return %c0_i32, %c0_i32_0 : i32, i32
  }
  func.func @transform_3(%arg0: i32) -> (i32, i32) {
    %c0_i32 = arith.constant 0 : i32
    %c0_i32_0 = arith.constant 0 : i32
    %c0_i32_1 = arith.constant 0 : i32
    return %c0_i32, %c0_i32_0 : i32, i32
  }
  func.func @transform_4(%arg0: i32) -> (i32, i32) {
    %c0_i32 = arith.constant 0 : i32
    %c0_i32_0 = arith.constant 0 : i32
    %c0_i32_1 = arith.constant 0 : i32
    return %c0_i32, %c0_i32_0 : i32, i32
  }
  func.func @transform_5(%arg0: i32) -> (i32, i32) {
    %c0_i32 = arith.constant 0 : i32
    %c0_i32_0 = arith.constant 0 : i32
    %c0_i32_1 = arith.constant 0 : i32
    return %c0_i32, %c0_i32_0 : i32, i32
  }
  func.func @transform_6(%arg0: i32) -> (i32, i32) {
    %c0_i32 = arith.constant 0 : i32
    %c0_i32_0 = arith.constant 0 : i32
    %c0_i32_1 = arith.constant 0 : i32
    return %c0_i32, %c0_i32_0 : i32, i32
  }
  func.func @transform_7(%arg0: i32) -> (i32, i32) {
    %c0_i32 = arith.constant 0 : i32
    %c0_i32_0 = arith.constant 0 : i32
    return %arg0, %c0_i32 : i32, i32
  }
  func.func @transform_8(%arg0: i32) -> (i32, i32) {
    %c0_i32 = arith.constant 0 : i32
    %c0_i32_0 = arith.constant 0 : i32
    return %arg0, %c0_i32 : i32, i32
  }
}

</mosaic_0001>

<llo_original>
// kernel: cnn_cifar_forward.3
$region0: #{cnn_cifar_forward.3}
  #allocation0 [shape = 'u32[]', space=smem, size = 0x4, offset = 0x4, fixed_abs, tag = 'smem constant byte address 0x4 - core index']
  #allocation1 [shape = 'u32[144,128]{1,0:T(1,128)}', space=vmem, size = 0x12000, scoped, tag = 'internal scratch']
  %s0 = inlined_call_operand.vmem [shape: f32[4,392,128], index: 0, kind: input, shape index: {}]
  %s1 = inlined_call_operand.vmem [shape: f32[128,128], index: 1, kind: input, shape index: {}]
  %s2 = inlined_call_operand.vmem [shape: f32[1,128], index: 2, kind: input, shape index: {}]
  %s3 = inlined_call_operand.vmem [shape: f32[392,128], index: 3, kind: output, shape index: {}]
  %s4 = sld [smem:[#allocation0]]
  $region22: #{cnn_cifar_forward.3} parent=0
    _
  %s6 = ssub.s32 1, %s4
  %s7 = scalar_select 0, %s6, %s4
  // Predicated region
  $region2: #{cnn_cifar_forward.3} parent=0 // pred_check
    _
  $region3: #{cnn_cifar_forward.3} parent=0 // pred_check_branch
    %9 = sbr.rel (0) target = $region5
  $region4: #{cnn_cifar_forward.3} parent=0 // pred_region
    _
  $region5: #{cnn_cifar_forward.3} parent=0 // pred_fallthru
    _
  // Predicated region
  $region6: #{cnn_cifar_forward.3} parent=0 // pred_check
    _
  $region7: #{cnn_cifar_forward.3} parent=0 // pred_check_branch
    %11 = sbr.rel (0) target = $region9
  $region8: #{cnn_cifar_forward.3} parent=0 // pred_region
    _
  $region9: #{cnn_cifar_forward.3} parent=0 // pred_fallthru
    _
  // Predicated region
  $region10: #{cnn_cifar_forward.3} parent=0 // pred_check
    _
  $region11: #{cnn_cifar_forward.3} parent=0 // pred_check_branch
    %13 = sbr.rel (0) target = $region13
  $region12: #{cnn_cifar_forward.3} parent=0 // pred_region
    _
  $region13: #{cnn_cifar_forward.3} parent=0 // pred_fallthru
    _
  %v14 = vld [vmem:[%s1] sm:$0xff]
  %v15 = vld [vmem:[%s1 + $0x8] sm:$0xff]
  %v16 = vld [vmem:[%s1 + $0x10] sm:$0xff]
  %v17 = vld [vmem:[%s1 + $0x18] sm:$0xff]
  %v18 = vld [vmem:[%s1 + $0x20] sm:$0xff]
  %v19 = vld [vmem:[%s1 + $0x28] sm:$0xff]
  %v20 = vld [vmem:[%s1 + $0x30] sm:$0xff]
  %v21 = vld [vmem:[%s1 + $0x38] sm:$0xff]
  %v22 = vld [vmem:[%s1 + $0x40] sm:$0xff]
  %v23 = vld [vmem:[%s1 + $0x48] sm:$0xff]
  %v24 = vld [vmem:[%s1 + $0x50] sm:$0xff]
  %v25 = vld [vmem:[%s1 + $0x58] sm:$0xff]
  %v26 = vld [vmem:[%s1 + $0x60] sm:$0xff]
  %v27 = vld [vmem:[%s1 + $0x68] sm:$0xff]
  %v28 = vld [vmem:[%s1 + $0x70] sm:$0xff]
  %v29 = vld [vmem:[%s1 + $0x78] sm:$0xff]
  %v30 = vld [vmem:[%s0] sm:$0xff]
  %v31 = vld [vmem:[%s0 + $0x8] sm:$0xff]
  %v32 = vld [vmem:[%s0 + $0x10] sm:$0xff]
  %v33 = vld [vmem:[%s0 + $0x18] sm:$0xff]
  %v34 = vld [vmem:[%s0 + $0x20] sm:$0xff]
  %v35 = vld [vmem:[%s0 + $0x28] sm:$0xff]
  %v36 = vld [vmem:[%s0 + $0x30] sm:$0xff]
  %v37 = vld [vmem:[%s0 + $0x38] sm:$0xff]
  %v38 = vld [vmem:[%s0 + $0x40] sm:$0xff]
  %v39 = vld [vmem:[%s0 + $0x48] sm:$0xff]
  %v40 = vld [vmem:[%s0 + $0x50] sm:$0xff]
  %v41 = vld [vmem:[%s0 + $0x58] sm:$0xff]
  %v42 = vld [vmem:[%s0 + $0x60] sm:$0xff]
  %v43 = vld [vmem:[%s0 + $0x68] sm:$0xff]
  %v44 = vld [vmem:[%s0 + $0x70] sm:$0xff]
  %v45 = vld [vmem:[%s0 + $0x78] sm:$0xff]
  %v46 = vld [vmem:[%s0 + $0x80] sm:$0xff]
  %v47 = vld [vmem:[%s0 + $0x88] sm:$0xff]
  %v48 = vld [vmem:[%s0 + $0x90] sm:$0xff]
  %v49 = vld [vmem:[%s0 + $0x98] sm:$0xff]
  %v50 = vld [vmem:[%s0 + $0xa0] sm:$0xff]
  %v51 = vld [vmem:[%s0 + $0xa8] sm:$0xff]
  %v52 = vld [vmem:[%s0 + $0xb0] sm:$0xff]
  %v53 = vld [vmem:[%s0 + $0xb8] sm:$0xff]
  %v54 = vld [vmem:[%s0 + $0xc0] sm:$0xff]
  %v55 = vld [vmem:[%s0 + $0xc8] sm:$0xff]
  %v56 = vld [vmem:[%s0 + $0xd0] sm:$0xff]
  %v57 = vld [vmem:[%s0 + $0xd8] sm:$0xff]
  %v58 = vld [vmem:[%s0 + $0xe0] sm:$0xff]
  %v59 = vld [vmem:[%s0 + $0xe8] sm:$0xff]
  %v60 = vld [vmem:[%s0 + $0xf0] sm:$0xff]
  %v61 = vld [vmem:[%s0 + $0xf8] sm:$0xff]
  %v62 = vld [vmem:[%s0 + $0x100] sm:$0xff]
  %v63 = vld [vmem:[%s0 + $0x108] sm:$0xff]
  %v64 = vld [vmem:[%s0 + $0x110] sm:$0xff]
  %v65 = vld [vmem:[%s0 + $0x118] sm:$0xff]
  %v66 = vld [vmem:[%s0 + $0x120] sm:$0xff]
  %v67 = vld [vmem:[%s0 + $0x128] sm:$0xff]
  %v68 = vld [vmem:[%s0 + $0x130] sm:$0xff]
  %v69 = vld [vmem:[%s0 + $0x138] sm:$0xff]
  %v70 = vld [vmem:[%s0 + $0x140] sm:$0xff]
  %v71 = vld [vmem:[%s0 + $0x148] sm:$0xff]
  %v72 = vld [vmem:[%s0 + $0x150] sm:$0xff]
  %v73 = vld [vmem:[%s0 + $0x158] sm:$0xff]
  %v74 = vld [vmem:[%s0 + $0x160] sm:$0xff]
  %v75 = vld [vmem:[%s0 + $0x168] sm:$0xff]
  %v76 = vld [vmem:[%s0 + $0x170] sm:$0xff]
  %v77 = vld [vmem:[%s0 + $0x178] sm:$0xff]
  %v78 = vld [vmem:[%s0 + $0x180] sm:$0xff]
  %79 = vmatprep.subr.mxu0 0.0
  %80 = vmatpush1.msra.mxu0 %v14
  %81 = vmatprep.subr.mxu0 0.0
  %82 = vmatpush1.msra.mxu0 %v15
  %83 = vmatprep.subr.mxu0 0.0
  %84 = vmatpush1.msra.mxu0 %v16
  %85 = vmatprep.subr.mxu0 0.0
  %86 = vmatpush1.msra.mxu0 %v17
  %87 = vmatprep.subr.mxu0 0.0
  %88 = vmatpush1.msra.mxu0 %v18
  %89 = vmatprep.subr.mxu0 0.0
  %90 = vmatpush1.msra.mxu0 %v19
  %91 = vmatprep.subr.mxu0 0.0
  %92 = vmatpush1.msra.mxu0 %v20
  %93 = vmatprep.subr.mxu0 0.0
  %94 = vmatpush1.msra.mxu0 %v21
  %95 = vmatprep.subr.mxu0 0.0
  %96 = vmatpush1.msra.mxu0 %v22
  %97 = vmatprep.subr.mxu0 0.0
  %98 = vmatpush1.msra.mxu0 %v23
  %99 = vmatprep.subr.mxu0 0.0
  %100 = vmatpush1.msra.mxu0 %v24
  %101 = vmatprep.subr.mxu0 0.0
  %102 = vmatpush1.msra.mxu0 %v25
  %103 = vmatprep.subr.mxu0 0.0
  %104 = vmatpush1.msra.mxu0 %v26
  %105 = vmatprep.subr.mxu0 0.0
  %106 = vmatpush1.msra.mxu0 %v27
  %107 = vmatprep.subr.mxu0 0.0
  %108 = vmatpush1.msra.mxu0 %v28
  %109 = vmatprep.subr.mxu0 0.0
  %110 = vmatpush1.msra.mxu0 %v29
  %111 = vmatprep.subr.mxu0 0.0
  %112 = vmatpush1.msra.mxu0 0.0
  %113 = vmatprep.subr.mxu0 0.0
  %114 = vmatpush1.msra.mxu0 0.0
  %115 = vmatprep.subr.mxu0 0.0
  %116 = vmatpush1.msra.mxu0 0.0
  %117 = vmatprep.subr.mxu0 0.0
  %118 = vmatpush1.msra.mxu0 0.0
  %119 = vmatprep.subr.mxu0 0.0
  %120 = vmatpush1.msra.mxu0 0.0
  %121 = vmatprep.subr.mxu0 0.0
  %122 = vmatpush1.msra.mxu0 0.0
  %123 = vmatprep.subr.mxu0 0.0
  %124 = vmatpush1.msra.mxu0 0.0
  %125 = vmatprep.subr.mxu0 0.0
  %126 = vmatpush1.msra.mxu0 0.0
  %127 = vmatprep.subr.mxu0 0.0
  %128 = vmatpush1.msra.mxu0 0.0
  %129 = vmatprep.subr.mxu0 0.0
  %130 = vmatpush1.msra.mxu0 0.0
  %131 = vmatprep.subr.mxu0 0.0
  %132 = vmatpush1.msra.mxu0 0.0
  %133 = vmatprep.subr.mxu0 0.0
  %134 = vmatpush1.msra.mxu0 0.0
  %135 = vmatprep.subr.mxu0 0.0
  %136 = vmatpush1.msra.mxu0 0.0
  %137 = vmatprep.subr.mxu0 0.0
  %138 = vmatpush1.msra.mxu0 0.0
  %139 = vmatprep.subr.mxu0 0.0
  %140 = vmatpush1.msra.mxu0 0.0
  %141 = vmatprep.subr.mxu0 0.0
  %142 = vmatpush1.msra.mxu0 0.0
  %143 = vmatprep.mubr.f32.mxu0 0.0
  %144 = vmatmul.mubr.f32.gmra.mrb[0].mxu0 %v30
  %v145 = vpop.f32.mrb[0].mxu0
  %v146 = vadd.f32 0.0, %v145
  %v147 = vpop.f32.mrb[0].mxu0
  %148 = vmatprep.mubr.f32.mxu0 0.0
  %149 = vmatmul.mubr.f32.gmra.mrb[0].mxu0 %v31
  %v150 = vpop.f32.mrb[0].mxu0
  %v151 = vadd.f32 0.0, %v150
  %v152 = vpop.f32.mrb[0].mxu0
  %153 = vmatprep.mubr.f32.mxu0 0.0
  %154 = vmatmul.mubr.f32.gmra.mrb[0].mxu0 %v32
  %v155 = vpop.f32.mrb[0].mxu0
  %v156 = vadd.f32 0.0, %v155
  %v157 = vpop.f32.mrb[0].mxu0
  %158 = vmatprep.mubr.f32.mxu0 0.0
  %159 = vmatmul.mubr.f32.gmra.mrb[0].mxu0 %v33
  %v160 = vpop.f32.mrb[0].mxu0
  %v161 = vadd.f32 0.0, %v160
  %v162 = vpop.f32.mrb[0].mxu0
  %163 = vmatprep.mubr.f32.mxu0 0.0
  %164 = vmatmul.mubr.f32.gmra.mrb[0].mxu0 %v34
  %v165 = vpop.f32.mrb[0].mxu0
  %v166 = vadd.f32 0.0, %v165
  %v167 = vpop.f32.mrb[0].mxu0
  %168 = vmatprep.mubr.f32.mxu0 0.0
  %169 = vmatmul.mubr.f32.gmra.mrb[0].mxu0 %v35
  %v170 = vpop.f32.mrb[0].mxu0
  %v171 = vadd.f32 0.0, %v170
  %v172 = vpop.f32.mrb[0].mxu0
  %173 = vmatprep.mubr.f32.mxu0 0.0
  %174 = vmatmul.mubr.f32.gmra.mrb[0].mxu0 %v36
  %v175 = vpop.f32.mrb[0].mxu0
  %v176 = vadd.f32 0.0, %v175
  %v177 = vpop.f32.mrb[0].mxu0
  %178 = vmatprep.mubr.f32.mxu0 0.0
  %179 = vmatmul.mubr.f32.gmra.mrb[0].mxu0 %v37
  %v180 = vpop.f32.mrb[0].mxu0
  %v181 = vadd.f32 0.0, %v180
  %v182 = vpop.f32.mrb[0].mxu0
  %183 = vmatprep.mubr.f32.mxu0 0.0
  %184 = vmatmul.mubr.f32.gmra.mrb[0].mxu0 %v38
  %v185 = vpop.f32.mrb[0].mxu0
  %v186 = vadd.f32 0.0, %v185
  %v187 = vpop.f32.mrb[0].mxu0
  %188 = vmatprep.mubr.f32.mxu0 0.0
  %189 = vmatmul.mubr.f32.gmra.mrb[0].mxu0 %v39
  %v190 = vpop.f32.mrb[0].mxu0
  %v191 = vadd.f32 0.0, %v190
  %v192 = vpop.f32.mrb[0].mxu0
  %193 = vmatprep.mubr.f32.mxu0 0.0
  %194 = vmatmul.mubr.f32.gmra.mrb[0].mxu0 %v40
  %v195 = vpop.f32.mrb[0].mxu0
  %v196 = vadd.f32 0.0, %v195
  %v197 = vpop.f32.mrb[0].mxu0
  %198 = vmatprep.mubr.f32.mxu0 0.0
  %199 = vmatmul.mubr.f32.gmra.mrb[0].mxu0 %v41
  %v200 = vpop.f32.mrb[0].mxu0
  %v201 = vadd.f32 0.0, %v200
  %v202 = vpop.f32.mrb[0].mxu0
  %203 = vmatprep.mubr.f32.mxu0 0.0
  %204 = vmatmul.mubr.f32.gmra.mrb[0].mxu0 %v42
  %v205 = vpop.f32.mrb[0].mxu0
  %v206 = vadd.f32 0.0, %v205
  %v207 = vpop.f32.mrb[0].mxu0
  %208 = vmatprep.mubr.f32.mxu0 0.0
  %209 = vmatmul.mubr.f32.gmra.mrb[0].mxu0 %v43
  %v210 = vpop.f32.mrb[0].mxu0
  %v211 = vadd.f32 0.0, %v210
  %v212 = vpop.f32.mrb[0].mxu0
  %213 = vmatprep.mubr.f32.mxu0 0.0
  %214 = vmatmul.mubr.f32.gmra.mrb[0].mxu0 %v44
  %v215 = vpop.f32.mrb[0].mxu0
  %v216 = vadd.f32 0.0, %v215
  %v217 = vpop.f32.mrb[0].mxu0
  %218 = vmatprep.mubr.f32.mxu0 0.0
  %219 = vmatmul.mubr.f32.gmra.mrb[0].mxu0 %v45
  %v220 = vpop.f32.mrb[0].mxu0
  %v221 = vadd.f32 0.0, %v220
  %v222 = vpop.f32.mrb[0].mxu0
  %223 = vmatprep.mubr.f32.mxu0 0.0
  %224 = vmatmul.mubr.f32.gmra.mrb[0].mxu0 %v46
  %v225 = vpop.f32.mrb[0].mxu0
  %v226 = vadd.f32 0.0, %v225
  %v227 = vpop.f32.mrb[0].mxu0
  %228 = vmatprep.mubr.f32.mxu0 0.0
  %229 = vmatmul.mubr.f32.gmra.mrb[0].mxu0 %v47
  %v230 = vpop.f32.mrb[0].mxu0
  %v231 = vadd.f32 0.0, %v230
  %v232 = vpop.f32.mrb[0].mxu0
  %233 = vmatprep.mubr.f32.mxu0 0.0
  %234 = vmatmul.mubr.f32.gmra.mrb[0].mxu0 %v48
  %v235 = vpop.f32.mrb[0].mxu0
  %v236 = vadd.f32 0.0, %v235
  %v237 = vpop.f32.mrb[0].mxu0
  %238 = vmatprep.mubr.f32.mxu0 0.0
  %239 = vmatmul.mubr.f32.gmra.mrb[0].mxu0 %v49
  %v240 = vpop.f32.mrb[0].mxu0
  %v241 = vadd.f32 0.0, %v240
  %v242 = vpop.f32.mrb[0].mxu0
  %243 = vmatprep.mubr.f32.mxu0 0.0
  %244 = vmatmul.mubr.f32.gmra.mrb[0].mxu0 %v50
  %v245 = vpop.f32.mrb[0].mxu0
  %v246 = vadd.f32 0.0, %v245
  %v247 = vpop.f32.mrb[0].mxu0
  %248 = vmatprep.mubr.f32.mxu0 0.0
  %249 = vmatmul.mubr.f32.gmra.mrb[0].mxu0 %v51
  %v250 = vpop.f32.mrb[0].mxu0
  %v251 = vadd.f32 0.0, %v250
  %v252 = vpop.f32.mrb[0].mxu0
  %253 = vmatprep.mubr.f32.mxu0 0.0
  %254 = vmatmul.mubr.f32.gmra.mrb[0].mxu0 %v52
  %v255 = vpop.f32.mrb[0].mxu0
  %v256 = vadd.f32 0.0, %v255
  %v257 = vpop.f32.mrb[0].mxu0
  %258 = vmatprep.mubr.f32.mxu0 0.0
  %259 = vmatmul.mubr.f32.gmra.mrb[0].mxu0 %v53
  %v260 = vpop.f32.mrb[0].mxu0
  %v261 = vadd.f32 0.0, %v260
  %v262 = vpop.f32.mrb[0].mxu0
  %263 = vmatprep.mubr.f32.mxu0 0.0
  %264 = vmatmul.mubr.f32.gmra.mrb[0].mxu0 %v54
  %v265 = vpop.f32.mrb[0].mxu0
  %v266 = vadd.f32 0.0, %v265
  %v267 = vpop.f32.mrb[0].mxu0
  %268 = vmatprep.mubr.f32.mxu0 0.0
  %269 = vmatmul.mubr.f32.gmra.mrb[0].mxu0 %v55
  %v270 = vpop.f32.mrb[0].mxu0
  %v271 = vadd.f32 0.0, %v270
  %v272 = vpop.f32.mrb[0].mxu0
  %273 = vmatprep.mubr.f32.mxu0 0.0
  %274 = vmatmul.mubr.f32.gmra.mrb[0].mxu0 %v56
  %v275 = vpop.f32.mrb[0].mxu0
  %v276 = vadd.f32 0.0, %v275
  %v277 = vpop.f32.mrb[0].mxu0
  %278 = vmatprep.mubr.f32.mxu0 0.0
  %279 = vmatmul.mubr.f32.gmra.mrb[0].mxu0 %v57
  %v280 = vpop.f32.mrb[0].mxu0
  %v281 = vadd.f32 0.0, %v280
  %v282 = vpop.f32.mrb[0].mxu0
  %283 = vmatprep.mubr.f32.mxu0 0.0
  %284 = vmatmul.mubr.f32.gmra.mrb[0].mxu0 %v58
  %v285 = vpop.f32.mrb[0].mxu0
  %v286 = vadd.f32 0.0, %v285
  %v287 = vpop.f32.mrb[0].mxu0
  %288 = vmatprep.mubr.f32.mxu0 0.0
  %289 = vmatmul.mubr.f32.gmra.mrb[0].mxu0 %v59
  %v290 = vpop.f32.mrb[0].mxu0
  %v291 = vadd.f32 0.0, %v290
  %v292 = vpop.f32.mrb[0].mxu0
  %293 = vmatprep.mubr.f32.mxu0 0.0
  %294 = vmatmul.mubr.f32.gmra.mrb[0].mxu0 %v60
  %v295 = vpop.f32.mrb[0].mxu0
  %v296 = vadd.f32 0.0, %v295
  %v297 = vpop.f32.mrb[0].mxu0
  %298 = vmatprep.mubr.f32.mxu0 0.0
  %299 = vmatmul.mubr.f32.gmra.mrb[0].mxu0 %v61
  %v300 = vpop.f32.mrb[0].mxu0
  %v301 = vadd.f32 0.0, %v300
  %v302 = vpop.f32.mrb[0].mxu0
  %303 = vmatprep.mubr.f32.mxu0 0.0
  %304 = vmatmul.mubr.f32.gmra.mrb[0].mxu0 %v62
  %v305 = vpop.f32.mrb[0].mxu0
  %v306 = vadd.f32 0.0, %v305
  %v307 = vpop.f32.mrb[0].mxu0
  %308 = vmatprep.mubr.f32.mxu0 0.0
  %309 = vmatmul.mubr.f32.gmra.mrb[0].mxu0 %v63
  %v310 = vpop.f32.mrb[0].mxu0
  %v311 = vadd.f32 0.0, %v310
  %v312 = vpop.f32.mrb[0].mxu0
  %313 = vmatprep.mubr.f32.mxu0 0.0
  %314 = vmatmul.mubr.f32.gmra.mrb[0].mxu0 %v64
  %v315 = vpop.f32.mrb[0].mxu0
  %v316 = vadd.f32 0.0, %v315
  %v317 = vpop.f32.mrb[0].mxu0
  %318 = vmatprep.mubr.f32.mxu0 0.0
  %319 = vmatmul.mubr.f32.gmra.mrb[0].mxu0 %v65
  %v320 = vpop.f32.mrb[0].mxu0
  %v321 = vadd.f32 0.0, %v320
  %v322 = vpop.f32.mrb[0].mxu0
  %323 = vmatprep.mubr.f32.mxu0 0.0
  %324 = vmatmul.mubr.f32.gmra.mrb[0].mxu0 %v66
  %v325 = vpop.f32.mrb[0].mxu0
  %v326 = vadd.f32 0.0, %v325
  %v327 = vpop.f32.mrb[0].mxu0
  %328 = vmatprep.mubr.f32.mxu0 0.0
  %329 = vmatmul.mubr.f32.gmra.mrb[0].mxu0 %v67
  %v330 = vpop.f32.mrb[0].mxu0
  %v331 = vadd.f32 0.0, %v330
  %v332 = vpop.f32.mrb[0].mxu0
  %333 = vmatprep.mubr.f32.mxu0 0.0
  %334 = vmatmul.mubr.f32.gmra.mrb[0].mxu0 %v68
  %v335 = vpop.f32.mrb[0].mxu0
  %v336 = vadd.f32 0.0, %v335
  %v337 = vpop.f32.mrb[0].mxu0
  %338 = vmatprep.mubr.f32.mxu0 0.0
  %339 = vmatmul.mubr.f32.gmra.mrb[0].mxu0 %v69
  %v340 = vpop.f32.mrb[0].mxu0
  %v341 = vadd.f32 0.0, %v340
  %v342 = vpop.f32.mrb[0].mxu0
  %343 = vmatprep.mubr.f32.mxu0 0.0
  %344 = vmatmul.mubr.f32.gmra.mrb[0].mxu0 %v70
  %v345 = vpop.f32.mrb[0].mxu0
  %v346 = vadd.f32 0.0, %v345
  %v347 = vpop.f32.mrb[0].mxu0
  %348 = vmatprep.mubr.f32.mxu0 0.0
  %349 = vmatmul.mubr.f32.gmra.mrb[0].mxu0 %v71
  %v350 = vpop.f32.mrb[0].mxu0
  %v351 = vadd.f32 0.0, %v350
  %v352 = vpop.f32.mrb[0].mxu0
  %353 = vmatprep.mubr.f32.mxu0 0.0
  %354 = vmatmul.mubr.f32.gmra.mrb[0].mxu0 %v72
  %v355 = vpop.f32.mrb[0].mxu0
  %v356 = vadd.f32 0.0, %v355
  %v357 = vpop.f32.mrb[0].mxu0
  %358 = vmatprep.mubr.f32.mxu0 0.0
  %359 = vmatmul.mubr.f32.gmra.mrb[0].mxu0 %v73
  %v360 = vpop.f32.mrb[0].mxu0
  %v361 = vadd.f32 0.0, %v360
  %v362 = vpop.f32.mrb[0].mxu0
  %363 = vmatprep.mubr.f32.mxu0 0.0
  %364 = vmatmul.mubr.f32.gmra.mrb[0].mxu0 %v74
  %v365 = vpop.f32.mrb[0].mxu0
  %v366 = vadd.f32 0.0, %v365
  %v367 = vpop.f32.mrb[0].mxu0
  %368 = vmatprep.mubr.f32.mxu0 0.0
  %369 = vmatmul.mubr.f32.gmra.mrb[0].mxu0 %v75
  %v370 = vpop.f32.mrb[0].mxu0
  %v371 = vadd.f32 0.0, %v370
  %v372 = vpop.f32.mrb[0].mxu0
  %373 = vmatprep.mubr.f32.mxu0 0.0
  %374 = vmatmul.mubr.f32.gmra.mrb[0].mxu0 %v76
  %v375 = vpop.f32.mrb[0].mxu0
  %v376 = vadd.f32 0.0, %v375
  %v377 = vpop.f32.mrb[0].mxu0
  %378 = vmatprep.mubr.f32.mxu0 0.0
  %379 = vmatmul.mubr.f32.gmra.mrb[0].mxu0 %v77
  %v380 = vpop.f32.mrb[0].mxu0
  %v381 = vadd.f32 0.0, %v380
  %v382 = vpop.f32.mrb[0].mxu0
  %383 = vmatprep.mubr.f32.mxu0 0.0
  %384 = vmatmul.mubr.f32.gmra.mrb[0].mxu0 %v78
  %v385 = vpop.f32.mrb[0].mxu0
  %v386 = vadd.f32 0.0, %v385
  %v387 = vpop.f32.mrb[0].mxu0
  %388 = vdwg.mxu0
  %s389 = scalar_lea.vmem %s0, 392
  %v390 = vld [vmem:[%s389] sm:$0xff]
  %v391 = vld [vmem:[%s389 + $0x8] sm:$0xff]
  %v392 = vld [vmem:[%s389 + $0x10] sm:$0xff]
  %v393 = vld [vmem:[%s389 + $0x18] sm:$0xff]
  %v394 = vld [vmem:[%s389 + $0x20] sm:$0xff]
  %v395 = vld [vmem:[%s389 + $0x28] sm:$0xff]
  %v396 = vld [vmem:[%s389 + $0x30] sm:$0xff]
  %v397 = vld [vmem:[%s389 + $0x38] sm:$0xff]
  %v398 = vld [vmem:[%s389 + $0x40] sm:$0xff]
  %v399 = vld [vmem:[%s389 + $0x48] sm:$0xff]
  %v400 = vld [vmem:[%s389 + $0x50] sm:$0xff]
  %v401 = vld [vmem:[%s389 + $0x58] sm:$0xff]
  %v402 = vld [vmem:[%s389 + $0x60] sm:$0xff]
  %v403 = vld [vmem:[%s389 + $0x68] sm:$0xff]
  %v404 = vld [vmem:[%s389 + $0x70] sm:$0xff]
  %v405 = vld [vmem:[%s389 + $0x78] sm:$0xff]
  %v406 = vld [vmem:[%s389 + $0x80] sm:$0xff]
  %v407 = vld [vmem:[%s389 + $0x88] sm:$0xff]
  %v408 = vld [vmem:[%s389 + $0x90] sm:$0xff]
  %v409 = vld [vmem:[%s389 + $0x98] sm:$0xff]
  %v410 = vld [vmem:[%s389 + $0xa0] sm:$0xff]
  %v411 = vld [vmem:[%s389 + $0xa8] sm:$0xff]
  %v412 = vld [vmem:[%s389 + $0xb0] sm:$0xff]
  %v413 = vld [vmem:[%s389 + $0xb8] sm:$0xff]
  %v414 = vld [vmem:[%s389 + $0xc0] sm:$0xff]
  %v415 = vld [vmem:[%s389 + $0xc8] sm:$0xff]
  %v416 = vld [vmem:[%s389 + $0xd0] sm:$0xff]
  %v417 = vld [vmem:[%s389 + $0xd8] sm:$0xff]
  %v418 = vld [vmem:[%s389 + $0xe0] sm:$0xff]
  %v419 = vld [vmem:[%s389 + $0xe8] sm:$0xff]
  %v420 = vld [vmem:[%s389 + $0xf0] sm:$0xff]
  %v421 = vld [vmem:[%s389 + $0xf8] sm:$0xff]
  %v422 = vld [vmem:[%s389 + $0x100] sm:$0xff]
  %v423 = vld [vmem:[%s389 + $0x108] sm:$0xff]
  %v424 = vld [vmem:[%s389 + $0x110] sm:$0xff]
  %v425 = vld [vmem:[%s389 + $0x118] sm:$0xff]
  %v426 = vld [vmem:[%s389 + $0x120] sm:$0xff]
  %v427 = vld [vmem:[%s389 + $0x128] sm:$0xff]
  %v428 = vld [vmem:[%s389 + $0x130] sm:$0xff]
  %v429 = vld [vmem:[%s389 + $0x138] sm:$0xff]
  %v430 = vld [vmem:[%s389 + $0x140] sm:$0xff]
  %v431 = vld [vmem:[%s389 + $0x148] sm:$0xff]
  %v432 = vld [vmem:[%s389 + $0x150] sm:$0xff]
  %v433 = vld [vmem:[%s389 + $0x158] sm:$0xff]
  %v434 = vld [vmem:[%s389 + $0x160] sm:$0xff]
  %v435 = vld [vmem:[%s389 + $0x168] sm:$0xff]
  %v436 = vld [vmem:[%s389 + $0x170] sm:$0xff]
  %v437 = vld [vmem:[%s389 + $0x178] sm:$0xff]
  %v438 = vld [vmem:[%s389 + $0x180] sm:$0xff]
  %439 = vmatprep.subr.mxu0 0.0
  %440 = vmatpush1.msra.mxu0 %v14
  %441 = vmatprep.subr.mxu0 0.0
  %442 = vmatpush1.msra.mxu0 %v15
  %443 = vmatprep.subr.mxu0 0.0
  %444 = vmatpush1.msra.mxu0 %v16
  %445 = vmatprep.subr.mxu0 0.0
  %446 = vmatpush1.msra.mxu0 %v17
  %447 = vmatprep.subr.mxu0 0.0
  %448 = vmatpush1.msra.mxu0 %v18
  %449 = vmatprep.subr.mxu0 0.0
  %450 = vmatpush1.msra.mxu0 %v19
  %451 = vmatprep.subr.mxu0 0.0
  %452 = vmatpush1.msra.mxu0 %v20
  %453 = vmatprep.subr.mxu0 0.0
  %454 = vmatpush1.msra.mxu0 %v21
  %455 = vmatprep.subr.mxu0 0.0
  %456 = vmatpush1.msra.mxu0 %v22
  %457 = vmatprep.subr.mxu0 0.0
  %458 = vmatpush1.msra.mxu0 %v23
  %459 = vmatprep.subr.mxu0 0.0
  %460 = vmatpush1.msra.mxu0 %v24
  %461 = vmatprep.subr.mxu0 0.0
  %462 = vmatpush1.msra.mxu0 %v25
  %463 = vmatprep.subr.mxu0 0.0
  %464 = vmatpush1.msra.mxu0 %v26
  %465 = vmatprep.subr.mxu0 0.0
  %466 = vmatpush1.msra.mxu0 %v27
  %467 = vmatprep.subr.mxu0 0.0
  %468 = vmatpush1.msra.mxu0 %v28
  %469 = vmatprep.subr.mxu0 0.0
  %470 = vmatpush1.msra.mxu0 %v29
  %471 = vmatprep.subr.mxu0 0.0
  %472 = vmatpush1.msra.mxu0 0.0
  %473 = vmatprep.subr.mxu0 0.0
  %474 = vmatpush1.msra.mxu0 0.0
  %475 = vmatprep.subr.mxu0 0.0
  %476 = vmatpush1.msra.mxu0 0.0
  %477 = vmatprep.subr.mxu0 0.0
  %478 = vmatpush1.msra.mxu0 0.0
  %479 = vmatprep.subr.mxu0 0.0
  %480 = vmatpush1.msra.mxu0 0.0
  %481 = vmatprep.subr.mxu0 0.0
  %482 = vmatpush1.msra.mxu0 0.0
  %483 = vmatprep.subr.mxu0 0.0
  %484 = vmatpush1.msra.mxu0 0.0
  %485 = vmatprep.subr.mxu0 0.0
  %486 = vmatpush1.msra.mxu0 0.0
  %487 = vmatprep.subr.mxu0 0.0
  %488 = vmatpush1.msra.mxu0 0.0
  %489 = vmatprep.subr.mxu0 0.0
  %490 = vmatpush1.msra.mxu0 0.0
  %491 = vmatprep.subr.mxu0 0.0
  %492 = vmatpush1.msra.mxu0 0.0
  %493 = vmatprep.subr.mxu0 0.0
  %494 = vmatpush1.msra.mxu0 0.0
  %495 = vmatprep.subr.mxu0 0.0
  %496 = vmatpush1.msra.mxu0 0.0
  %497 = vmatprep.subr.mxu0 0.0
  %498 = vmatpush1.msra.mxu0 0.0
  %499 = vmatprep.subr.mxu0 0.0
  %500 = vmatpush1.msra.mxu0 0.0
  %501 = vmatprep.subr.mxu0 0.0
  %502 = vmatpush1.msra.mxu0 0.0
  %503 = vmatprep.mubr.f32.mxu0 0.0
  %504 = vmatmul.mubr.f32.gmra.mrb[0].mxu0 %v390
  %v505 = vpop.f32.mrb[0].mxu0
  %v506 = vadd.f32 0.0, %v505
  %v507 = vpop.f32.mrb[0].mxu0
  %508 = vmatprep.mubr.f32.mxu0 0.0
  %509 = vmatmul.mubr.f32.gmra.mrb[0].mxu0 %v391
  %v510 = vpop.f32.mrb[0].mxu0
  %v511 = vadd.f32 0.0, %v510
  %v512 = vpop.f32.mrb[0].mxu0
  %513 = vmatprep.mubr.f32.mxu0 0.0
  %514 = vmatmul.mubr.f32.gmra.mrb[0].mxu0 %v392
  %v515 = vpop.f32.mrb[0].mxu0
  %v516 = vadd.f32 0.0, %v515
  %v517 = vpop.f32.mrb[0].mxu0
  %518 = vmatprep.mubr.f32.mxu0 0.0
  %519 = vmatmul.mubr.f32.gmra.mrb[0].mxu0 %v393
  %v520 = vpop.f32.mrb[0].mxu0
  %v521 = vadd.f32 0.0, %v520
  %v522 = vpop.f32.mrb[0].mxu0
  %523 = vmatprep.mubr.f32.mxu0 0.0
  %524 = vmatmul.mubr.f32.gmra.mrb[0].mxu0 %v394
  %v525 = vpop.f32.mrb[0].mxu0
  %v526 = vadd.f32 0.0, %v525
  %v527 = vpop.f32.mrb[0].mxu0
  %528 = vmatprep.mubr.f32.mxu0 0.0
  %529 = vmatmul.mubr.f32.gmra.mrb[0].mxu0 %v395
  %v530 = vpop.f32.mrb[0].mxu0
  %v531 = vadd.f32 0.0, %v530
  %v532 = vpop.f32.mrb[0].mxu0
  %533 = vmatprep.mubr.f32.mxu0 0.0
  %534 = vmatmul.mubr.f32.gmra.mrb[0].mxu0 %v396
  %v535 = vpop.f32.mrb[0].mxu0
  %v536 = vadd.f32 0.0, %v535
  %v537 = vpop.f32.mrb[0].mxu0
  %538 = vmatprep.mubr.f32.mxu0 0.0
  %539 = vmatmul.mubr.f32.gmra.mrb[0].mxu0 %v397
  %v540 = vpop.f32.mrb[0].mxu0
  %v541 = vadd.f32 0.0, %v540
  %v542 = vpop.f32.mrb[0].mxu0
  %543 = vmatprep.mubr.f32.mxu0 0.0
  %544 = vmatmul.mubr.f32.gmra.mrb[0].mxu0 %v398
  %v545 = vpop.f32.mrb[0].mxu0
  %v546 = vadd.f32 0.0, %v545
  %v547 = vpop.f32.mrb[0].mxu0
  %548 = vmatprep.mubr.f32.mxu0 0.0
  %549 = vmatmul.mubr.f32.gmra.mrb[0].mxu0 %v399
  %v550 = vpop.f32.mrb[0].mxu0
  %v551 = vadd.f32 0.0, %v550
  %v552 = vpop.f32.mrb[0].mxu0
  %553 = vmatprep.mubr.f32.mxu0 0.0
  %554 = vmatmul.mubr.f32.gmra.mrb[0].mxu0 %v400
  %v555 = vpop.f32.mrb[0].mxu0
  %v556 = vadd.f32 0.0, %v555
  %v557 = vpop.f32.mrb[0].mxu0
  %558 = vmatprep.mubr.f32.mxu0 0.0
  %559 = vmatmul.mubr.f32.gmra.mrb[0].mxu0 %v401
  %v560 = vpop.f32.mrb[0].mxu0
  %v561 = vadd.f32 0.0, %v560
  %v562 = vpop.f32.mrb[0].mxu0
  %563 = vmatprep.mubr.f32.mxu0 0.0
  %564 = vmatmul.mubr.f32.gmra.mrb[0].mxu0 %v402
  %v565 = vpop.f32.mrb[0].mxu0
  %v566 = vadd.f32 0.0, %v565
  %v567 = vpop.f32.mrb[0].mxu0
  %568 = vmatprep.mubr.f32.mxu0 0.0
  %569 = vmatmul.mubr.f32.gmra.mrb[0].mxu0 %v403
  %v570 = vpop.f32.mrb[0].mxu0
  %v571 = vadd.f32 0.0, %v570
  %v572 = vpop.f32.mrb[0].mxu0
  %573 = vmatprep.mubr.f32.mxu0 0.0
  %574 = vmatmul.mubr.f32.gmra.mrb[0].mxu0 %v404
  %v575 = vpop.f32.mrb[0].mxu0
  %v576 = vadd.f32 0.0, %v575
  %v577 = vpop.f32.mrb[0].mxu0
  %578 = vmatprep.mubr.f32.mxu0 0.0
  %579 = vmatmul.mubr.f32.gmra.mrb[0].mxu0 %v405
  %v580 = vpop.f32.mrb[0].mxu0
  %v581 = vadd.f32 0.0, %v580
  %v582 = vpop.f32.mrb[0].mxu0
  %583 = vmatprep.mubr.f32.mxu0 0.0
  %584 = vmatmul.mubr.f32.gmra.mrb[0].mxu0 %v406
  %v585 = vpop.f32.mrb[0].mxu0
  %v586 = vadd.f32 0.0, %v585
  %v587 = vpop.f32.mrb[0].mxu0
  %588 = vmatprep.mubr.f32.mxu0 0.0
  %589 = vmatmul.mubr.f32.gmra.mrb[0].mxu0 %v407
  %v590 = vpop.f32.mrb[0].mxu0
  %v591 = vadd.f32 0.0, %v590
  %v592 = vpop.f32.mrb[0].mxu0
  %593 = vmatprep.mubr.f32.mxu0 0.0
  %594 = vmatmul.mubr.f32.gmra.mrb[0].mxu0 %v408
  %v595 = vpop.f32.mrb[0].mxu0
  %v596 = vadd.f32 0.0, %v595
  %v597 = vpop.f32.mrb[0].mxu0
  %598 = vmatprep.mubr.f32.mxu0 0.0
  %599 = vmatmul.mubr.f32.gmra.mrb[0].mxu0 %v409
  %v600 = vpop.f32.mrb[0].mxu0
  %v601 = vadd.f32 0.0, %v600
  %v602 = vpop.f32.mrb[0].mxu0
  %603 = vmatprep.mubr.f32.mxu0 0.0
  %604 = vmatmul.mubr.f32.gmra.mrb[0].mxu0 %v410
  %v605 = vpop.f32.mrb[0].mxu0
  %v606 = vadd.f32 0.0, %v605
  %v607 = vpop.f32.mrb[0].mxu0
  %608 = vmatprep.mubr.f32.mxu0 0.0
  %609 = vmatmul.mubr.f32.gmra.mrb[0].mxu0 %v411
  %v610 = vpop.f32.mrb[0].mxu0
  %v611 = vadd.f32 0.0, %v610
  %v612 = vpop.f32.mrb[0].mxu0
  %613 = vmatprep.mubr.f32.mxu0 0.0
  %614 = vmatmul.mubr.f32.gmra.mrb[0].mxu0 %v412
  %v615 = vpop.f32.mrb[0].mxu0
  %v616 = vadd.f32 0.0, %v615
  %v617 = vpop.f32.mrb[0].mxu0
  %618 = vmatprep.mubr.f32.mxu0 0.0
  %619 = vmatmul.mubr.f32.gmra.mrb[0].mxu0 %v413
  %v620 = vpop.f32.mrb[0].mxu0
  %v621 = vadd.f32 0.0, %v620
  %v622 = vpop.f32.mrb[0].mxu0
  %623 = vmatprep.mubr.f32.mxu0 0.0
  %624 = vmatmul.mubr.f32.gmra.mrb[0].mxu0 %v414
  %v625 = vpop.f32.mrb[0].mxu0
  %v626 = vadd.f32 0.0, %v625
  %v627 = vpop.f32.mrb[0].mxu0
  %628 = vmatprep.mubr.f32.mxu0 0.0
  %629 = vmatmul.mubr.f32.gmra.mrb[0].mxu0 %v415
  %v630 = vpop.f32.mrb[0].mxu0
  %v631 = vadd.f32 0.0, %v630
  %v632 = vpop.f32.mrb[0].mxu0
  %633 = vmatprep.mubr.f32.mxu0 0.0
  %634 = vmatmul.mubr.f32.gmra.mrb[0].mxu0 %v416
  %v635 = vpop.f32.mrb[0].mxu0
  %v636 = vadd.f32 0.0, %v635
  %v637 = vpop.f32.mrb[0].mxu0
  %638 = vmatprep.mubr.f32.mxu0 0.0
  %639 = vmatmul.mubr.f32.gmra.mrb[0].mxu0 %v417
  %v640 = vpop.f32.mrb[0].mxu0
  %v641 = vadd.f32 0.0, %v640
  %v642 = vpop.f32.mrb[0].mxu0
  %643 = vmatprep.mubr.f32.mxu0 0.0
  %644 = vmatmul.mubr.f32.gmra.mrb[0].mxu0 %v418
  %v645 = vpop.f32.mrb[0].mxu0
  %v646 = vadd.f32 0.0, %v645
  %v647 = vpop.f32.mrb[0].mxu0
  %648 = vmatprep.mubr.f32.mxu0 0.0
  %649 = vmatmul.mubr.f32.gmra.mrb[0].mxu0 %v419
  %v650 = vpop.f32.mrb[0].mxu0
  %v651 = vadd.f32 0.0, %v650
  %v652 = vpop.f32.mrb[0].mxu0
  %653 = vmatprep.mubr.f32.mxu0 0.0
  %654 = vmatmul.mubr.f32.gmra.mrb[0].mxu0 %v420
  %v655 = vpop.f32.mrb[0].mxu0
  %v656 = vadd.f32 0.0, %v655
  %v657 = vpop.f32.mrb[0].mxu0
  %658 = vmatprep.mubr.f32.mxu0 0.0
  %659 = vmatmul.mubr.f32.gmra.mrb[0].mxu0 %v421
  %v660 = vpop.f32.mrb[0].mxu0
  %v661 = vadd.f32 0.0, %v660
  %v662 = vpop.f32.mrb[0].mxu0
  %663 = vmatprep.mubr.f32.mxu0 0.0
  %664 = vmatmul.mubr.f32.gmra.mrb[0].mxu0 %v422
  %v665 = vpop.f32.mrb[0].mxu0
  %v666 = vadd.f32 0.0, %v665
  %v667 = vpop.f32.mrb[0].mxu0
  %668 = vmatprep.mubr.f32.mxu0 0.0
  %669 = vmatmul.mubr.f32.gmra.mrb[0].mxu0 %v423
  %v670 = vpop.f32.mrb[0].mxu0
  %v671 = vadd.f32 0.0, %v670
  %v672 = vpop.f32.mrb[0].mxu0
  %673 = vmatprep.mubr.f32.mxu0 0.0
  %674 = vmatmul.mubr.f32.gmra.mrb[0].mxu0 %v424
  %v675 = vpop.f32.mrb[0].mxu0
  %v676 = vadd.f32 0.0, %v675
  %v677 = vpop.f32.mrb[0].mxu0
  %678 = vmatprep.mubr.f32.mxu0 0.0
  %679 = vmatmul.mubr.f32.gmra.mrb[0].mxu0 %v425
  %v680 = vpop.f32.mrb[0].mxu0
  %v681 = vadd.f32 0.0, %v680
  %v682 = vpop.f32.mrb[0].mxu0
  %683 = vmatprep.mubr.f32.mxu0 0.0
  %684 = vmatmul.mubr.f32.gmra.mrb[0].mxu0 %v426
  %v685 = vpop.f32.mrb[0].mxu0
  %v686 = vadd.f32 0.0, %v685
  %v687 = vpop.f32.mrb[0].mxu0
  %688 = vmatprep.mubr.f32.mxu0 0.0
  %689 = vmatmul.mubr.f32.gmra.mrb[0].mxu0 %v427
  %v690 = vpop.f32.mrb[0].mxu0
  %v691 = vadd.f32 0.0, %v690
  %v692 = vpop.f32.mrb[0].mxu0
  %693 = vmatprep.mubr.f32.mxu0 0.0
  %694 = vmatmul.mubr.f32.gmra.mrb[0].mxu0 %v428
  %v695 = vpop.f32.mrb[0].mxu0
  %v696 = vadd.f32 0.0, %v695
  %v697 = vpop.f32.mrb[0].mxu0
  %698 = vmatprep.mubr.f32.mxu0 0.0
  %699 = vmatmul.mubr.f32.gmra.mrb[0].mxu0 %v429
  %v700 = vpop.f32.mrb[0].mxu0
  %v701 = vadd.f32 0.0, %v700
  %v702 = vpop.f32.mrb[0].mxu0
  %703 = vmatprep.mubr.f32.mxu0 0.0
  %704 = vmatmul.mubr.f32.gmra.mrb[0].mxu0 %v430
  %v705 = vpop.f32.mrb[0].mxu0
  %v706 = vadd.f32 0.0, %v705
  %v707 = vpop.f32.mrb[0].mxu0
  %708 = vmatprep.mubr.f32.mxu0 0.0
  %709 = vmatmul.mubr.f32.gmra.mrb[0].mxu0 %v431
  %v710 = vpop.f32.mrb[0].mxu0
  %v711 = vadd.f32 0.0, %v710
  %v712 = vpop.f32.mrb[0].mxu0
  %713 = vmatprep.mubr.f32.mxu0 0.0
  %714 = vmatmul.mubr.f32.gmra.mrb[0].mxu0 %v432
  %v715 = vpop.f32.mrb[0].mxu0
  %v716 = vadd.f32 0.0, %v715
  %v717 = vpop.f32.mrb[0].mxu0
  %718 = vmatprep.mubr.f32.mxu0 0.0
  %719 = vmatmul.mubr.f32.gmra.mrb[0].mxu0 %v433
  %v720 = vpop.f32.mrb[0].mxu0
  %v721 = vadd.f32 0.0, %v720
  %v722 = vpop.f32.mrb[0].mxu0
  %723 = vmatprep.mubr.f32.mxu0 0.0
  %724 = vmatmul.mubr.f32.gmra.mrb[0].mxu0 %v434
  %v725 = vpop.f32.mrb[0].mxu0
  %v726 = vadd.f32 0.0, %v725
  %v727 = vpop.f32.mrb[0].mxu0
  %728 = vmatprep.mubr.f32.mxu0 0.0
  %729 = vmatmul.mubr.f32.gmra.mrb[0].mxu0 %v435
  %v730 = vpop.f32.mrb[0].mxu0
  %v731 = vadd.f32 0.0, %v730
  %v732 = vpop.f32.mrb[0].mxu0
  %733 = vmatprep.mubr.f32.mxu0 0.0
  %734 = vmatmul.mubr.f32.gmra.mrb[0].mxu0 %v436
  %v735 = vpop.f32.mrb[0].mxu0
  %v736 = vadd.f32 0.0, %v735
  %v737 = vpop.f32.mrb[0].mxu0
  %738 = vmatprep.mubr.f32.mxu0 0.0
  %739 = vmatmul.mubr.f32.gmra.mrb[0].mxu0 %v437
  %v740 = vpop.f32.mrb[0].mxu0
  %v741 = vadd.f32 0.0, %v740
  %v742 = vpop.f32.mrb[0].mxu0
  %743 = vmatprep.mubr.f32.mxu0 0.0
  %744 = vmatmul.mubr.f32.gmra.mrb[0].mxu0 %v438
  %v745 = vpop.f32.mrb[0].mxu0
  %v746 = vadd.f32 0.0, %v745
  %v747 = vpop.f32.mrb[0].mxu0
  %748 = vdwg.mxu0
  %v749 = vmax.f32 %v146, %v506
  %v750 = vmax.f32 %v151, %v511
  %v751 = vmax.f32 %v156, %v516
  %v752 = vmax.f32 %v161, %v521
  %v753 = vmax.f32 %v166, %v526
  %v754 = vmax.f32 %v171, %v531
  %v755 = vmax.f32 %v176, %v536
  %v756 = vmax.f32 %v181, %v541
  %v757 = vmax.f32 %v186, %v546
  %v758 = vmax.f32 %v191, %v551
  %v759 = vmax.f32 %v196, %v556
  %v760 = vmax.f32 %v201, %v561
  %v761 = vmax.f32 %v206, %v566
  %v762 = vmax.f32 %v211, %v571
  %v763 = vmax.f32 %v216, %v576
  %v764 = vmax.f32 %v221, %v581
  %v765 = vmax.f32 %v226, %v586
  %v766 = vmax.f32 %v231, %v591
  %v767 = vmax.f32 %v236, %v596
  %v768 = vmax.f32 %v241, %v601
  %v769 = vmax.f32 %v246, %v606
  %v770 = vmax.f32 %v251, %v611
  %v771 = vmax.f32 %v256, %v616
  %v772 = vmax.f32 %v261, %v621
  %v773 = vmax.f32 %v266, %v626
  %v774 = vmax.f32 %v271, %v631
  %v775 = vmax.f32 %v276, %v636
  %v776 = vmax.f32 %v281, %v641
  %v777 = vmax.f32 %v286, %v646
  %v778 = vmax.f32 %v291, %v651
  %v779 = vmax.f32 %v296, %v656
  %v780 = vmax.f32 %v301, %v661
  %v781 = vmax.f32 %v306, %v666
  %v782 = vmax.f32 %v311, %v671
  %v783 = vmax.f32 %v316, %v676
  %v784 = vmax.f32 %v321, %v681
  %v785 = vmax.f32 %v326, %v686
  %v786 = vmax.f32 %v331, %v691
  %v787 = vmax.f32 %v336, %v696
  %v788 = vmax.f32 %v341, %v701
  %v789 = vmax.f32 %v346, %v706
  %v790 = vmax.f32 %v351, %v711
  %v791 = vmax.f32 %v356, %v716
  %v792 = vmax.f32 %v361, %v721
  %v793 = vmax.f32 %v366, %v726
  %v794 = vmax.f32 %v371, %v731
  %v795 = vmax.f32 %v376, %v736
  %v796 = vmax.f32 %v381, %v741
  %v797 = vmax.f32 %v386, %v746
  %s798 = scalar_lea.vmem %s0, 784
  %v799 = vld [vmem:[%s798] sm:$0xff]
  %v800 = vld [vmem:[%s798 + $0x8] sm:$0xff]
  %v801 = vld [vmem:[%s798 + $0x10] sm:$0xff]
  %v802 = vld [vmem:[%s798 + $0x18] sm:$0xff]
  %v803 = vld [vmem:[%s798 + $0x20] sm:$0xff]
  %v804 = vld [vmem:[%s798 + $0x28] sm:$0xff]
  %v805 = vld [vmem:[%s798 + $0x30] sm:$0xff]
  %v806 = vld [vmem:[%s798 + $0x38] sm:$0xff]
  %v807 = vld [vmem:[%s798 + $0x40] sm:$0xff]
  %v808 = vld [vmem:[%s798 + $0x48] sm:$0xff]
  %v809 = vld [vmem:[%s798 + $0x50] sm:$0xff]
  %v810 = vld [vmem:[%s798 + $0x58] sm:$0xff]
  %v811 = vld [vmem:[%s798 + $0x60] sm:$0xff]
  %v812 = vld [vmem:[%s798 + $0x68] sm:$0xff]
  %v813 = vld [vmem:[%s798 + $0x70] sm:$0xff]
  %v814 = vld [vmem:[%s798 + $0x78] sm:$0xff]
  %v815 = vld [vmem:[%s798 + $0x80] sm:$0xff]
  %v816 = vld [vmem:[%s798 + $0x88] sm:$0xff]
  %v817 = vld [vmem:[%s798 + $0x90] sm:$0xff]
  %v818 = vld [vmem:[%s798 + $0x98] sm:$0xff]
  %v819 = vld [vmem:[%s798 + $0xa0] sm:$0xff]
  %v820 = vld [vmem:[%s798 + $0xa8] sm:$0xff]
  %v821 = vld [vmem:[%s798 + $0xb0] sm:$0xff]
  %v822 = vld [vmem:[%s798 + $0xb8] sm:$0xff]
  %v823 = vld [vmem:[%s798 + $0xc0] sm:$0xff]
  %v824 = vld [vmem:[%s798 + $0xc8] sm:$0xff]
  %v825 = vld [vmem:[%s798 + $0xd0] sm:$0xff]
  %v826 = vld [vmem:[%s798 + $0xd8] sm:$0xff]
  %v827 = vld [vmem:[%s798 + $0xe0] sm:$0xff]
  %v828 = vld [vmem:[%s798 + $0xe8] sm:$0xff]
  %v829 = vld [vmem:[%s798 + $0xf0] sm:$0xff]
  %v830 = vld [vmem:[%s798 + $0xf8] sm:$0xff]
  %v831 = vld [vmem:[%s798 + $0x100] sm:$0xff]
  %v832 = vld [vmem:[%s798 + $0x108] sm:$0xff]
  %v833 = vld [vmem:[%s798 + $0x110] sm:$0xff]
  %v834 = vld [vmem:[%s798 + $0x118] sm:$0xff]
  %v835 = vld [vmem:[%s798 + $0x120] sm:$0xff]
  %v836 = vld [vmem:[%s798 + $0x128] sm:$0xff]
  %v837 = vld [vmem:[%s798 + $0x130] sm:$0xff]
  %v838 = vld [vmem:[%s798 + $0x138] sm:$0xff]
  %v839 = vld [vmem:[%s798 + $0x140] sm:$0xff]
  %v840 = vld [vmem:[%s798 + $0x148] sm:$0xff]
  %v841 = vld [vmem:[%s798 + $0x150] sm:$0xff]
  %v842 = vld [vmem:[%s798 + $0x158] sm:$0xff]
  %v843 = vld [vmem:[%s798 + $0x160] sm:$0xff]
  %v844 = vld [vmem:[%s798 + $0x168] sm:$0xff]
  %v845 = vld [vmem:[%s798 + $0x170] sm:$0xff]
  %v846 = vld [vmem:[%s798 + $0x178] sm:$0xff]
  %v847 = vld [vmem:[%s798 + $0x180] sm:$0xff]
  %848 = vmatprep.subr.mxu0 0.0
  %849 = vmatpush1.msra.mxu0 %v14
  %850 = vmatprep.subr.mxu0 0.0
  %851 = vmatpush1.msra.mxu0 %v15
  %852 = vmatprep.subr.mxu0 0.0
  %853 = vmatpush1.msra.mxu0 %v16
  %854 = vmatprep.subr.mxu0 0.0
  %855 = vmatpush1.msra.mxu0 %v17
  %856 = vmatprep.subr.mxu0 0.0
  %857 = vmatpush1.msra.mxu0 %v18
  %858 = vmatprep.subr.mxu0 0.0
  %859 = vmatpush1.msra.mxu0 %v19
  %860 = vmatprep.subr.mxu0 0.0
  %861 = vmatpush1.msra.mxu0 %v20
  %862 = vmatprep.subr.mxu0 0.0
  %863 = vmatpush1.msra.mxu0 %v21
  %864 = vmatprep.subr.mxu0 0.0
  %865 = vmatpush1.msra.mxu0 %v22
  %866 = vmatprep.subr.mxu0 0.0
  %867 = vmatpush1.msra.mxu0 %v23
  %868 = vmatprep.subr.mxu0 0.0
  %869 = vmatpush1.msra.mxu0 %v24
  %870 = vmatprep.subr.mxu0 0.0
  %871 = vmatpush1.msra.mxu0 %v25
  %872 = vmatprep.subr.mxu0 0.0
  %873 = vmatpush1.msra.mxu0 %v26
  %874 = vmatprep.subr.mxu0 0.0
  %875 = vmatpush1.msra.mxu0 %v27
  %876 = vmatprep.subr.mxu0 0.0
  %877 = vmatpush1.msra.mxu0 %v28
  %878 = vmatprep.subr.mxu0 0.0
  %879 = vmatpush1.msra.mxu0 %v29
  %880 = vmatprep.subr.mxu0 0.0
  %881 = vmatpush1.msra.mxu0 0.0
  %882 = vmatprep.subr.mxu0 0.0
  %883 = vmatpush1.msra.mxu0 0.0
  %884 = vmatprep.subr.mxu0 0.0
  %885 = vmatpush1.msra.mxu0 0.0
  %886 = vmatprep.subr.mxu0 0.0
  %887 = vmatpush1.msra.mxu0 0.0
  %888 = vmatprep.subr.mxu0 0.0
  %889 = vmatpush1.msra.mxu0 0.0
  %890 = vmatprep.subr.mxu0 0.0
  %891 = vmatpush1.msra.mxu0 0.0
  %892 = vmatprep.subr.mxu0 0.0
  %893 = vmatpush1.msra.mxu0 0.0
  %894 = vmatprep.subr.mxu0 0.0
  %895 = vmatpush1.msra.mxu0 0.0
  %896 = vmatprep.subr.mxu0 0.0
  %897 = vmatpush1.msra.mxu0 0.0
  %898 = vmatprep.subr.mxu0 0.0
  %899 = vmatpush1.msra.mxu0 0.0
  %900 = vmatprep.subr.mxu0 0.0
  %901 = vmatpush1.msra.mxu0 0.0
  %902 = vmatprep.subr.mxu0 0.0
  %903 = vmatpush1.msra.mxu0 0.0
  %904 = vmatprep.subr.mxu0 0.0
  %905 = vmatpush1.msra.mxu0 0.0
  %906 = vmatprep.subr.mxu0 0.0
  %907 = vmatpush1.msra.mxu0 0.0
  %908 = vmatprep.subr.mxu0 0.0
  %909 = vmatpush1.msra.mxu0 0.0
  %910 = vmatprep.subr.mxu0 0.0
  %911 = vmatpush1.msra.mxu0 0.0
  %912 = vmatprep.mubr.f32.mxu0 0.0
  %913 = vmatmul.mubr.f32.gmra.mrb[0].mxu0 %v799
  %v914 = vpop.f32.mrb[0].mxu0
  %v915 = vadd.f32 0.0, %v914
  %v916 = vpop.f32.mrb[0].mxu0
  %917 = vmatprep.mubr.f32.mxu0 0.0
  %918 = vmatmul.mubr.f32.gmra.mrb[0].mxu0 %v800
  %v919 = vpop.f32.mrb[0].mxu0
  %v920 = vadd.f32 0.0, %v919
  %v921 = vpop.f32.mrb[0].mxu0
  %922 = vmatprep.mubr.f32.mxu0 0.0
  %923 = vmatmul.mubr.f32.gmra.mrb[0].mxu0 %v801
  %v924 = vpop.f32.mrb[0].mxu0
  %v925 = vadd.f32 0.0, %v924
  %v926 = vpop.f32.mrb[0].mxu0
  %927 = vmatprep.mubr.f32.mxu0 0.0
  %928 = vmatmul.mubr.f32.gmra.mrb[0].mxu0 %v802
  %v929 = vpop.f32.mrb[0].mxu0
  %v930 = vadd.f32 0.0, %v929
  %v931 = vpop.f32.mrb[0].mxu0
  %932 = vmatprep.mubr.f32.mxu0 0.0
  %933 = vmatmul.mubr.f32.gmra.mrb[0].mxu0 %v803
  %v934 = vpop.f32.mrb[0].mxu0
  %v935 = vadd.f32 0.0, %v934
  %v936 = vpop.f32.mrb[0].mxu0
  %937 = vmatprep.mubr.f32.mxu0 0.0
  %938 = vmatmul.mubr.f32.gmra.mrb[0].mxu0 %v804
  %v939 = vpop.f32.mrb[0].mxu0
  %v940 = vadd.f32 0.0, %v939
  %v941 = vpop.f32.mrb[0].mxu0
  %942 = vmatprep.mubr.f32.mxu0 0.0
  %943 = vmatmul.mubr.f32.gmra.mrb[0].mxu0 %v805
  %v944 = vpop.f32.mrb[0].mxu0
  %v945 = vadd.f32 0.0, %v944
  %v946 = vpop.f32.mrb[0].mxu0
  %947 = vmatprep.mubr.f32.mxu0 0.0
  %948 = vmatmul.mubr.f32.gmra.mrb[0].mxu0 %v806
  %v949 = vpop.f32.mrb[0].mxu0
  %v950 = vadd.f32 0.0, %v949
  %v951 = vpop.f32.mrb[0].mxu0
  %952 = vmatprep.mubr.f32.mxu0 0.0
  %953 = vmatmul.mubr.f32.gmra.mrb[0].mxu0 %v807
  %v954 = vpop.f32.mrb[0].mxu0
  %v955 = vadd.f32 0.0, %v954
  %v956 = vpop.f32.mrb[0].mxu0
  %957 = vmatprep.mubr.f32.mxu0 0.0
  %958 = vmatmul.mubr.f32.gmra.mrb[0].mxu0 %v808
  %v959 = vpop.f32.mrb[0].mxu0
  %v960 = vadd.f32 0.0, %v959
  %v961 = vpop.f32.mrb[0].mxu0
  %962 = vmatprep.mubr.f32.mxu0 0.0
  %963 = vmatmul.mubr.f32.gmra.mrb[0].mxu0 %v809
  %v964 = vpop.f32.mrb[0].mxu0
  %v965 = vadd.f32 0.0, %v964
  %v966 = vpop.f32.mrb[0].mxu0
  %967 = vmatprep.mubr.f32.mxu0 0.0
  %968 = vmatmul.mubr.f32.gmra.mrb[0].mxu0 %v810
  %v969 = vpop.f32.mrb[0].mxu0
  %v970 = vadd.f32 0.0, %v969
  %v971 = vpop.f32.mrb[0].mxu0
  %972 = vmatprep.mubr.f32.mxu0 0.0
  %973 = vmatmul.mubr.f32.gmra.mrb[0].mxu0 %v811
  %v974 = vpop.f32.mrb[0].mxu0
  %v975 = vadd.f32 0.0, %v974
  %v976 = vpop.f32.mrb[0].mxu0
  %977 = vmatprep.mubr.f32.mxu0 0.0
  %978 = vmatmul.mubr.f32.gmra.mrb[0].mxu0 %v812
  %v979 = vpop.f32.mrb[0].mxu0
  %v980 = vadd.f32 0.0, %v979
  %v981 = vpop.f32.mrb[0].mxu0
  %982 = vmatprep.mubr.f32.mxu0 0.0
  %983 = vmatmul.mubr.f32.gmra.mrb[0].mxu0 %v813
  %v984 = vpop.f32.mrb[0].mxu0
  %v985 = vadd.f32 0.0, %v984
  %v986 = vpop.f32.mrb[0].mxu0
  %987 = vmatprep.mubr.f32.mxu0 0.0
  %988 = vmatmul.mubr.f32.gmra.mrb[0].mxu0 %v814
  %v989 = vpop.f32.mrb[0].mxu0
  %v990 = vadd.f32 0.0, %v989
  %v991 = vpop.f32.mrb[0].mxu0
  %992 = vmatprep.mubr.f32.mxu0 0.0
  %993 = vmatmul.mubr.f32.gmra.mrb[0].mxu0 %v815
  %v994 = vpop.f32.mrb[0].mxu0
  %v995 = vadd.f32 0.0, %v994
  %v996 = vpop.f32.mrb[0].mxu0
  %997 = vmatprep.mubr.f32.mxu0 0.0
  %998 = vmatmul.mubr.f32.gmra.mrb[0].mxu0 %v816
  %v999 = vpop.f32.mrb[0].mxu0
  %v1000 = vadd.f32 0.0, %v999
  %v1001 = vpop.f32.mrb[0].mxu0
  %1002 = vmatprep.mubr.f32.mxu0 0.0
  %1003 = vmatmul.mubr.f32.gmra.mrb[0].mxu0 %v817
  %v1004 = vpop.f32.mrb[0].mxu0
  %v1005 = vadd.f32 0.0, %v1004
  %v1006 = vpop.f32.mrb[0].mxu0
  %1007 = vmatprep.mubr.f32.mxu0 0.0
  %1008 = vmatmul.mubr.f32.gmra.mrb[0].mxu0 %v818
  %v1009 = vpop.f32.mrb[0].mxu0
  %v1010 = vadd.f32 0.0, %v1009
  %v1011 = vpop.f32.mrb[0].mxu0
  %1012 = vmatprep.mubr.f32.mxu0 0.0
  %1013 = vmatmul.mubr.f32.gmra.mrb[0].mxu0 %v819
  %v1014 = vpop.f32.mrb[0].mxu0
  %v1015 = vadd.f32 0.0, %v1014
  %v1016 = vpop.f32.mrb[0].mxu0
  %1017 = vmatprep.mubr.f32.mxu0 0.0
  %1018 = vmatmul.mubr.f32.gmra.mrb[0].mxu0 %v820
  %v1019 = vpop.f32.mrb[0].mxu0
  %v1020 = vadd.f32 0.0, %v1019
  %v1021 = vpop.f32.mrb[0].mxu0
  %1022 = vmatprep.mubr.f32.mxu0 0.0
  %1023 = vmatmul.mubr.f32.gmra.mrb[0].mxu0 %v821
  %v1024 = vpop.f32.mrb[0].mxu0
  %v1025 = vadd.f32 0.0, %v1024
  %v1026 = vpop.f32.mrb[0].mxu0
  %1027 = vmatprep.mubr.f32.mxu0 0.0
  %1028 = vmatmul.mubr.f32.gmra.mrb[0].mxu0 %v822
  %v1029 = vpop.f32.mrb[0].mxu0
  %v1030 = vadd.f32 0.0, %v1029
  %v1031 = vpop.f32.mrb[0].mxu0
  %1032 = vmatprep.mubr.f32.mxu0 0.0
  %1033 = vmatmul.mubr.f32.gmra.mrb[0].mxu0 %v823
  %v1034 = vpop.f32.mrb[0].mxu0
  %v1035 = vadd.f32 0.0, %v1034
  %v1036 = vpop.f32.mrb[0].mxu0
  %1037 = vmatprep.mubr.f32.mxu0 0.0
  %1038 = vmatmul.mubr.f32.gmra.mrb[0].mxu0 %v824
  %v1039 = vpop.f32.mrb[0].mxu0
  %v1040 = vadd.f32 0.0, %v1039
  %v1041 = vpop.f32.mrb[0].mxu0
  %1042 = vmatprep.mubr.f32.mxu0 0.0
  %1043 = vmatmul.mubr.f32.gmra.mrb[0].mxu0 %v825
  %v1044 = vpop.f32.mrb[0].mxu0
  %v1045 = vadd.f32 0.0, %v1044
  %v1046 = vpop.f32.mrb[0].mxu0
  %1047 = vmatprep.mubr.f32.mxu0 0.0
  %1048 = vmatmul.mubr.f32.gmra.mrb[0].mxu0 %v826
  %v1049 = vpop.f32.mrb[0].mxu0
  %v1050 = vadd.f32 0.0, %v1049
  %v1051 = vpop.f32.mrb[0].mxu0
  %1052 = vmatprep.mubr.f32.mxu0 0.0
  %1053 = vmatmul.mubr.f32.gmra.mrb[0].mxu0 %v827
  %v1054 = vpop.f32.mrb[0].mxu0
  %v1055 = vadd.f32 0.0, %v1054
  %v1056 = vpop.f32.mrb[0].mxu0
  %1057 = vmatprep.mubr.f32.mxu0 0.0
  %1058 = vmatmul.mubr.f32.gmra.mrb[0].mxu0 %v828
  %v1059 = vpop.f32.mrb[0].mxu0
  %v1060 = vadd.f32 0.0, %v1059
  %v1061 = vpop.f32.mrb[0].mxu0
  %1062 = vmatprep.mubr.f32.mxu0 0.0
  %1063 = vmatmul.mubr.f32.gmra.mrb[0].mxu0 %v829
  %v1064 = vpop.f32.mrb[0].mxu0
  %v1065 = vadd.f32 0.0, %v1064
  %v1066 = vpop.f32.mrb[0].mxu0
  %1067 = vmatprep.mubr.f32.mxu0 0.0
  %1068 = vmatmul.mubr.f32.gmra.mrb[0].mxu0 %v830
  %v1069 = vpop.f32.mrb[0].mxu0
  %v1070 = vadd.f32 0.0, %v1069
  %v1071 = vpop.f32.mrb[0].mxu0
  %1072 = vmatprep.mubr.f32.mxu0 0.0
  %1073 = vmatmul.mubr.f32.gmra.mrb[0].mxu0 %v831
  %v1074 = vpop.f32.mrb[0].mxu0
  %v1075 = vadd.f32 0.0, %v1074
  %v1076 = vpop.f32.mrb[0].mxu0
  %1077 = vmatprep.mubr.f32.mxu0 0.0
  %1078 = vmatmul.mubr.f32.gmra.mrb[0].mxu0 %v832
  %v1079 = vpop.f32.mrb[0].mxu0
  %v1080 = vadd.f32 0.0, %v1079
  %v1081 = vpop.f32.mrb[0].mxu0
  %1082 = vmatprep.mubr.f32.mxu0 0.0
  %1083 = vmatmul.mubr.f32.gmra.mrb[0].mxu0 %v833
  %v1084 = vpop.f32.mrb[0].mxu0
  %v1085 = vadd.f32 0.0, %v1084
  %v1086 = vpop.f32.mrb[0].mxu0
  %1087 = vmatprep.mubr.f32.mxu0 0.0
  %1088 = vmatmul.mubr.f32.gmra.mrb[0].mxu0 %v834
  %v1089 = vpop.f32.mrb[0].mxu0
  %v1090 = vadd.f32 0.0, %v1089
  %v1091 = vpop.f32.mrb[0].mxu0
  %1092 = vmatprep.mubr.f32.mxu0 0.0
  %1093 = vmatmul.mubr.f32.gmra.mrb[0].mxu0 %v835
  %v1094 = vpop.f32.mrb[0].mxu0
  %v1095 = vadd.f32 0.0, %v1094
  %v1096 = vpop.f32.mrb[0].mxu0
  %1097 = vmatprep.mubr.f32.mxu0 0.0
  %1098 = vmatmul.mubr.f32.gmra.mrb[0].mxu0 %v836
  %v1099 = vpop.f32.mrb[0].mxu0
  %v1100 = vadd.f32 0.0, %v1099
  %v1101 = vpop.f32.mrb[0].mxu0
  %1102 = vmatprep.mubr.f32.mxu0 0.0
  %1103 = vmatmul.mubr.f32.gmra.mrb[0].mxu0 %v837
  %v1104 = vpop.f32.mrb[0].mxu0
  %v1105 = vadd.f32 0.0, %v1104
  %v1106 = vpop.f32.mrb[0].mxu0
  %1107 = vmatprep.mubr.f32.mxu0 0.0
  %1108 = vmatmul.mubr.f32.gmra.mrb[0].mxu0 %v838
  %v1109 = vpop.f32.mrb[0].mxu0
  %v1110 = vadd.f32 0.0, %v1109
  %v1111 = vpop.f32.mrb[0].mxu0
  %1112 = vmatprep.mubr.f32.mxu0 0.0
  %1113 = vmatmul.mubr.f32.gmra.mrb[0].mxu0 %v839
  %v1114 = vpop.f32.mrb[0].mxu0
  %v1115 = vadd.f32 0.0, %v1114
  %v1116 = vpop.f32.mrb[0].mxu0
  %1117 = vmatprep.mubr.f32.mxu0 0.0
  %1118 = vmatmul.mubr.f32.gmra.mrb[0].mxu0 %v840
  %v1119 = vpop.f32.mrb[0].mxu0
  %v1120 = vadd.f32 0.0, %v1119
  %v1121 = vpop.f32.mrb[0].mxu0
  %1122 = vmatprep.mubr.f32.mxu0 0.0
  %1123 = vmatmul.mubr.f32.gmra.mrb[0].mxu0 %v841
  %v1124 = vpop.f32.mrb[0].mxu0
  %v1125 = vadd.f32 0.0, %v1124
  %v1126 = vpop.f32.mrb[0].mxu0
  %1127 = vmatprep.mubr.f32.mxu0 0.0
  %1128 = vmatmul.mubr.f32.gmra.mrb[0].mxu0 %v842
  %v1129 = vpop.f32.mrb[0].mxu0
  %v1130 = vadd.f32 0.0, %v1129
  %v1131 = vpop.f32.mrb[0].mxu0
  %1132 = vmatprep.mubr.f32.mxu0 0.0
  %1133 = vmatmul.mubr.f32.gmra.mrb[0].mxu0 %v843
  %v1134 = vpop.f32.mrb[0].mxu0
  %v1135 = vadd.f32 0.0, %v1134
  %v1136 = vpop.f32.mrb[0].mxu0
  %1137 = vmatprep.mubr.f32.mxu0 0.0
  %1138 = vmatmul.mubr.f32.gmra.mrb[0].mxu0 %v844
  %v1139 = vpop.f32.mrb[0].mxu0
  %v1140 = vadd.f32 0.0, %v1139
  %v1141 = vpop.f32.mrb[0].mxu0
  %1142 = vmatprep.mubr.f32.mxu0 0.0
  %1143 = vmatmul.mubr.f32.gmra.mrb[0].mxu0 %v845
  %v1144 = vpop.f32.mrb[0].mxu0
  %v1145 = vadd.f32 0.0, %v1144
  %v1146 = vpop.f32.mrb[0].mxu0
  %1147 = vmatprep.mubr.f32.mxu0 0.0
  %1148 = vmatmul.mubr.f32.gmra.mrb[0].mxu0 %v846
  %v1149 = vpop.f32.mrb[0].mxu0
  %v1150 = vadd.f32 0.0, %v1149
  %v1151 = vpop.f32.mrb[0].mxu0
  %1152 = vmatprep.mubr.f32.mxu0 0.0
  %1153 = vmatmul.mubr.f32.gmra.mrb[0].mxu0 %v847
  %v1154 = vpop.f32.mrb[0].mxu0
  %v1155 = vadd.f32 0.0, %v1154
  %v1156 = vpop.f32.mrb[0].mxu0
  %1157 = vdwg.mxu0
  %v1158 = vmax.f32 %v749, %v915
  %v1159 = vmax.f32 %v750, %v920
  %v1160 = vmax.f32 %v751, %v925
  %v1161 = vmax.f32 %v752, %v930
  %v1162 = vmax.f32 %v753, %v935
  %v1163 = vmax.f32 %v754, %v940
  %v1164 = vmax.f32 %v755, %v945
  %v1165 = vmax.f32 %v756, %v950
  %v1166 = vmax.f32 %v757, %v955
  %v1167 = vmax.f32 %v758, %v960
  %v1168 = vmax.f32 %v759, %v965
  %v1169 = vmax.f32 %v760, %v970
  %v1170 = vmax.f32 %v761, %v975
  %v1171 = vmax.f32 %v762, %v980
  %v1172 = vmax.f32 %v763, %v985
  %v1173 = vmax.f32 %v764, %v990
  %v1174 = vmax.f32 %v765, %v995
  %v1175 = vmax.f32 %v766, %v1000
  %v1176 = vmax.f32 %v767, %v1005
  %v1177 = vmax.f32 %v768, %v1010
  %v1178 = vmax.f32 %v769, %v1015
  %v1179 = vmax.f32 %v770, %v1020
  %v1180 = vmax.f32 %v771, %v1025
  %v1181 = vmax.f32 %v772, %v1030
  %v1182 = vmax.f32 %v773, %v1035
  %v1183 = vmax.f32 %v774, %v1040
  %v1184 = vmax.f32 %v775, %v1045
  %v1185 = vmax.f32 %v776, %v1050
  %v1186 = vmax.f32 %v777, %v1055
  %v1187 = vmax.f32 %v778, %v1060
  %v1188 = vmax.f32 %v779, %v1065
  %v1189 = vmax.f32 %v780, %v1070
  %v1190 = vmax.f32 %v781, %v1075
  %v1191 = vmax.f32 %v782, %v1080
  %v1192 = vmax.f32 %v783, %v1085
  %v1193 = vmax.f32 %v784, %v1090
  %v1194 = vmax.f32 %v785, %v1095
  %v1195 = vmax.f32 %v786, %v1100
  %v1196 = vmax.f32 %v787, %v1105
  %v1197 = vmax.f32 %v788, %v1110
  %v1198 = vmax.f32 %v789, %v1115
  %v1199 = vmax.f32 %v790, %v1120
  %v1200 = vmax.f32 %v791, %v1125
  %v1201 = vmax.f32 %v792, %v1130
  %v1202 = vmax.f32 %v793, %v1135
  %v1203 = vmax.f32 %v794, %v1140
  %v1204 = vmax.f32 %v795, %v1145
  %v1205 = vmax.f32 %v796, %v1150
  %v1206 = vmax.f32 %v797, %v1155
  %s1207 = scalar_lea.vmem %s0, 1176
  %v1208 = vld [vmem:[%s1207] sm:$0xff]
  %v1209 = vld [vmem:[%s1207 + $0x8] sm:$0xff]
  %v1210 = vld [vmem:[%s1207 + $0x10] sm:$0xff]
  %v1211 = vld [vmem:[%s1207 + $0x18] sm:$0xff]
  %v1212 = vld [vmem:[%s1207 + $0x20] sm:$0xff]
  %v1213 = vld [vmem:[%s1207 + $0x28] sm:$0xff]
  %v1214 = vld [vmem:[%s1207 + $0x30] sm:$0xff]
  %v1215 = vld [vmem:[%s1207 + $0x38] sm:$0xff]
  %v1216 = vld [vmem:[%s1207 + $0x40] sm:$0xff]
  %v1217 = vld [vmem:[%s1207 + $0x48] sm:$0xff]
  %v1218 = vld [vmem:[%s1207 + $0x50] sm:$0xff]
  %v1219 = vld [vmem:[%s1207 + $0x58] sm:$0xff]
  %v1220 = vld [vmem:[%s1207 + $0x60] sm:$0xff]
  %v1221 = vld [vmem:[%s1207 + $0x68] sm:$0xff]
  %v1222 = vld [vmem:[%s1207 + $0x70] sm:$0xff]
  %v1223 = vld [vmem:[%s1207 + $0x78] sm:$0xff]
  %v1224 = vld [vmem:[%s1207 + $0x80] sm:$0xff]
  %v1225 = vld [vmem:[%s1207 + $0x88] sm:$0xff]
  %v1226 = vld [vmem:[%s1207 + $0x90] sm:$0xff]
  %v1227 = vld [vmem:[%s1207 + $0x98] sm:$0xff]
  %v1228 = vld [vmem:[%s1207 + $0xa0] sm:$0xff]
  %v1229 = vld [vmem:[%s1207 + $0xa8] sm:$0xff]
  %v1230 = vld [vmem:[%s1207 + $0xb0] sm:$0xff]
  %v1231 = vld [vmem:[%s1207 + $0xb8] sm:$0xff]
  %v1232 = vld [vmem:[%s1207 + $0xc0] sm:$0xff]
  %v1233 = vld [vmem:[%s1207 + $0xc8] sm:$0xff]
  %v1234 = vld [vmem:[%s1207 + $0xd0] sm:$0xff]
  %v1235 = vld [vmem:[%s1207 + $0xd8] sm:$0xff]
  %v1236 = vld [vmem:[%s1207 + $0xe0] sm:$0xff]
  %v1237 = vld [vmem:[%s1207 + $0xe8] sm:$0xff]
  %v1238 = vld [vmem:[%s1207 + $0xf0] sm:$0xff]
  %v1239 = vld [vmem:[%s1207 + $0xf8] sm:$0xff]
  %v1240 = vld [vmem:[%s1207 + $0x100] sm:$0xff]
  %v1241 = vld [vmem:[%s1207 + $0x108] sm:$0xff]
  %v1242 = vld [vmem:[%s1207 + $0x110] sm:$0xff]
  %v1243 = vld [vmem:[%s1207 + $0x118] sm:$0xff]
  %v1244 = vld [vmem:[%s1207 + $0x120] sm:$0xff]
  %v1245 = vld [vmem:[%s1207 + $0x128] sm:$0xff]
  %v1246 = vld [vmem:[%s1207 + $0x130] sm:$0xff]
  %v1247 = vld [vmem:[%s1207 + $0x138] sm:$0xff]
  %v1248 = vld [vmem:[%s1207 + $0x140] sm:$0xff]
  %v1249 = vld [vmem:[%s1207 + $0x148] sm:$0xff]
  %v1250 = vld [vmem:[%s1207 + $0x150] sm:$0xff]
  %v1251 = vld [vmem:[%s1207 + $0x158] sm:$0xff]
  %v1252 = vld [vmem:[%s1207 + $0x160] sm:$0xff]
  %v1253 = vld [vmem:[%s1207 + $0x168] sm:$0xff]
  %v1254 = vld [vmem:[%s1207 + $0x170] sm:$0xff]
  %v1255 = vld [vmem:[%s1207 + $0x178] sm:$0xff]
  %v1256 = vld [vmem:[%s1207 + $0x180] sm:$0xff]
  %1257 = vmatprep.subr.mxu0 0.0
  %1258 = vmatpush1.msra.mxu0 %v14
  %1259 = vmatprep.subr.mxu0 0.0
  %1260 = vmatpush1.msra.mxu0 %v15
  %1261 = vmatprep.subr.mxu0 0.0
  %1262 = vmatpush1.msra.mxu0 %v16
  %1263 = vmatprep.subr.mxu0 0.0
  %1264 = vmatpush1.msra.mxu0 %v17
  %1265 = vmatprep.subr.mxu0 0.0
  %1266 = vmatpush1.msra.mxu0 %v18
  %1267 = vmatprep.subr.mxu0 0.0
  %1268 = vmatpush1.msra.mxu0 %v19
  %1269 = vmatprep.subr.mxu0 0.0
  %1270 = vmatpush1.msra.mxu0 %v20
  %1271 = vmatprep.subr.mxu0 0.0
  %1272 = vmatpush1.msra.mxu0 %v21
  %1273 = vmatprep.subr.mxu0 0.0
  %1274 = vmatpush1.msra.mxu0 %v22
  %1275 = vmatprep.subr.mxu0 0.0
  %1276 = vmatpush1.msra.mxu0 %v23
  %1277 = vmatprep.subr.mxu0 0.0
  %1278 = vmatpush1.msra.mxu0 %v24
  %1279 = vmatprep.subr.mxu0 0.0
  %1280 = vmatpush1.msra.mxu0 %v25
  %1281 = vmatprep.subr.mxu0 0.0
  %1282 = vmatpush1.msra.mxu0 %v26
  %1283 = vmatprep.subr.mxu0 0.0
  %1284 = vmatpush1.msra.mxu0 %v27
  %1285 = vmatprep.subr.mxu0 0.0
  %1286 = vmatpush1.msra.mxu0 %v28
  %1287 = vmatprep.subr.mxu0 0.0
  %1288 = vmatpush1.msra.mxu0 %v29
  %1289 = vmatprep.subr.mxu0 0.0
  %1290 = vmatpush1.msra.mxu0 0.0
  %1291 = vmatprep.subr.mxu0 0.0
  %1292 = vmatpush1.msra.mxu0 0.0
  %1293 = vmatprep.subr.mxu0 0.0
  %1294 = vmatpush1.msra.mxu0 0.0
  %1295 = vmatprep.subr.mxu0 0.0
  %1296 = vmatpush1.msra.mxu0 0.0
  %1297 = vmatprep.subr.mxu0 0.0
  %1298 = vmatpush1.msra.mxu0 0.0
  %1299 = vmatprep.subr.mxu0 0.0
  %1300 = vmatpush1.msra.mxu0 0.0
  %1301 = vmatprep.subr.mxu0 0.0
  %1302 = vmatpush1.msra.mxu0 0.0
  %1303 = vmatprep.subr.mxu0 0.0
  %1304 = vmatpush1.msra.mxu0 0.0
  %1305 = vmatprep.subr.mxu0 0.0
  %1306 = vmatpush1.msra.mxu0 0.0
  %1307 = vmatprep.subr.mxu0 0.0
  %1308 = vmatpush1.msra.mxu0 0.0
  %1309 = vmatprep.subr.mxu0 0.0
  %1310 = vmatpush1.msra.mxu0 0.0
  %1311 = vmatprep.subr.mxu0 0.0
  %1312 = vmatpush1.msra.mxu0 0.0
  %1313 = vmatprep.subr.mxu0 0.0
  %1314 = vmatpush1.msra.mxu0 0.0
  %1315 = vmatprep.subr.mxu0 0.0
  %1316 = vmatpush1.msra.mxu0 0.0
  %1317 = vmatprep.subr.mxu0 0.0
  %1318 = vmatpush1.msra.mxu0 0.0
  %1319 = vmatprep.subr.mxu0 0.0
  %1320 = vmatpush1.msra.mxu0 0.0
  %1321 = vmatprep.mubr.f32.mxu0 0.0
  %1322 = vmatmul.mubr.f32.gmra.mrb[0].mxu0 %v1208
  %v1323 = vpop.f32.mrb[0].mxu0
  %v1324 = vadd.f32 0.0, %v1323
  %v1325 = vpop.f32.mrb[0].mxu0
  %1326 = vmatprep.mubr.f32.mxu0 0.0
  %1327 = vmatmul.mubr.f32.gmra.mrb[0].mxu0 %v1209
  %v1328 = vpop.f32.mrb[0].mxu0
  %v1329 = vadd.f32 0.0, %v1328
  %v1330 = vpop.f32.mrb[0].mxu0
  %1331 = vmatprep.mubr.f32.mxu0 0.0
  %1332 = vmatmul.mubr.f32.gmra.mrb[0].mxu0 %v1210
  %v1333 = vpop.f32.mrb[0].mxu0
  %v1334 = vadd.f32 0.0, %v1333
  %v1335 = vpop.f32.mrb[0].mxu0
  %1336 = vmatprep.mubr.f32.mxu0 0.0
  %1337 = vmatmul.mubr.f32.gmra.mrb[0].mxu0 %v1211
  %v1338 = vpop.f32.mrb[0].mxu0
  %v1339 = vadd.f32 0.0, %v1338
  %v1340 = vpop.f32.mrb[0].mxu0
  %1341 = vmatprep.mubr.f32.mxu0 0.0
  %1342 = vmatmul.mubr.f32.gmra.mrb[0].mxu0 %v1212
  %v1343 = vpop.f32.mrb[0].mxu0
  %v1344 = vadd.f32 0.0, %v1343
  %v1345 = vpop.f32.mrb[0].mxu0
  %1346 = vmatprep.mubr.f32.mxu0 0.0
  %1347 = vmatmul.mubr.f32.gmra.mrb[0].mxu0 %v1213
  %v1348 = vpop.f32.mrb[0].mxu0
  %v1349 = vadd.f32 0.0, %v1348
  %v1350 = vpop.f32.mrb[0].mxu0
  %1351 = vmatprep.mubr.f32.mxu0 0.0
  %1352 = vmatmul.mubr.f32.gmra.mrb[0].mxu0 %v1214
  %v1353 = vpop.f32.mrb[0].mxu0
  %v1354 = vadd.f32 0.0, %v1353
  %v1355 = vpop.f32.mrb[0].mxu0
  %1356 = vmatprep.mubr.f32.mxu0 0.0
  %1357 = vmatmul.mubr.f32.gmra.mrb[0].mxu0 %v1215
  %v1358 = vpop.f32.mrb[0].mxu0
  %v1359 = vadd.f32 0.0, %v1358
  %v1360 = vpop.f32.mrb[0].mxu0
  %1361 = vmatprep.mubr.f32.mxu0 0.0
  %1362 = vmatmul.mubr.f32.gmra.mrb[0].mxu0 %v1216
  %v1363 = vpop.f32.mrb[0].mxu0
  %v1364 = vadd.f32 0.0, %v1363
  %v1365 = vpop.f32.mrb[0].mxu0
  %1366 = vmatprep.mubr.f32.mxu0 0.0
  %1367 = vmatmul.mubr.f32.gmra.mrb[0].mxu0 %v1217
  %v1368 = vpop.f32.mrb[0].mxu0
  %v1369 = vadd.f32 0.0, %v1368
  %v1370 = vpop.f32.mrb[0].mxu0
  %1371 = vmatprep.mubr.f32.mxu0 0.0
  %1372 = vmatmul.mubr.f32.gmra.mrb[0].mxu0 %v1218
  %v1373 = vpop.f32.mrb[0].mxu0
  %v1374 = vadd.f32 0.0, %v1373
  %v1375 = vpop.f32.mrb[0].mxu0
  %1376 = vmatprep.mubr.f32.mxu0 0.0
  %1377 = vmatmul.mubr.f32.gmra.mrb[0].mxu0 %v1219
  %v1378 = vpop.f32.mrb[0].mxu0
  %v1379 = vadd.f32 0.0, %v1378
  %v1380 = vpop.f32.mrb[0].mxu0
  %1381 = vmatprep.mubr.f32.mxu0 0.0
  %1382 = vmatmul.mubr.f32.gmra.mrb[0].mxu0 %v1220
  %v1383 = vpop.f32.mrb[0].mxu0
  %v1384 = vadd.f32 0.0, %v1383
  %v1385 = vpop.f32.mrb[0].mxu0
  %1386 = vmatprep.mubr.f32.mxu0 0.0
  %1387 = vmatmul.mubr.f32.gmra.mrb[0].mxu0 %v1221
  %v1388 = vpop.f32.mrb[0].mxu0
  %v1389 = vadd.f32 0.0, %v1388
  %v1390 = vpop.f32.mrb[0].mxu0
  %1391 = vmatprep.mubr.f32.mxu0 0.0
  %1392 = vmatmul.mubr.f32.gmra.mrb[0].mxu0 %v1222
  %v1393 = vpop.f32.mrb[0].mxu0
  %v1394 = vadd.f32 0.0, %v1393
  %v1395 = vpop.f32.mrb[0].mxu0
  %1396 = vmatprep.mubr.f32.mxu0 0.0
  %1397 = vmatmul.mubr.f32.gmra.mrb[0].mxu0 %v1223
  %v1398 = vpop.f32.mrb[0].mxu0
  %v1399 = vadd.f32 0.0, %v1398
  %v1400 = vpop.f32.mrb[0].mxu0
  %1401 = vmatprep.mubr.f32.mxu0 0.0
  %1402 = vmatmul.mubr.f32.gmra.mrb[0].mxu0 %v1224
  %v1403 = vpop.f32.mrb[0].mxu0
  %v1404 = vadd.f32 0.0, %v1403
  %v1405 = vpop.f32.mrb[0].mxu0
  %1406 = vmatprep.mubr.f32.mxu0 0.0
  %1407 = vmatmul.mubr.f32.gmra.mrb[0].mxu0 %v1225
  %v1408 = vpop.f32.mrb[0].mxu0
  %v1409 = vadd.f32 0.0, %v1408
  %v1410 = vpop.f32.mrb[0].mxu0
  %1411 = vmatprep.mubr.f32.mxu0 0.0
  %1412 = vmatmul.mubr.f32.gmra.mrb[0].mxu0 %v1226
  %v1413 = vpop.f32.mrb[0].mxu0
  %v1414 = vadd.f32 0.0, %v1413
  %v1415 = vpop.f32.mrb[0].mxu0
  %1416 = vmatprep.mubr.f32.mxu0 0.0
  %1417 = vmatmul.mubr.f32.gmra.mrb[0].mxu0 %v1227
  %v1418 = vpop.f32.mrb[0].mxu0
  %v1419 = vadd.f32 0.0, %v1418
  %v1420 = vpop.f32.mrb[0].mxu0
  %1421 = vmatprep.mubr.f32.mxu0 0.0
  %1422 = vmatmul.mubr.f32.gmra.mrb[0].mxu0 %v1228
  %v1423 = vpop.f32.mrb[0].mxu0
  %v1424 = vadd.f32 0.0, %v1423
  %v1425 = vpop.f32.mrb[0].mxu0
  %1426 = vmatprep.mubr.f32.mxu0 0.0
  %1427 = vmatmul.mubr.f32.gmra.mrb[0].mxu0 %v1229
  %v1428 = vpop.f32.mrb[0].mxu0
  %v1429 = vadd.f32 0.0, %v1428
  %v1430 = vpop.f32.mrb[0].mxu0
  %1431 = vmatprep.mubr.f32.mxu0 0.0
  %1432 = vmatmul.mubr.f32.gmra.mrb[0].mxu0 %v1230
  %v1433 = vpop.f32.mrb[0].mxu0
  %v1434 = vadd.f32 0.0, %v1433
  %v1435 = vpop.f32.mrb[0].mxu0
  %1436 = vmatprep.mubr.f32.mxu0 0.0
  %1437 = vmatmul.mubr.f32.gmra.mrb[0].mxu0 %v1231
  %v1438 = vpop.f32.mrb[0].mxu0
  %v1439 = vadd.f32 0.0, %v1438
  %v1440 = vpop.f32.mrb[0].mxu0
  %1441 = vmatprep.mubr.f32.mxu0 0.0
  %1442 = vmatmul.mubr.f32.gmra.mrb[0].mxu0 %v1232
  %v1443 = vpop.f32.mrb[0].mxu0
  %v1444 = vadd.f32 0.0, %v1443
  %v1445 = vpop.f32.mrb[0].mxu0
  %1446 = vmatprep.mubr.f32.mxu0 0.0
  %1447 = vmatmul.mubr.f32.gmra.mrb[0].mxu0 %v1233
  %v1448 = vpop.f32.mrb[0].mxu0
  %v1449 = vadd.f32 0.0, %v1448
  %v1450 = vpop.f32.mrb[0].mxu0
  %1451 = vmatprep.mubr.f32.mxu0 0.0
  %1452 = vmatmul.mubr.f32.gmra.mrb[0].mxu0 %v1234
  %v1453 = vpop.f32.mrb[0].mxu0
  %v1454 = vadd.f32 0.0, %v1453
  %v1455 = vpop.f32.mrb[0].mxu0
  %1456 = vmatprep.mubr.f32.mxu0 0.0
  %1457 = vmatmul.mubr.f32.gmra.mrb[0].mxu0 %v1235
  %v1458 = vpop.f32.mrb[0].mxu0
  %v1459 = vadd.f32 0.0, %v1458
  %v1460 = vpop.f32.mrb[0].mxu0
  %1461 = vmatprep.mubr.f32.mxu0 0.0
  %1462 = vmatmul.mubr.f32.gmra.mrb[0].mxu0 %v1236
  %v1463 = vpop.f32.mrb[0].mxu0
  %v1464 = vadd.f32 0.0, %v1463
  %v1465 = vpop.f32.mrb[0].mxu0
  %1466 = vmatprep.mubr.f32.mxu0 0.0
  %1467 = vmatmul.mubr.f32.gmra.mrb[0].mxu0 %v1237
  %v1468 = vpop.f32.mrb[0].mxu0
  %v1469 = vadd.f32 0.0, %v1468
  %v1470 = vpop.f32.mrb[0].mxu0
  %1471 = vmatprep.mubr.f32.mxu0 0.0
  %1472 = vmatmul.mubr.f32.gmra.mrb[0].mxu0 %v1238
  %v1473 = vpop.f32.mrb[0].mxu0
  %v1474 = vadd.f32 0.0, %v1473
  %v1475 = vpop.f32.mrb[0].mxu0
  %1476 = vmatprep.mubr.f32.mxu0 0.0
  %1477 = vmatmul.mubr.f32.gmra.mrb[0].mxu0 %v1239
  %v1478 = vpop.f32.mrb[0].mxu0
  %v1479 = vadd.f32 0.0, %v1478
  %v1480 = vpop.f32.mrb[0].mxu0
  %1481 = vmatprep.mubr.f32.mxu0 0.0
  %1482 = vmatmul.mubr.f32.gmra.mrb[0].mxu0 %v1240
  %v1483 = vpop.f32.mrb[0].mxu0
  %v1484 = vadd.f32 0.0, %v1483
  %v1485 = vpop.f32.mrb[0].mxu0
  %1486 = vmatprep.mubr.f32.mxu0 0.0
  %1487 = vmatmul.mubr.f32.gmra.mrb[0].mxu0 %v1241
  %v1488 = vpop.f32.mrb[0].mxu0
  %v1489 = vadd.f32 0.0, %v1488
  %v1490 = vpop.f32.mrb[0].mxu0
  %1491 = vmatprep.mubr.f32.mxu0 0.0
  %1492 = vmatmul.mubr.f32.gmra.mrb[0].mxu0 %v1242
  %v1493 = vpop.f32.mrb[0].mxu0
  %v1494 = vadd.f32 0.0, %v1493
  %v1495 = vpop.f32.mrb[0].mxu0
  %1496 = vmatprep.mubr.f32.mxu0 0.0
  %1497 = vmatmul.mubr.f32.gmra.mrb[0].mxu0 %v1243
  %v1498 = vpop.f32.mrb[0].mxu0
  %v1499 = vadd.f32 0.0, %v1498
  %v1500 = vpop.f32.mrb[0].mxu0
  %1501 = vmatprep.mubr.f32.mxu0 0.0
  %1502 = vmatmul.mubr.f32.gmra.mrb[0].mxu0 %v1244
  %v1503 = vpop.f32.mrb[0].mxu0
  %v1504 = vadd.f32 0.0, %v1503
  %v1505 = vpop.f32.mrb[0].mxu0
  %1506 = vmatprep.mubr.f32.mxu0 0.0
  %1507 = vmatmul.mubr.f32.gmra.mrb[0].mxu0 %v1245
  %v1508 = vpop.f32.mrb[0].mxu0
  %v1509 = vadd.f32 0.0, %v1508
  %v1510 = vpop.f32.mrb[0].mxu0
  %1511 = vmatprep.mubr.f32.mxu0 0.0
  %1512 = vmatmul.mubr.f32.gmra.mrb[0].mxu0 %v1246
  %v1513 = vpop.f32.mrb[0].mxu0
  %v1514 = vadd.f32 0.0, %v1513
  %v1515 = vpop.f32.mrb[0].mxu0
  %1516 = vmatprep.mubr.f32.mxu0 0.0
  %1517 = vmatmul.mubr.f32.gmra.mrb[0].mxu0 %v1247
  %v1518 = vpop.f32.mrb[0].mxu0
  %v1519 = vadd.f32 0.0, %v1518
  %v1520 = vpop.f32.mrb[0].mxu0
  %1521 = vmatprep.mubr.f32.mxu0 0.0
  %1522 = vmatmul.mubr.f32.gmra.mrb[0].mxu0 %v1248
  %v1523 = vpop.f32.mrb[0].mxu0
  %v1524 = vadd.f32 0.0, %v1523
  %v1525 = vpop.f32.mrb[0].mxu0
  %1526 = vmatprep.mubr.f32.mxu0 0.0
  %1527 = vmatmul.mubr.f32.gmra.mrb[0].mxu0 %v1249
  %v1528 = vpop.f32.mrb[0].mxu0
  %v1529 = vadd.f32 0.0, %v1528
  %v1530 = vpop.f32.mrb[0].mxu0
  %1531 = vmatprep.mubr.f32.mxu0 0.0
  %1532 = vmatmul.mubr.f32.gmra.mrb[0].mxu0 %v1250
  %v1533 = vpop.f32.mrb[0].mxu0
  %v1534 = vadd.f32 0.0, %v1533
  %v1535 = vpop.f32.mrb[0].mxu0
  %1536 = vmatprep.mubr.f32.mxu0 0.0
  %1537 = vmatmul.mubr.f32.gmra.mrb[0].mxu0 %v1251
  %v1538 = vpop.f32.mrb[0].mxu0
  %v1539 = vadd.f32 0.0, %v1538
  %v1540 = vpop.f32.mrb[0].mxu0
  %1541 = vmatprep.mubr.f32.mxu0 0.0
  %1542 = vmatmul.mubr.f32.gmra.mrb[0].mxu0 %v1252
  %v1543 = vpop.f32.mrb[0].mxu0
  %v1544 = vadd.f32 0.0, %v1543
  %v1545 = vpop.f32.mrb[0].mxu0
  %1546 = vmatprep.mubr.f32.mxu0 0.0
  %1547 = vmatmul.mubr.f32.gmra.mrb[0].mxu0 %v1253
  %v1548 = vpop.f32.mrb[0].mxu0
  %v1549 = vadd.f32 0.0, %v1548
  %v1550 = vpop.f32.mrb[0].mxu0
  %1551 = vmatprep.mubr.f32.mxu0 0.0
  %1552 = vmatmul.mubr.f32.gmra.mrb[0].mxu0 %v1254
  %v1553 = vpop.f32.mrb[0].mxu0
  %v1554 = vadd.f32 0.0, %v1553
  %v1555 = vpop.f32.mrb[0].mxu0
  %1556 = vmatprep.mubr.f32.mxu0 0.0
  %1557 = vmatmul.mubr.f32.gmra.mrb[0].mxu0 %v1255
  %v1558 = vpop.f32.mrb[0].mxu0
  %v1559 = vadd.f32 0.0, %v1558
  %v1560 = vpop.f32.mrb[0].mxu0
  %1561 = vmatprep.mubr.f32.mxu0 0.0
  %1562 = vmatmul.mubr.f32.gmra.mrb[0].mxu0 %v1256
  %v1563 = vpop.f32.mrb[0].mxu0
  %v1564 = vadd.f32 0.0, %v1563
  %v1565 = vpop.f32.mrb[0].mxu0
  %1566 = vdwg.mxu0
  %v1567 = vmax.f32 %v1158, %v1324
  %v1568 = vmax.f32 %v1159, %v1329
  %v1569 = vmax.f32 %v1160, %v1334
  %v1570 = vmax.f32 %v1161, %v1339
  %v1571 = vmax.f32 %v1162, %v1344
  %v1572 = vmax.f32 %v1163, %v1349
  %v1573 = vmax.f32 %v1164, %v1354
  %v1574 = vmax.f32 %v1165, %v1359
  %v1575 = vmax.f32 %v1166, %v1364
  %v1576 = vmax.f32 %v1167, %v1369
  %v1577 = vmax.f32 %v1168, %v1374
  %v1578 = vmax.f32 %v1169, %v1379
  %v1579 = vmax.f32 %v1170, %v1384
  %v1580 = vmax.f32 %v1171, %v1389
  %v1581 = vmax.f32 %v1172, %v1394
  %v1582 = vmax.f32 %v1173, %v1399
  %v1583 = vmax.f32 %v1174, %v1404
  %v1584 = vmax.f32 %v1175, %v1409
  %v1585 = vmax.f32 %v1176, %v1414
  %v1586 = vmax.f32 %v1177, %v1419
  %v1587 = vmax.f32 %v1178, %v1424
  %v1588 = vmax.f32 %v1179, %v1429
  %v1589 = vmax.f32 %v1180, %v1434
  %v1590 = vmax.f32 %v1181, %v1439
  %v1591 = vmax.f32 %v1182, %v1444
  %v1592 = vmax.f32 %v1183, %v1449
  %v1593 = vmax.f32 %v1184, %v1454
  %v1594 = vmax.f32 %v1185, %v1459
  %v1595 = vmax.f32 %v1186, %v1464
  %v1596 = vmax.f32 %v1187, %v1469
  %v1597 = vmax.f32 %v1188, %v1474
  %v1598 = vmax.f32 %v1189, %v1479
  %v1599 = vmax.f32 %v1190, %v1484
  %v1600 = vmax.f32 %v1191, %v1489
  %v1601 = vmax.f32 %v1192, %v1494
  %v1602 = vmax.f32 %v1193, %v1499
  %v1603 = vmax.f32 %v1194, %v1504
  %v1604 = vmax.f32 %v1195, %v1509
  %v1605 = vmax.f32 %v1196, %v1514
  %v1606 = vmax.f32 %v1197, %v1519
  %v1607 = vmax.f32 %v1198, %v1524
  %v1608 = vmax.f32 %v1199, %v1529
  %v1609 = vmax.f32 %v1200, %v1534
  %v1610 = vmax.f32 %v1201, %v1539
  %v1611 = vmax.f32 %v1202, %v1544
  %v1612 = vmax.f32 %v1203, %v1549
  %v1613 = vmax.f32 %v1204, %v1554
  %v1614 = vmax.f32 %v1205, %v1559
  %v1615 = vmax.f32 %v1206, %v1564
  %v1616 = vld [vmem:[%s2] sm:$0x1]
  %v1618 = vlaneseq
  %v1619 = vshrl.u32 %v1618, 7
  %v1620 = vsub.s32 0, %v1619
  %v1621 = vrot.slane %v1616, %v1620
  %v1623 = vadd.f32 %v1567, %v1621
  %v1624 = vadd.f32 %v1568, %v1621
  %v1625 = vadd.f32 %v1569, %v1621
  %v1626 = vadd.f32 %v1570, %v1621
  %v1627 = vadd.f32 %v1571, %v1621
  %v1628 = vadd.f32 %v1572, %v1621
  %v1629 = vadd.f32 %v1573, %v1621
  %v1630 = vadd.f32 %v1574, %v1621
  %v1631 = vadd.f32 %v1575, %v1621
  %v1632 = vadd.f32 %v1576, %v1621
  %v1633 = vadd.f32 %v1577, %v1621
  %v1634 = vadd.f32 %v1578, %v1621
  %v1635 = vadd.f32 %v1579, %v1621
  %v1636 = vadd.f32 %v1580, %v1621
  %v1637 = vadd.f32 %v1581, %v1621
  %v1638 = vadd.f32 %v1582, %v1621
  %v1639 = vadd.f32 %v1583, %v1621
  %v1640 = vadd.f32 %v1584, %v1621
  %v1641 = vadd.f32 %v1585, %v1621
  %v1642 = vadd.f32 %v1586, %v1621
  %v1643 = vadd.f32 %v1587, %v1621
  %v1644 = vadd.f32 %v1588, %v1621
  %v1645 = vadd.f32 %v1589, %v1621
  %v1646 = vadd.f32 %v1590, %v1621
  %v1647 = vadd.f32 %v1591, %v1621
  %v1648 = vadd.f32 %v1592, %v1621
  %v1649 = vadd.f32 %v1593, %v1621
  %v1650 = vadd.f32 %v1594, %v1621
  %v1651 = vadd.f32 %v1595, %v1621
  %v1652 = vadd.f32 %v1596, %v1621
  %v1653 = vadd.f32 %v1597, %v1621
  %v1654 = vadd.f32 %v1598, %v1621
  %v1655 = vadd.f32 %v1599, %v1621
  %v1656 = vadd.f32 %v1600, %v1621
  %v1657 = vadd.f32 %v1601, %v1621
  %v1658 = vadd.f32 %v1602, %v1621
  %v1659 = vadd.f32 %v1603, %v1621
  %v1660 = vadd.f32 %v1604, %v1621
  %v1661 = vadd.f32 %v1605, %v1621
  %v1662 = vadd.f32 %v1606, %v1621
  %v1663 = vadd.f32 %v1607, %v1621
  %v1664 = vadd.f32 %v1608, %v1621
  %v1665 = vadd.f32 %v1609, %v1621
  %v1666 = vadd.f32 %v1610, %v1621
  %v1667 = vadd.f32 %v1611, %v1621
  %v1668 = vadd.f32 %v1612, %v1621
  %v1669 = vadd.f32 %v1613, %v1621
  %v1670 = vadd.f32 %v1614, %v1621
  %v1671 = vadd.f32 %v1615, %v1621
  %v1672 = vmax.f32 %v1623, 0.0
  %v1673 = vmax.f32 %v1624, 0.0
  %v1674 = vmax.f32 %v1625, 0.0
  %v1675 = vmax.f32 %v1626, 0.0
  %v1676 = vmax.f32 %v1627, 0.0
  %v1677 = vmax.f32 %v1628, 0.0
  %v1678 = vmax.f32 %v1629, 0.0
  %v1679 = vmax.f32 %v1630, 0.0
  %v1680 = vmax.f32 %v1631, 0.0
  %v1681 = vmax.f32 %v1632, 0.0
  %v1682 = vmax.f32 %v1633, 0.0
  %v1683 = vmax.f32 %v1634, 0.0
  %v1684 = vmax.f32 %v1635, 0.0
  %v1685 = vmax.f32 %v1636, 0.0
  %v1686 = vmax.f32 %v1637, 0.0
  %v1687 = vmax.f32 %v1638, 0.0
  %v1688 = vmax.f32 %v1639, 0.0
  %v1689 = vmax.f32 %v1640, 0.0
  %v1690 = vmax.f32 %v1641, 0.0
  %v1691 = vmax.f32 %v1642, 0.0
  %v1692 = vmax.f32 %v1643, 0.0
  %v1693 = vmax.f32 %v1644, 0.0
  %v1694 = vmax.f32 %v1645, 0.0
  %v1695 = vmax.f32 %v1646, 0.0
  %v1696 = vmax.f32 %v1647, 0.0
  %v1697 = vmax.f32 %v1648, 0.0
  %v1698 = vmax.f32 %v1649, 0.0
  %v1699 = vmax.f32 %v1650, 0.0
  %v1700 = vmax.f32 %v1651, 0.0
  %v1701 = vmax.f32 %v1652, 0.0
  %v1702 = vmax.f32 %v1653, 0.0
  %v1703 = vmax.f32 %v1654, 0.0
  %v1704 = vmax.f32 %v1655, 0.0
  %v1705 = vmax.f32 %v1656, 0.0
  %v1706 = vmax.f32 %v1657, 0.0
  %v1707 = vmax.f32 %v1658, 0.0
  %v1708 = vmax.f32 %v1659, 0.0
  %v1709 = vmax.f32 %v1660, 0.0
  %v1710 = vmax.f32 %v1661, 0.0
  %v1711 = vmax.f32 %v1662, 0.0
  %v1712 = vmax.f32 %v1663, 0.0
  %v1713 = vmax.f32 %v1664, 0.0
  %v1714 = vmax.f32 %v1665, 0.0
  %v1715 = vmax.f32 %v1666, 0.0
  %v1716 = vmax.f32 %v1667, 0.0
  %v1717 = vmax.f32 %v1668, 0.0
  %v1718 = vmax.f32 %v1669, 0.0
  %v1719 = vmax.f32 %v1670, 0.0
  %v1720 = vmax.f32 %v1671, 0.0
  %1721 = vst [vmem:[%s3] sm:$0xff] %v1672
  %1722 = vst [vmem:[%s3 + $0x8] sm:$0xff] %v1673
  %1723 = vst [vmem:[%s3 + $0x10] sm:$0xff] %v1674
  %1724 = vst [vmem:[%s3 + $0x18] sm:$0xff] %v1675
  %1725 = vst [vmem:[%s3 + $0x20] sm:$0xff] %v1676
  %1726 = vst [vmem:[%s3 + $0x28] sm:$0xff] %v1677
  %1727 = vst [vmem:[%s3 + $0x30] sm:$0xff] %v1678
  %1728 = vst [vmem:[%s3 + $0x38] sm:$0xff] %v1679
  %1729 = vst [vmem:[%s3 + $0x40] sm:$0xff] %v1680
  %1730 = vst [vmem:[%s3 + $0x48] sm:$0xff] %v1681
  %1731 = vst [vmem:[%s3 + $0x50] sm:$0xff] %v1682
  %1732 = vst [vmem:[%s3 + $0x58] sm:$0xff] %v1683
  %1733 = vst [vmem:[%s3 + $0x60] sm:$0xff] %v1684
  %1734 = vst [vmem:[%s3 + $0x68] sm:$0xff] %v1685
  %1735 = vst [vmem:[%s3 + $0x70] sm:$0xff] %v1686
  %1736 = vst [vmem:[%s3 + $0x78] sm:$0xff] %v1687
  %1737 = vst [vmem:[%s3 + $0x80] sm:$0xff] %v1688
  %1738 = vst [vmem:[%s3 + $0x88] sm:$0xff] %v1689
  %1739 = vst [vmem:[%s3 + $0x90] sm:$0xff] %v1690
  %1740 = vst [vmem:[%s3 + $0x98] sm:$0xff] %v1691
  %1741 = vst [vmem:[%s3 + $0xa0] sm:$0xff] %v1692
  %1742 = vst [vmem:[%s3 + $0xa8] sm:$0xff] %v1693
  %1743 = vst [vmem:[%s3 + $0xb0] sm:$0xff] %v1694
  %1744 = vst [vmem:[%s3 + $0xb8] sm:$0xff] %v1695
  %1745 = vst [vmem:[%s3 + $0xc0] sm:$0xff] %v1696
  %1746 = vst [vmem:[%s3 + $0xc8] sm:$0xff] %v1697
  %1747 = vst [vmem:[%s3 + $0xd0] sm:$0xff] %v1698
  %1748 = vst [vmem:[%s3 + $0xd8] sm:$0xff] %v1699
  %1749 = vst [vmem:[%s3 + $0xe0] sm:$0xff] %v1700
  %1750 = vst [vmem:[%s3 + $0xe8] sm:$0xff] %v1701
  %1751 = vst [vmem:[%s3 + $0xf0] sm:$0xff] %v1702
  %1752 = vst [vmem:[%s3 + $0xf8] sm:$0xff] %v1703
  %1753 = vst [vmem:[%s3 + $0x100] sm:$0xff] %v1704
  %1754 = vst [vmem:[%s3 + $0x108] sm:$0xff] %v1705
  %1755 = vst [vmem:[%s3 + $0x110] sm:$0xff] %v1706
  %1756 = vst [vmem:[%s3 + $0x118] sm:$0xff] %v1707
  %1757 = vst [vmem:[%s3 + $0x120] sm:$0xff] %v1708
  %1758 = vst [vmem:[%s3 + $0x128] sm:$0xff] %v1709
  %1759 = vst [vmem:[%s3 + $0x130] sm:$0xff] %v1710
  %1760 = vst [vmem:[%s3 + $0x138] sm:$0xff] %v1711
  %1761 = vst [vmem:[%s3 + $0x140] sm:$0xff] %v1712
  %1762 = vst [vmem:[%s3 + $0x148] sm:$0xff] %v1713
  %1763 = vst [vmem:[%s3 + $0x150] sm:$0xff] %v1714
  %1764 = vst [vmem:[%s3 + $0x158] sm:$0xff] %v1715
  %1765 = vst [vmem:[%s3 + $0x160] sm:$0xff] %v1716
  %1766 = vst [vmem:[%s3 + $0x168] sm:$0xff] %v1717
  %1767 = vst [vmem:[%s3 + $0x170] sm:$0xff] %v1718
  %1768 = vst [vmem:[%s3 + $0x178] sm:$0xff] %v1719
  %1769 = vst [vmem:[%s3 + $0x180] sm:$0xff] %v1720
  // Predicated region
  $region14: #{cnn_cifar_forward.3} parent=0 // pred_check
    _
  $region15: #{cnn_cifar_forward.3} parent=0 // pred_check_branch
    %1771 = sbr.rel (0) target = $region17
  $region16: #{cnn_cifar_forward.3} parent=0 // pred_region
    _
  $region17: #{cnn_cifar_forward.3} parent=0 // pred_fallthru
    _
  // Predicated region
  $region18: #{cnn_cifar_forward.3} parent=0 // pred_check
    _
  $region19: #{cnn_cifar_forward.3} parent=0 // pred_check_branch
    %1773 = sbr.rel (0) target = $region21
  $region20: #{cnn_cifar_forward.3} parent=0 // pred_region
    _
  $region21: #{cnn_cifar_forward.3} parent=0 // pred_fallthru
    _

// kernel: cnn_cifar_forward.4
$region0: #{cnn_cifar_forward.4}
  #allocation0 [shape = 'u32[]', space=smem, size = 0x4, offset = 0x4, fixed_abs, tag = 'smem constant byte address 0x4 - core index']
  #allocation1 [shape = 'u32[144,128]{1,0:T(1,128)}', space=vmem, size = 0x12000, scoped, tag = 'internal scratch']
  %s0 = inlined_call_operand.vmem [shape: f32[4,56,256], index: 0, kind: input, shape index: {}]
  %s1 = inlined_call_operand.vmem [shape: f32[256,128], index: 1, kind: input, shape index: {}]
  %s2 = inlined_call_operand.vmem [shape: f32[1,128], index: 2, kind: input, shape index: {}]
  %s3 = inlined_call_operand.vmem [shape: f32[56,128], index: 3, kind: output, shape index: {}]
  %s4 = sld [smem:[#allocation0]]
  $region22: #{cnn_cifar_forward.4} parent=0
    _
  %s6 = ssub.s32 1, %s4
  %s7 = scalar_select 0, %s6, %s4
  // Predicated region
  $region2: #{cnn_cifar_forward.4} parent=0 // pred_check
    _
  $region3: #{cnn_cifar_forward.4} parent=0 // pred_check_branch
    %9 = sbr.rel (0) target = $region5
  $region4: #{cnn_cifar_forward.4} parent=0 // pred_region
    _
  $region5: #{cnn_cifar_forward.4} parent=0 // pred_fallthru
    _
  // Predicated region
  $region6: #{cnn_cifar_forward.4} parent=0 // pred_check
    _
  $region7: #{cnn_cifar_forward.4} parent=0 // pred_check_branch
    %11 = sbr.rel (0) target = $region9
  $region8: #{cnn_cifar_forward.4} parent=0 // pred_region
    _
  $region9: #{cnn_cifar_forward.4} parent=0 // pred_fallthru
    _
  // Predicated region
  $region10: #{cnn_cifar_forward.4} parent=0 // pred_check
    _
  $region11: #{cnn_cifar_forward.4} parent=0 // pred_check_branch
    %13 = sbr.rel (0) target = $region13
  $region12: #{cnn_cifar_forward.4} parent=0 // pred_region
    _
  $region13: #{cnn_cifar_forward.4} parent=0 // pred_fallthru
    _
  %v14 = vld [vmem:[%s1] sm:$0xff]
  %v15 = vld [vmem:[%s1 + $0x8] sm:$0xff]
  %v16 = vld [vmem:[%s1 + $0x10] sm:$0xff]
  %v17 = vld [vmem:[%s1 + $0x18] sm:$0xff]
  %v18 = vld [vmem:[%s1 + $0x20] sm:$0xff]
  %v19 = vld [vmem:[%s1 + $0x28] sm:$0xff]
  %v20 = vld [vmem:[%s1 + $0x30] sm:$0xff]
  %v21 = vld [vmem:[%s1 + $0x38] sm:$0xff]
  %v22 = vld [vmem:[%s1 + $0x40] sm:$0xff]
  %v23 = vld [vmem:[%s1 + $0x48] sm:$0xff]
  %v24 = vld [vmem:[%s1 + $0x50] sm:$0xff]
  %v25 = vld [vmem:[%s1 + $0x58] sm:$0xff]
  %v26 = vld [vmem:[%s1 + $0x60] sm:$0xff]
  %v27 = vld [vmem:[%s1 + $0x68] sm:$0xff]
  %v28 = vld [vmem:[%s1 + $0x70] sm:$0xff]
  %v29 = vld [vmem:[%s1 + $0x78] sm:$0xff]
  %v30 = vld [vmem:[%s1 + $0x80] sm:$0xff]
  %v31 = vld [vmem:[%s1 + $0x88] sm:$0xff]
  %v32 = vld [vmem:[%s1 + $0x90] sm:$0xff]
  %v33 = vld [vmem:[%s1 + $0x98] sm:$0xff]
  %v34 = vld [vmem:[%s1 + $0xa0] sm:$0xff]
  %v35 = vld [vmem:[%s1 + $0xa8] sm:$0xff]
  %v36 = vld [vmem:[%s1 + $0xb0] sm:$0xff]
  %v37 = vld [vmem:[%s1 + $0xb8] sm:$0xff]
  %v38 = vld [vmem:[%s1 + $0xc0] sm:$0xff]
  %v39 = vld [vmem:[%s1 + $0xc8] sm:$0xff]
  %v40 = vld [vmem:[%s1 + $0xd0] sm:$0xff]
  %v41 = vld [vmem:[%s1 + $0xd8] sm:$0xff]
  %v42 = vld [vmem:[%s1 + $0xe0] sm:$0xff]
  %v43 = vld [vmem:[%s1 + $0xe8] sm:$0xff]
  %v44 = vld [vmem:[%s1 + $0xf0] sm:$0xff]
  %v45 = vld [vmem:[%s1 + $0xf8] sm:$0xff]
  %v46 = vld [vmem:[%s0] sm:$0xff]
  %v47 = vld [vmem:[%s0 + $0x8] sm:$0xff]
  %v48 = vld [vmem:[%s0 + $0x10] sm:$0xff]
  %v49 = vld [vmem:[%s0 + $0x18] sm:$0xff]
  %v50 = vld [vmem:[%s0 + $0x20] sm:$0xff]
  %v51 = vld [vmem:[%s0 + $0x28] sm:$0xff]
  %v52 = vld [vmem:[%s0 + $0x30] sm:$0xff]
  %v53 = vld [vmem:[%s0 + $0x38] sm:$0xff]
  %v54 = vld [vmem:[%s0 + $0x40] sm:$0xff]
  %v55 = vld [vmem:[%s0 + $0x48] sm:$0xff]
  %v56 = vld [vmem:[%s0 + $0x50] sm:$0xff]
  %v57 = vld [vmem:[%s0 + $0x58] sm:$0xff]
  %v58 = vld [vmem:[%s0 + $0x60] sm:$0xff]
  %v59 = vld [vmem:[%s0 + $0x68] sm:$0xff]
  %60 = vmatprep.subr.mxu0 0.0
  %61 = vmatpush1.msra.mxu0 %v14
  %62 = vmatprep.subr.mxu0 0.0
  %63 = vmatpush1.msra.mxu0 %v15
  %64 = vmatprep.subr.mxu0 0.0
  %65 = vmatpush1.msra.mxu0 %v16
  %66 = vmatprep.subr.mxu0 0.0
  %67 = vmatpush1.msra.mxu0 %v17
  %68 = vmatprep.subr.mxu0 0.0
  %69 = vmatpush1.msra.mxu0 %v18
  %70 = vmatprep.subr.mxu0 0.0
  %71 = vmatpush1.msra.mxu0 %v19
  %72 = vmatprep.subr.mxu0 0.0
  %73 = vmatpush1.msra.mxu0 %v20
  %74 = vmatprep.subr.mxu0 0.0
  %75 = vmatpush1.msra.mxu0 %v21
  %76 = vmatprep.subr.mxu0 0.0
  %77 = vmatpush1.msra.mxu0 %v22
  %78 = vmatprep.subr.mxu0 0.0
  %79 = vmatpush1.msra.mxu0 %v23
  %80 = vmatprep.subr.mxu0 0.0
  %81 = vmatpush1.msra.mxu0 %v24
  %82 = vmatprep.subr.mxu0 0.0
  %83 = vmatpush1.msra.mxu0 %v25
  %84 = vmatprep.subr.mxu0 0.0
  %85 = vmatpush1.msra.mxu0 %v26
  %86 = vmatprep.subr.mxu0 0.0
  %87 = vmatpush1.msra.mxu0 %v27
  %88 = vmatprep.subr.mxu0 0.0
  %89 = vmatpush1.msra.mxu0 %v28
  %90 = vmatprep.subr.mxu0 0.0
  %91 = vmatpush1.msra.mxu0 %v29
  %92 = vmatprep.subr.mxu0 0.0
  %93 = vmatpush1.msra.mxu0 %v30
  %94 = vmatprep.subr.mxu0 0.0
  %95 = vmatpush1.msra.mxu0 %v31
  %96 = vmatprep.subr.mxu0 0.0
  %97 = vmatpush1.msra.mxu0 %v32
  %98 = vmatprep.subr.mxu0 0.0
  %99 = vmatpush1.msra.mxu0 %v33
  %100 = vmatprep.subr.mxu0 0.0
  %101 = vmatpush1.msra.mxu0 %v34
  %102 = vmatprep.subr.mxu0 0.0
  %103 = vmatpush1.msra.mxu0 %v35
  %104 = vmatprep.subr.mxu0 0.0
  %105 = vmatpush1.msra.mxu0 %v36
  %106 = vmatprep.subr.mxu0 0.0
  %107 = vmatpush1.msra.mxu0 %v37
  %108 = vmatprep.subr.mxu0 0.0
  %109 = vmatpush1.msra.mxu0 %v38
  %110 = vmatprep.subr.mxu0 0.0
  %111 = vmatpush1.msra.mxu0 %v39
  %112 = vmatprep.subr.mxu0 0.0
  %113 = vmatpush1.msra.mxu0 %v40
  %114 = vmatprep.subr.mxu0 0.0
  %115 = vmatpush1.msra.mxu0 %v41
  %116 = vmatprep.subr.mxu0 0.0
  %117 = vmatpush1.msra.mxu0 %v42
  %118 = vmatprep.subr.mxu0 0.0
  %119 = vmatpush1.msra.mxu0 %v43
  %120 = vmatprep.subr.mxu0 0.0
  %121 = vmatpush1.msra.mxu0 %v44
  %122 = vmatprep.subr.mxu0 0.0
  %123 = vmatpush1.msra.mxu0 %v45
  %124 = vmatprep.mubr.f32.mxu0 %v47
  %125 = vmatmul.mubr.f32.gmra.mrb[0].mxu0 %v46
  %v126 = vpop.f32.mrb[0].mxu0
  %v127 = vadd.f32 0.0, %v126
  %v128 = vpop.f32.mrb[0].mxu0
  %129 = vmatprep.mubr.f32.mxu0 %v49
  %130 = vmatmul.mubr.f32.gmra.mrb[0].mxu0 %v48
  %v131 = vpop.f32.mrb[0].mxu0
  %v132 = vadd.f32 0.0, %v131
  %v133 = vpop.f32.mrb[0].mxu0
  %134 = vmatprep.mubr.f32.mxu0 %v51
  %135 = vmatmul.mubr.f32.gmra.mrb[0].mxu0 %v50
  %v136 = vpop.f32.mrb[0].mxu0
  %v137 = vadd.f32 0.0, %v136
  %v138 = vpop.f32.mrb[0].mxu0
  %139 = vmatprep.mubr.f32.mxu0 %v53
  %140 = vmatmul.mubr.f32.gmra.mrb[0].mxu0 %v52
  %v141 = vpop.f32.mrb[0].mxu0
  %v142 = vadd.f32 0.0, %v141
  %v143 = vpop.f32.mrb[0].mxu0
  %144 = vmatprep.mubr.f32.mxu0 %v55
  %145 = vmatmul.mubr.f32.gmra.mrb[0].mxu0 %v54
  %v146 = vpop.f32.mrb[0].mxu0
  %v147 = vadd.f32 0.0, %v146
  %v148 = vpop.f32.mrb[0].mxu0
  %149 = vmatprep.mubr.f32.mxu0 %v57
  %150 = vmatmul.mubr.f32.gmra.mrb[0].mxu0 %v56
  %v151 = vpop.f32.mrb[0].mxu0
  %v152 = vadd.f32 0.0, %v151
  %v153 = vpop.f32.mrb[0].mxu0
  %154 = vmatprep.mubr.f32.mxu0 %v59
  %155 = vmatmul.mubr.f32.gmra.mrb[0].mxu0 %v58
  %v156 = vpop.f32.mrb[0].mxu0
  %v157 = vadd.f32 0.0, %v156
  %v158 = vpop.f32.mrb[0].mxu0
  %159 = vdwg.mxu0
  %s160 = scalar_lea.vmem %s0, 112
  %v161 = vld [vmem:[%s160] sm:$0xff]
  %v162 = vld [vmem:[%s160 + $0x8] sm:$0xff]
  %v163 = vld [vmem:[%s160 + $0x10] sm:$0xff]
  %v164 = vld [vmem:[%s160 + $0x18] sm:$0xff]
  %v165 = vld [vmem:[%s160 + $0x20] sm:$0xff]
  %v166 = vld [vmem:[%s160 + $0x28] sm:$0xff]
  %v167 = vld [vmem:[%s160 + $0x30] sm:$0xff]
  %v168 = vld [vmem:[%s160 + $0x38] sm:$0xff]
  %v169 = vld [vmem:[%s160 + $0x40] sm:$0xff]
  %v170 = vld [vmem:[%s160 + $0x48] sm:$0xff]
  %v171 = vld [vmem:[%s160 + $0x50] sm:$0xff]
  %v172 = vld [vmem:[%s160 + $0x58] sm:$0xff]
  %v173 = vld [vmem:[%s160 + $0x60] sm:$0xff]
  %v174 = vld [vmem:[%s160 + $0x68] sm:$0xff]
  %175 = vmatprep.subr.mxu0 0.0
  %176 = vmatpush1.msra.mxu0 %v14
  %177 = vmatprep.subr.mxu0 0.0
  %178 = vmatpush1.msra.mxu0 %v15
  %179 = vmatprep.subr.mxu0 0.0
  %180 = vmatpush1.msra.mxu0 %v16
  %181 = vmatprep.subr.mxu0 0.0
  %182 = vmatpush1.msra.mxu0 %v17
  %183 = vmatprep.subr.mxu0 0.0
  %184 = vmatpush1.msra.mxu0 %v18
  %185 = vmatprep.subr.mxu0 0.0
  %186 = vmatpush1.msra.mxu0 %v19
  %187 = vmatprep.subr.mxu0 0.0
  %188 = vmatpush1.msra.mxu0 %v20
  %189 = vmatprep.subr.mxu0 0.0
  %190 = vmatpush1.msra.mxu0 %v21
  %191 = vmatprep.subr.mxu0 0.0
  %192 = vmatpush1.msra.mxu0 %v22
  %193 = vmatprep.subr.mxu0 0.0
  %194 = vmatpush1.msra.mxu0 %v23
  %195 = vmatprep.subr.mxu0 0.0
  %196 = vmatpush1.msra.mxu0 %v24
  %197 = vmatprep.subr.mxu0 0.0
  %198 = vmatpush1.msra.mxu0 %v25
  %199 = vmatprep.subr.mxu0 0.0
  %200 = vmatpush1.msra.mxu0 %v26
  %201 = vmatprep.subr.mxu0 0.0
  %202 = vmatpush1.msra.mxu0 %v27
  %203 = vmatprep.subr.mxu0 0.0
  %204 = vmatpush1.msra.mxu0 %v28
  %205 = vmatprep.subr.mxu0 0.0
  %206 = vmatpush1.msra.mxu0 %v29
  %207 = vmatprep.subr.mxu0 0.0
  %208 = vmatpush1.msra.mxu0 %v30
  %209 = vmatprep.subr.mxu0 0.0
  %210 = vmatpush1.msra.mxu0 %v31
  %211 = vmatprep.subr.mxu0 0.0
  %212 = vmatpush1.msra.mxu0 %v32
  %213 = vmatprep.subr.mxu0 0.0
  %214 = vmatpush1.msra.mxu0 %v33
  %215 = vmatprep.subr.mxu0 0.0
  %216 = vmatpush1.msra.mxu0 %v34
  %217 = vmatprep.subr.mxu0 0.0
  %218 = vmatpush1.msra.mxu0 %v35
  %219 = vmatprep.subr.mxu0 0.0
  %220 = vmatpush1.msra.mxu0 %v36
  %221 = vmatprep.subr.mxu0 0.0
  %222 = vmatpush1.msra.mxu0 %v37
  %223 = vmatprep.subr.mxu0 0.0
  %224 = vmatpush1.msra.mxu0 %v38
  %225 = vmatprep.subr.mxu0 0.0
  %226 = vmatpush1.msra.mxu0 %v39
  %227 = vmatprep.subr.mxu0 0.0
  %228 = vmatpush1.msra.mxu0 %v40
  %229 = vmatprep.subr.mxu0 0.0
  %230 = vmatpush1.msra.mxu0 %v41
  %231 = vmatprep.subr.mxu0 0.0
  %232 = vmatpush1.msra.mxu0 %v42
  %233 = vmatprep.subr.mxu0 0.0
  %234 = vmatpush1.msra.mxu0 %v43
  %235 = vmatprep.subr.mxu0 0.0
  %236 = vmatpush1.msra.mxu0 %v44
  %237 = vmatprep.subr.mxu0 0.0
  %238 = vmatpush1.msra.mxu0 %v45
  %239 = vmatprep.mubr.f32.mxu0 %v162
  %240 = vmatmul.mubr.f32.gmra.mrb[0].mxu0 %v161
  %v241 = vpop.f32.mrb[0].mxu0
  %v242 = vadd.f32 0.0, %v241
  %v243 = vpop.f32.mrb[0].mxu0
  %244 = vmatprep.mubr.f32.mxu0 %v164
  %245 = vmatmul.mubr.f32.gmra.mrb[0].mxu0 %v163
  %v246 = vpop.f32.mrb[0].mxu0
  %v247 = vadd.f32 0.0, %v246
  %v248 = vpop.f32.mrb[0].mxu0
  %249 = vmatprep.mubr.f32.mxu0 %v166
  %250 = vmatmul.mubr.f32.gmra.mrb[0].mxu0 %v165
  %v251 = vpop.f32.mrb[0].mxu0
  %v252 = vadd.f32 0.0, %v251
  %v253 = vpop.f32.mrb[0].mxu0
  %254 = vmatprep.mubr.f32.mxu0 %v168
  %255 = vmatmul.mubr.f32.gmra.mrb[0].mxu0 %v167
  %v256 = vpop.f32.mrb[0].mxu0
  %v257 = vadd.f32 0.0, %v256
  %v258 = vpop.f32.mrb[0].mxu0
  %259 = vmatprep.mubr.f32.mxu0 %v170
  %260 = vmatmul.mubr.f32.gmra.mrb[0].mxu0 %v169
  %v261 = vpop.f32.mrb[0].mxu0
  %v262 = vadd.f32 0.0, %v261
  %v263 = vpop.f32.mrb[0].mxu0
  %264 = vmatprep.mubr.f32.mxu0 %v172
  %265 = vmatmul.mubr.f32.gmra.mrb[0].mxu0 %v171
  %v266 = vpop.f32.mrb[0].mxu0
  %v267 = vadd.f32 0.0, %v266
  %v268 = vpop.f32.mrb[0].mxu0
  %269 = vmatprep.mubr.f32.mxu0 %v174
  %270 = vmatmul.mubr.f32.gmra.mrb[0].mxu0 %v173
  %v271 = vpop.f32.mrb[0].mxu0
  %v272 = vadd.f32 0.0, %v271
  %v273 = vpop.f32.mrb[0].mxu0
  %274 = vdwg.mxu0
  %v275 = vmax.f32 %v127, %v242
  %v276 = vmax.f32 %v132, %v247
  %v277 = vmax.f32 %v137, %v252
  %v278 = vmax.f32 %v142, %v257
  %v279 = vmax.f32 %v147, %v262
  %v280 = vmax.f32 %v152, %v267
  %v281 = vmax.f32 %v157, %v272
  %s282 = scalar_lea.vmem %s0, 224
  %v283 = vld [vmem:[%s282] sm:$0xff]
  %v284 = vld [vmem:[%s282 + $0x8] sm:$0xff]
  %v285 = vld [vmem:[%s282 + $0x10] sm:$0xff]
  %v286 = vld [vmem:[%s282 + $0x18] sm:$0xff]
  %v287 = vld [vmem:[%s282 + $0x20] sm:$0xff]
  %v288 = vld [vmem:[%s282 + $0x28] sm:$0xff]
  %v289 = vld [vmem:[%s282 + $0x30] sm:$0xff]
  %v290 = vld [vmem:[%s282 + $0x38] sm:$0xff]
  %v291 = vld [vmem:[%s282 + $0x40] sm:$0xff]
  %v292 = vld [vmem:[%s282 + $0x48] sm:$0xff]
  %v293 = vld [vmem:[%s282 + $0x50] sm:$0xff]
  %v294 = vld [vmem:[%s282 + $0x58] sm:$0xff]
  %v295 = vld [vmem:[%s282 + $0x60] sm:$0xff]
  %v296 = vld [vmem:[%s282 + $0x68] sm:$0xff]
  %297 = vmatprep.subr.mxu0 0.0
  %298 = vmatpush1.msra.mxu0 %v14
  %299 = vmatprep.subr.mxu0 0.0
  %300 = vmatpush1.msra.mxu0 %v15
  %301 = vmatprep.subr.mxu0 0.0
  %302 = vmatpush1.msra.mxu0 %v16
  %303 = vmatprep.subr.mxu0 0.0
  %304 = vmatpush1.msra.mxu0 %v17
  %305 = vmatprep.subr.mxu0 0.0
  %306 = vmatpush1.msra.mxu0 %v18
  %307 = vmatprep.subr.mxu0 0.0
  %308 = vmatpush1.msra.mxu0 %v19
  %309 = vmatprep.subr.mxu0 0.0
  %310 = vmatpush1.msra.mxu0 %v20
  %311 = vmatprep.subr.mxu0 0.0
  %312 = vmatpush1.msra.mxu0 %v21
  %313 = vmatprep.subr.mxu0 0.0
  %314 = vmatpush1.msra.mxu0 %v22
  %315 = vmatprep.subr.mxu0 0.0
  %316 = vmatpush1.msra.mxu0 %v23
  %317 = vmatprep.subr.mxu0 0.0
  %318 = vmatpush1.msra.mxu0 %v24
  %319 = vmatprep.subr.mxu0 0.0
  %320 = vmatpush1.msra.mxu0 %v25
  %321 = vmatprep.subr.mxu0 0.0
  %322 = vmatpush1.msra.mxu0 %v26
  %323 = vmatprep.subr.mxu0 0.0
  %324 = vmatpush1.msra.mxu0 %v27
  %325 = vmatprep.subr.mxu0 0.0
  %326 = vmatpush1.msra.mxu0 %v28
  %327 = vmatprep.subr.mxu0 0.0
  %328 = vmatpush1.msra.mxu0 %v29
  %329 = vmatprep.subr.mxu0 0.0
  %330 = vmatpush1.msra.mxu0 %v30
  %331 = vmatprep.subr.mxu0 0.0
  %332 = vmatpush1.msra.mxu0 %v31
  %333 = vmatprep.subr.mxu0 0.0
  %334 = vmatpush1.msra.mxu0 %v32
  %335 = vmatprep.subr.mxu0 0.0
  %336 = vmatpush1.msra.mxu0 %v33
  %337 = vmatprep.subr.mxu0 0.0
  %338 = vmatpush1.msra.mxu0 %v34
  %339 = vmatprep.subr.mxu0 0.0
  %340 = vmatpush1.msra.mxu0 %v35
  %341 = vmatprep.subr.mxu0 0.0
  %342 = vmatpush1.msra.mxu0 %v36
  %343 = vmatprep.subr.mxu0 0.0
  %344 = vmatpush1.msra.mxu0 %v37
  %345 = vmatprep.subr.mxu0 0.0
  %346 = vmatpush1.msra.mxu0 %v38
  %347 = vmatprep.subr.mxu0 0.0
  %348 = vmatpush1.msra.mxu0 %v39
  %349 = vmatprep.subr.mxu0 0.0
  %350 = vmatpush1.msra.mxu0 %v40
  %351 = vmatprep.subr.mxu0 0.0
  %352 = vmatpush1.msra.mxu0 %v41
  %353 = vmatprep.subr.mxu0 0.0
  %354 = vmatpush1.msra.mxu0 %v42
  %355 = vmatprep.subr.mxu0 0.0
  %356 = vmatpush1.msra.mxu0 %v43
  %357 = vmatprep.subr.mxu0 0.0
  %358 = vmatpush1.msra.mxu0 %v44
  %359 = vmatprep.subr.mxu0 0.0
  %360 = vmatpush1.msra.mxu0 %v45
  %361 = vmatprep.mubr.f32.mxu0 %v284
  %362 = vmatmul.mubr.f32.gmra.mrb[0].mxu0 %v283
  %v363 = vpop.f32.mrb[0].mxu0
  %v364 = vadd.f32 0.0, %v363
  %v365 = vpop.f32.mrb[0].mxu0
  %366 = vmatprep.mubr.f32.mxu0 %v286
  %367 = vmatmul.mubr.f32.gmra.mrb[0].mxu0 %v285
  %v368 = vpop.f32.mrb[0].mxu0
  %v369 = vadd.f32 0.0, %v368
  %v370 = vpop.f32.mrb[0].mxu0
  %371 = vmatprep.mubr.f32.mxu0 %v288
  %372 = vmatmul.mubr.f32.gmra.mrb[0].mxu0 %v287
  %v373 = vpop.f32.mrb[0].mxu0
  %v374 = vadd.f32 0.0, %v373
  %v375 = vpop.f32.mrb[0].mxu0
  %376 = vmatprep.mubr.f32.mxu0 %v290
  %377 = vmatmul.mubr.f32.gmra.mrb[0].mxu0 %v289
  %v378 = vpop.f32.mrb[0].mxu0
  %v379 = vadd.f32 0.0, %v378
  %v380 = vpop.f32.mrb[0].mxu0
  %381 = vmatprep.mubr.f32.mxu0 %v292
  %382 = vmatmul.mubr.f32.gmra.mrb[0].mxu0 %v291
  %v383 = vpop.f32.mrb[0].mxu0
  %v384 = vadd.f32 0.0, %v383
  %v385 = vpop.f32.mrb[0].mxu0
  %386 = vmatprep.mubr.f32.mxu0 %v294
  %387 = vmatmul.mubr.f32.gmra.mrb[0].mxu0 %v293
  %v388 = vpop.f32.mrb[0].mxu0
  %v389 = vadd.f32 0.0, %v388
  %v390 = vpop.f32.mrb[0].mxu0
  %391 = vmatprep.mubr.f32.mxu0 %v296
  %392 = vmatmul.mubr.f32.gmra.mrb[0].mxu0 %v295
  %v393 = vpop.f32.mrb[0].mxu0
  %v394 = vadd.f32 0.0, %v393
  %v395 = vpop.f32.mrb[0].mxu0
  %396 = vdwg.mxu0
  %v397 = vmax.f32 %v275, %v364
  %v398 = vmax.f32 %v276, %v369
  %v399 = vmax.f32 %v277, %v374
  %v400 = vmax.f32 %v278, %v379
  %v401 = vmax.f32 %v279, %v384
  %v402 = vmax.f32 %v280, %v389
  %v403 = vmax.f32 %v281, %v394
  %s404 = scalar_lea.vmem %s0, 336
  %v405 = vld [vmem:[%s404] sm:$0xff]
  %v406 = vld [vmem:[%s404 + $0x8] sm:$0xff]
  %v407 = vld [vmem:[%s404 + $0x10] sm:$0xff]
  %v408 = vld [vmem:[%s404 + $0x18] sm:$0xff]
  %v409 = vld [vmem:[%s404 + $0x20] sm:$0xff]
  %v410 = vld [vmem:[%s404 + $0x28] sm:$0xff]
  %v411 = vld [vmem:[%s404 + $0x30] sm:$0xff]
  %v412 = vld [vmem:[%s404 + $0x38] sm:$0xff]
  %v413 = vld [vmem:[%s404 + $0x40] sm:$0xff]
  %v414 = vld [vmem:[%s404 + $0x48] sm:$0xff]
  %v415 = vld [vmem:[%s404 + $0x50] sm:$0xff]
  %v416 = vld [vmem:[%s404 + $0x58] sm:$0xff]
  %v417 = vld [vmem:[%s404 + $0x60] sm:$0xff]
  %v418 = vld [vmem:[%s404 + $0x68] sm:$0xff]
  %419 = vmatprep.subr.mxu0 0.0
  %420 = vmatpush1.msra.mxu0 %v14
  %421 = vmatprep.subr.mxu0 0.0
  %422 = vmatpush1.msra.mxu0 %v15
  %423 = vmatprep.subr.mxu0 0.0
  %424 = vmatpush1.msra.mxu0 %v16
  %425 = vmatprep.subr.mxu0 0.0
  %426 = vmatpush1.msra.mxu0 %v17
  %427 = vmatprep.subr.mxu0 0.0
  %428 = vmatpush1.msra.mxu0 %v18
  %429 = vmatprep.subr.mxu0 0.0
  %430 = vmatpush1.msra.mxu0 %v19
  %431 = vmatprep.subr.mxu0 0.0
  %432 = vmatpush1.msra.mxu0 %v20
  %433 = vmatprep.subr.mxu0 0.0
  %434 = vmatpush1.msra.mxu0 %v21
  %435 = vmatprep.subr.mxu0 0.0
  %436 = vmatpush1.msra.mxu0 %v22
  %437 = vmatprep.subr.mxu0 0.0
  %438 = vmatpush1.msra.mxu0 %v23
  %439 = vmatprep.subr.mxu0 0.0
  %440 = vmatpush1.msra.mxu0 %v24
  %441 = vmatprep.subr.mxu0 0.0
  %442 = vmatpush1.msra.mxu0 %v25
  %443 = vmatprep.subr.mxu0 0.0
  %444 = vmatpush1.msra.mxu0 %v26
  %445 = vmatprep.subr.mxu0 0.0
  %446 = vmatpush1.msra.mxu0 %v27
  %447 = vmatprep.subr.mxu0 0.0
  %448 = vmatpush1.msra.mxu0 %v28
  %449 = vmatprep.subr.mxu0 0.0
  %450 = vmatpush1.msra.mxu0 %v29
  %451 = vmatprep.subr.mxu0 0.0
  %452 = vmatpush1.msra.mxu0 %v30
  %453 = vmatprep.subr.mxu0 0.0
  %454 = vmatpush1.msra.mxu0 %v31
  %455 = vmatprep.subr.mxu0 0.0
  %456 = vmatpush1.msra.mxu0 %v32
  %457 = vmatprep.subr.mxu0 0.0
  %458 = vmatpush1.msra.mxu0 %v33
  %459 = vmatprep.subr.mxu0 0.0
  %460 = vmatpush1.msra.mxu0 %v34
  %461 = vmatprep.subr.mxu0 0.0
  %462 = vmatpush1.msra.mxu0 %v35
  %463 = vmatprep.subr.mxu0 0.0
  %464 = vmatpush1.msra.mxu0 %v36
  %465 = vmatprep.subr.mxu0 0.0
  %466 = vmatpush1.msra.mxu0 %v37
  %467 = vmatprep.subr.mxu0 0.0
  %468 = vmatpush1.msra.mxu0 %v38
  %469 = vmatprep.subr.mxu0 0.0
  %470 = vmatpush1.msra.mxu0 %v39
  %471 = vmatprep.subr.mxu0 0.0
  %472 = vmatpush1.msra.mxu0 %v40
  %473 = vmatprep.subr.mxu0 0.0
  %474 = vmatpush1.msra.mxu0 %v41
  %475 = vmatprep.subr.mxu0 0.0
  %476 = vmatpush1.msra.mxu0 %v42
  %477 = vmatprep.subr.mxu0 0.0
  %478 = vmatpush1.msra.mxu0 %v43
  %479 = vmatprep.subr.mxu0 0.0
  %480 = vmatpush1.msra.mxu0 %v44
  %481 = vmatprep.subr.mxu0 0.0
  %482 = vmatpush1.msra.mxu0 %v45
  %483 = vmatprep.mubr.f32.mxu0 %v406
  %484 = vmatmul.mubr.f32.gmra.mrb[0].mxu0 %v405
  %v485 = vpop.f32.mrb[0].mxu0
  %v486 = vadd.f32 0.0, %v485
  %v487 = vpop.f32.mrb[0].mxu0
  %488 = vmatprep.mubr.f32.mxu0 %v408
  %489 = vmatmul.mubr.f32.gmra.mrb[0].mxu0 %v407
  %v490 = vpop.f32.mrb[0].mxu0
  %v491 = vadd.f32 0.0, %v490
  %v492 = vpop.f32.mrb[0].mxu0
  %493 = vmatprep.mubr.f32.mxu0 %v410
  %494 = vmatmul.mubr.f32.gmra.mrb[0].mxu0 %v409
  %v495 = vpop.f32.mrb[0].mxu0
  %v496 = vadd.f32 0.0, %v495
  %v497 = vpop.f32.mrb[0].mxu0
  %498 = vmatprep.mubr.f32.mxu0 %v412
  %499 = vmatmul.mubr.f32.gmra.mrb[0].mxu0 %v411
  %v500 = vpop.f32.mrb[0].mxu0
  %v501 = vadd.f32 0.0, %v500
  %v502 = vpop.f32.mrb[0].mxu0
  %503 = vmatprep.mubr.f32.mxu0 %v414
  %504 = vmatmul.mubr.f32.gmra.mrb[0].mxu0 %v413
  %v505 = vpop.f32.mrb[0].mxu0
  %v506 = vadd.f32 0.0, %v505
  %v507 = vpop.f32.mrb[0].mxu0
  %508 = vmatprep.mubr.f32.mxu0 %v416
  %509 = vmatmul.mubr.f32.gmra.mrb[0].mxu0 %v415
  %v510 = vpop.f32.mrb[0].mxu0
  %v511 = vadd.f32 0.0, %v510
  %v512 = vpop.f32.mrb[0].mxu0
  %513 = vmatprep.mubr.f32.mxu0 %v418
  %514 = vmatmul.mubr.f32.gmra.mrb[0].mxu0 %v417
  %v515 = vpop.f32.mrb[0].mxu0
  %v516 = vadd.f32 0.0, %v515
  %v517 = vpop.f32.mrb[0].mxu0
  %518 = vdwg.mxu0
  %v519 = vmax.f32 %v397, %v486
  %v520 = vmax.f32 %v398, %v491
  %v521 = vmax.f32 %v399, %v496
  %v522 = vmax.f32 %v400, %v501
  %v523 = vmax.f32 %v401, %v506
  %v524 = vmax.f32 %v402, %v511
  %v525 = vmax.f32 %v403, %v516
  %v526 = vld [vmem:[%s2] sm:$0x1]
  %v528 = vlaneseq
  %v529 = vshrl.u32 %v528, 7
  %v530 = vsub.s32 0, %v529
  %v531 = vrot.slane %v526, %v530
  %v533 = vadd.f32 %v519, %v531
  %v534 = vadd.f32 %v520, %v531
  %v535 = vadd.f32 %v521, %v531
  %v536 = vadd.f32 %v522, %v531
  %v537 = vadd.f32 %v523, %v531
  %v538 = vadd.f32 %v524, %v531
  %v539 = vadd.f32 %v525, %v531
  %v540 = vmax.f32 %v533, 0.0
  %v541 = vmax.f32 %v534, 0.0
  %v542 = vmax.f32 %v535, 0.0
  %v543 = vmax.f32 %v536, 0.0
  %v544 = vmax.f32 %v537, 0.0
  %v545 = vmax.f32 %v538, 0.0
  %v546 = vmax.f32 %v539, 0.0
  %547 = vst [vmem:[%s3] sm:$0xff] %v540
  %548 = vst [vmem:[%s3 + $0x8] sm:$0xff] %v541
  %549 = vst [vmem:[%s3 + $0x10] sm:$0xff] %v542
  %550 = vst [vmem:[%s3 + $0x18] sm:$0xff] %v543
  %551 = vst [vmem:[%s3 + $0x20] sm:$0xff] %v544
  %552 = vst [vmem:[%s3 + $0x28] sm:$0xff] %v545
  %553 = vst [vmem:[%s3 + $0x30] sm:$0xff] %v546
  // Predicated region
  $region14: #{cnn_cifar_forward.4} parent=0 // pred_check
    _
  $region15: #{cnn_cifar_forward.4} parent=0 // pred_check_branch
    %555 = sbr.rel (0) target = $region17
  $region16: #{cnn_cifar_forward.4} parent=0 // pred_region
    _
  $region17: #{cnn_cifar_forward.4} parent=0 // pred_fallthru
    _
  // Predicated region
  $region18: #{cnn_cifar_forward.4} parent=0 // pred_check
    _
  $region19: #{cnn_cifar_forward.4} parent=0 // pred_check_branch
    %557 = sbr.rel (0) target = $region21
  $region20: #{cnn_cifar_forward.4} parent=0 // pred_region
    _
  $region21: #{cnn_cifar_forward.4} parent=0 // pred_fallthru
    _

// kernel: cnn_cifar_forward.5
$region0: #{cnn_cifar_forward.5}
  #allocation0 [shape = 'u32[]', space=smem, size = 0x4, offset = 0x4, fixed_abs, tag = 'smem constant byte address 0x4 - core index']
  #allocation1 [shape = 'u32[144,128]{1,0:T(1,128)}', space=vmem, size = 0x12000, scoped, tag = 'internal scratch']
  %s0 = inlined_call_operand.vmem [shape: f32[8,3200], index: 0, kind: input, shape index: {}]
  %s1 = inlined_call_operand.vmem [shape: f32[3200,128], index: 1, kind: input, shape index: {}]
  %s2 = inlined_call_operand.vmem [shape: f32[1,128], index: 2, kind: input, shape index: {}]
  %s3 = inlined_call_operand.vmem [shape: f32[128,128], index: 3, kind: input, shape index: {}]
  %s4 = inlined_call_operand.vmem [shape: f32[1,128], index: 4, kind: input, shape index: {}]
  %s5 = inlined_call_operand.vmem [shape: f32[128,128], index: 5, kind: input, shape index: {}]
  %s6 = inlined_call_operand.vmem [shape: f32[1,128], index: 6, kind: input, shape index: {}]
  %s7 = inlined_call_operand.vmem [shape: f32[8,128], index: 7, kind: output, shape index: {0}]
  %s8 = inlined_call_operand.vmem [shape: f32[8,128], index: 8, kind: output, shape index: {1}]
  %9 = xla_tuple %s7, %s8
  %s10 = sld [smem:[#allocation0]]
  $region46: #{cnn_cifar_forward.5} parent=0
    _
  %s12 = ssub.s32 1, %s10
  %s13 = scalar_select 0, %s12, %s10
  // Predicated region
  $region2: #{cnn_cifar_forward.5} parent=0 // pred_check
    _
  $region3: #{cnn_cifar_forward.5} parent=0 // pred_check_branch
    %15 = sbr.rel (0) target = $region5
  $region4: #{cnn_cifar_forward.5} parent=0 // pred_region
    _
  $region5: #{cnn_cifar_forward.5} parent=0 // pred_fallthru
    _
  // Predicated region
  $region6: #{cnn_cifar_forward.5} parent=0 // pred_check
    _
  $region7: #{cnn_cifar_forward.5} parent=0 // pred_check_branch
    %17 = sbr.rel (0) target = $region9
  $region8: #{cnn_cifar_forward.5} parent=0 // pred_region
    _
  $region9: #{cnn_cifar_forward.5} parent=0 // pred_fallthru
    _
  // Predicated region
  $region10: #{cnn_cifar_forward.5} parent=0 // pred_check
    _
  $region11: #{cnn_cifar_forward.5} parent=0 // pred_check_branch
    %19 = sbr.rel (0) target = $region13
  $region12: #{cnn_cifar_forward.5} parent=0 // pred_region
    _
  $region13: #{cnn_cifar_forward.5} parent=0 // pred_fallthru
    _
  // Predicated region
  $region14: #{cnn_cifar_forward.5} parent=0 // pred_check
    _
  $region15: #{cnn_cifar_forward.5} parent=0 // pred_check_branch
    %21 = sbr.rel (0) target = $region17
  $region16: #{cnn_cifar_forward.5} parent=0 // pred_region
    _
  $region17: #{cnn_cifar_forward.5} parent=0 // pred_fallthru
    _
  // Predicated region
  $region18: #{cnn_cifar_forward.5} parent=0 // pred_check
    _
  $region19: #{cnn_cifar_forward.5} parent=0 // pred_check_branch
    %23 = sbr.rel (0) target = $region21
  $region20: #{cnn_cifar_forward.5} parent=0 // pred_region
    _
  $region21: #{cnn_cifar_forward.5} parent=0 // pred_fallthru
    _
  // Predicated region
  $region22: #{cnn_cifar_forward.5} parent=0 // pred_check
    _
  $region23: #{cnn_cifar_forward.5} parent=0 // pred_check_branch
    %25 = sbr.rel (0) target = $region25
  $region24: #{cnn_cifar_forward.5} parent=0 // pred_region
    _
  $region25: #{cnn_cifar_forward.5} parent=0 // pred_fallthru
    _
  // Predicated region
  $region26: #{cnn_cifar_forward.5} parent=0 // pred_check
    _
  $region27: #{cnn_cifar_forward.5} parent=0 // pred_check_branch
    %27 = sbr.rel (0) target = $region29
  $region28: #{cnn_cifar_forward.5} parent=0 // pred_region
    _
  $region29: #{cnn_cifar_forward.5} parent=0 // pred_fallthru
    _
  %v28 = vld [vmem:[%s0] sm:$0xff]
  %v29 = vld [vmem:[%s0 + $0x8] sm:$0xff]
  %v30 = vld [vmem:[%s0 + $0x10] sm:$0xff]
  %v31 = vld [vmem:[%s0 + $0x18] sm:$0xff]
  %v32 = vld [vmem:[%s0 + $0x20] sm:$0xff]
  %v33 = vld [vmem:[%s0 + $0x28] sm:$0xff]
  %v34 = vld [vmem:[%s0 + $0x30] sm:$0xff]
  %v35 = vld [vmem:[%s0 + $0x38] sm:$0xff]
  %v36 = vld [vmem:[%s0 + $0x40] sm:$0xff]
  %v37 = vld [vmem:[%s0 + $0x48] sm:$0xff]
  %v38 = vld [vmem:[%s0 + $0x50] sm:$0xff]
  %v39 = vld [vmem:[%s0 + $0x58] sm:$0xff]
  %v40 = vld [vmem:[%s0 + $0x60] sm:$0xff]
  %v41 = vld [vmem:[%s0 + $0x68] sm:$0xff]
  %v42 = vld [vmem:[%s0 + $0x70] sm:$0xff]
  %v43 = vld [vmem:[%s0 + $0x78] sm:$0xff]
  %v44 = vld [vmem:[%s0 + $0x80] sm:$0xff]
  %v45 = vld [vmem:[%s0 + $0x88] sm:$0xff]
  %v46 = vld [vmem:[%s0 + $0x90] sm:$0xff]
  %v47 = vld [vmem:[%s0 + $0x98] sm:$0xff]
  %v48 = vld [vmem:[%s0 + $0xa0] sm:$0xff]
  %v49 = vld [vmem:[%s0 + $0xa8] sm:$0xff]
  %v50 = vld [vmem:[%s0 + $0xb0] sm:$0xff]
  %v51 = vld [vmem:[%s0 + $0xb8] sm:$0xff]
  %v52 = vld [vmem:[%s0 + $0xc0] sm:$0xff]
  %v53 = vld [vmem:[%s1] sm:$0xff]
  %v54 = vld [vmem:[%s1 + $0x8] sm:$0xff]
  %v55 = vld [vmem:[%s1 + $0x10] sm:$0xff]
  %v56 = vld [vmem:[%s1 + $0x18] sm:$0xff]
  %v57 = vld [vmem:[%s1 + $0x20] sm:$0xff]
  %v58 = vld [vmem:[%s1 + $0x28] sm:$0xff]
  %v59 = vld [vmem:[%s1 + $0x30] sm:$0xff]
  %v60 = vld [vmem:[%s1 + $0x38] sm:$0xff]
  %v61 = vld [vmem:[%s1 + $0x40] sm:$0xff]
  %v62 = vld [vmem:[%s1 + $0x48] sm:$0xff]
  %v63 = vld [vmem:[%s1 + $0x50] sm:$0xff]
  %v64 = vld [vmem:[%s1 + $0x58] sm:$0xff]
  %v65 = vld [vmem:[%s1 + $0x60] sm:$0xff]
  %v66 = vld [vmem:[%s1 + $0x68] sm:$0xff]
  %v67 = vld [vmem:[%s1 + $0x70] sm:$0xff]
  %v68 = vld [vmem:[%s1 + $0x78] sm:$0xff]
  %v69 = vld [vmem:[%s1 + $0x80] sm:$0xff]
  %v70 = vld [vmem:[%s1 + $0x88] sm:$0xff]
  %v71 = vld [vmem:[%s1 + $0x90] sm:$0xff]
  %v72 = vld [vmem:[%s1 + $0x98] sm:$0xff]
  %v73 = vld [vmem:[%s1 + $0xa0] sm:$0xff]
  %v74 = vld [vmem:[%s1 + $0xa8] sm:$0xff]
  %v75 = vld [vmem:[%s1 + $0xb0] sm:$0xff]
  %v76 = vld [vmem:[%s1 + $0xb8] sm:$0xff]
  %v77 = vld [vmem:[%s1 + $0xc0] sm:$0xff]
  %v78 = vld [vmem:[%s1 + $0xc8] sm:$0xff]
  %v79 = vld [vmem:[%s1 + $0xd0] sm:$0xff]
  %v80 = vld [vmem:[%s1 + $0xd8] sm:$0xff]
  %v81 = vld [vmem:[%s1 + $0xe0] sm:$0xff]
  %v82 = vld [vmem:[%s1 + $0xe8] sm:$0xff]
  %v83 = vld [vmem:[%s1 + $0xf0] sm:$0xff]
  %v84 = vld [vmem:[%s1 + $0xf8] sm:$0xff]
  %v85 = vld [vmem:[%s1 + $0x100] sm:$0xff]
  %v86 = vld [vmem:[%s1 + $0x108] sm:$0xff]
  %v87 = vld [vmem:[%s1 + $0x110] sm:$0xff]
  %v88 = vld [vmem:[%s1 + $0x118] sm:$0xff]
  %v89 = vld [vmem:[%s1 + $0x120] sm:$0xff]
  %v90 = vld [vmem:[%s1 + $0x128] sm:$0xff]
  %v91 = vld [vmem:[%s1 + $0x130] sm:$0xff]
  %v92 = vld [vmem:[%s1 + $0x138] sm:$0xff]
  %v93 = vld [vmem:[%s1 + $0x140] sm:$0xff]
  %v94 = vld [vmem:[%s1 + $0x148] sm:$0xff]
  %v95 = vld [vmem:[%s1 + $0x150] sm:$0xff]
  %v96 = vld [vmem:[%s1 + $0x158] sm:$0xff]
  %v97 = vld [vmem:[%s1 + $0x160] sm:$0xff]
  %v98 = vld [vmem:[%s1 + $0x168] sm:$0xff]
  %v99 = vld [vmem:[%s1 + $0x170] sm:$0xff]
  %v100 = vld [vmem:[%s1 + $0x178] sm:$0xff]
  %v101 = vld [vmem:[%s1 + $0x180] sm:$0xff]
  %v102 = vld [vmem:[%s1 + $0x188] sm:$0xff]
  %v103 = vld [vmem:[%s1 + $0x190] sm:$0xff]
  %v104 = vld [vmem:[%s1 + $0x198] sm:$0xff]
  %v105 = vld [vmem:[%s1 + $0x1a0] sm:$0xff]
  %v106 = vld [vmem:[%s1 + $0x1a8] sm:$0xff]
  %v107 = vld [vmem:[%s1 + $0x1b0] sm:$0xff]
  %v108 = vld [vmem:[%s1 + $0x1b8] sm:$0xff]
  %v109 = vld [vmem:[%s1 + $0x1c0] sm:$0xff]
  %v110 = vld [vmem:[%s1 + $0x1c8] sm:$0xff]
  %v111 = vld [vmem:[%s1 + $0x1d0] sm:$0xff]
  %v112 = vld [vmem:[%s1 + $0x1d8] sm:$0xff]
  %v113 = vld [vmem:[%s1 + $0x1e0] sm:$0xff]
  %v114 = vld [vmem:[%s1 + $0x1e8] sm:$0xff]
  %v115 = vld [vmem:[%s1 + $0x1f0] sm:$0xff]
  %v116 = vld [vmem:[%s1 + $0x1f8] sm:$0xff]
  %v117 = vld [vmem:[%s1 + $0x200] sm:$0xff]
  %v118 = vld [vmem:[%s1 + $0x208] sm:$0xff]
  %v119 = vld [vmem:[%s1 + $0x210] sm:$0xff]
  %v120 = vld [vmem:[%s1 + $0x218] sm:$0xff]
  %v121 = vld [vmem:[%s1 + $0x220] sm:$0xff]
  %v122 = vld [vmem:[%s1 + $0x228] sm:$0xff]
  %v123 = vld [vmem:[%s1 + $0x230] sm:$0xff]
  %v124 = vld [vmem:[%s1 + $0x238] sm:$0xff]
  %v125 = vld [vmem:[%s1 + $0x240] sm:$0xff]
  %v126 = vld [vmem:[%s1 + $0x248] sm:$0xff]
  %v127 = vld [vmem:[%s1 + $0x250] sm:$0xff]
  %v128 = vld [vmem:[%s1 + $0x258] sm:$0xff]
  %v129 = vld [vmem:[%s1 + $0x260] sm:$0xff]
  %v130 = vld [vmem:[%s1 + $0x268] sm:$0xff]
  %v131 = vld [vmem:[%s1 + $0x270] sm:$0xff]
  %v132 = vld [vmem:[%s1 + $0x278] sm:$0xff]
  %v133 = vld [vmem:[%s1 + $0x280] sm:$0xff]
  %v134 = vld [vmem:[%s1 + $0x288] sm:$0xff]
  %v135 = vld [vmem:[%s1 + $0x290] sm:$0xff]
  %v136 = vld [vmem:[%s1 + $0x298] sm:$0xff]
  %v137 = vld [vmem:[%s1 + $0x2a0] sm:$0xff]
  %v138 = vld [vmem:[%s1 + $0x2a8] sm:$0xff]
  %v139 = vld [vmem:[%s1 + $0x2b0] sm:$0xff]
  %v140 = vld [vmem:[%s1 + $0x2b8] sm:$0xff]
  %v141 = vld [vmem:[%s1 + $0x2c0] sm:$0xff]
  %v142 = vld [vmem:[%s1 + $0x2c8] sm:$0xff]
  %v143 = vld [vmem:[%s1 + $0x2d0] sm:$0xff]
  %v144 = vld [vmem:[%s1 + $0x2d8] sm:$0xff]
  %v145 = vld [vmem:[%s1 + $0x2e0] sm:$0xff]
  %v146 = vld [vmem:[%s1 + $0x2e8] sm:$0xff]
  %v147 = vld [vmem:[%s1 + $0x2f0] sm:$0xff]
  %v148 = vld [vmem:[%s1 + $0x2f8] sm:$0xff]
  %v149 = vld [vmem:[%s1 + $0x300] sm:$0xff]
  %v150 = vld [vmem:[%s1 + $0x308] sm:$0xff]
  %v151 = vld [vmem:[%s1 + $0x310] sm:$0xff]
  %v152 = vld [vmem:[%s1 + $0x318] sm:$0xff]
  %v153 = vld [vmem:[%s1 + $0x320] sm:$0xff]
  %v154 = vld [vmem:[%s1 + $0x328] sm:$0xff]
  %v155 = vld [vmem:[%s1 + $0x330] sm:$0xff]
  %v156 = vld [vmem:[%s1 + $0x338] sm:$0xff]
  %v157 = vld [vmem:[%s1 + $0x340] sm:$0xff]
  %v158 = vld [vmem:[%s1 + $0x348] sm:$0xff]
  %v159 = vld [vmem:[%s1 + $0x350] sm:$0xff]
  %v160 = vld [vmem:[%s1 + $0x358] sm:$0xff]
  %v161 = vld [vmem:[%s1 + $0x360] sm:$0xff]
  %v162 = vld [vmem:[%s1 + $0x368] sm:$0xff]
  %v163 = vld [vmem:[%s1 + $0x370] sm:$0xff]
  %v164 = vld [vmem:[%s1 + $0x378] sm:$0xff]
  %v165 = vld [vmem:[%s1 + $0x380] sm:$0xff]
  %v166 = vld [vmem:[%s1 + $0x388] sm:$0xff]
  %v167 = vld [vmem:[%s1 + $0x390] sm:$0xff]
  %v168 = vld [vmem:[%s1 + $0x398] sm:$0xff]
  %v169 = vld [vmem:[%s1 + $0x3a0] sm:$0xff]
  %v170 = vld [vmem:[%s1 + $0x3a8] sm:$0xff]
  %v171 = vld [vmem:[%s1 + $0x3b0] sm:$0xff]
  %v172 = vld [vmem:[%s1 + $0x3b8] sm:$0xff]
  %v173 = vld [vmem:[%s1 + $0x3c0] sm:$0xff]
  %v174 = vld [vmem:[%s1 + $0x3c8] sm:$0xff]
  %v175 = vld [vmem:[%s1 + $0x3d0] sm:$0xff]
  %v176 = vld [vmem:[%s1 + $0x3d8] sm:$0xff]
  %v177 = vld [vmem:[%s1 + $0x3e0] sm:$0xff]
  %v178 = vld [vmem:[%s1 + $0x3e8] sm:$0xff]
  %v179 = vld [vmem:[%s1 + $0x3f0] sm:$0xff]
  %v180 = vld [vmem:[%s1 + $0x3f8] sm:$0xff]
  %v181 = vld [vmem:[%s1 + $0x400] sm:$0xff]
  %v182 = vld [vmem:[%s1 + $0x408] sm:$0xff]
  %v183 = vld [vmem:[%s1 + $0x410] sm:$0xff]
  %v184 = vld [vmem:[%s1 + $0x418] sm:$0xff]
  %v185 = vld [vmem:[%s1 + $0x420] sm:$0xff]
  %v186 = vld [vmem:[%s1 + $0x428] sm:$0xff]
  %v187 = vld [vmem:[%s1 + $0x430] sm:$0xff]
  %v188 = vld [vmem:[%s1 + $0x438] sm:$0xff]
  %v189 = vld [vmem:[%s1 + $0x440] sm:$0xff]
  %v190 = vld [vmem:[%s1 + $0x448] sm:$0xff]
  %v191 = vld [vmem:[%s1 + $0x450] sm:$0xff]
  %v192 = vld [vmem:[%s1 + $0x458] sm:$0xff]
  %v193 = vld [vmem:[%s1 + $0x460] sm:$0xff]
  %v194 = vld [vmem:[%s1 + $0x468] sm:$0xff]
  %v195 = vld [vmem:[%s1 + $0x470] sm:$0xff]
  %v196 = vld [vmem:[%s1 + $0x478] sm:$0xff]
  %v197 = vld [vmem:[%s1 + $0x480] sm:$0xff]
  %v198 = vld [vmem:[%s1 + $0x488] sm:$0xff]
  %v199 = vld [vmem:[%s1 + $0x490] sm:$0xff]
  %v200 = vld [vmem:[%s1 + $0x498] sm:$0xff]
  %v201 = vld [vmem:[%s1 + $0x4a0] sm:$0xff]
  %v202 = vld [vmem:[%s1 + $0x4a8] sm:$0xff]
  %v203 = vld [vmem:[%s1 + $0x4b0] sm:$0xff]
  %v204 = vld [vmem:[%s1 + $0x4b8] sm:$0xff]
  %v205 = vld [vmem:[%s1 + $0x4c0] sm:$0xff]
  %v206 = vld [vmem:[%s1 + $0x4c8] sm:$0xff]
  %v207 = vld [vmem:[%s1 + $0x4d0] sm:$0xff]
  %v208 = vld [vmem:[%s1 + $0x4d8] sm:$0xff]
  %v209 = vld [vmem:[%s1 + $0x4e0] sm:$0xff]
  %v210 = vld [vmem:[%s1 + $0x4e8] sm:$0xff]
  %v211 = vld [vmem:[%s1 + $0x4f0] sm:$0xff]
  %v212 = vld [vmem:[%s1 + $0x4f8] sm:$0xff]
  %v213 = vld [vmem:[%s1 + $0x500] sm:$0xff]
  %v214 = vld [vmem:[%s1 + $0x508] sm:$0xff]
  %v215 = vld [vmem:[%s1 + $0x510] sm:$0xff]
  %v216 = vld [vmem:[%s1 + $0x518] sm:$0xff]
  %v217 = vld [vmem:[%s1 + $0x520] sm:$0xff]
  %v218 = vld [vmem:[%s1 + $0x528] sm:$0xff]
  %v219 = vld [vmem:[%s1 + $0x530] sm:$0xff]
  %v220 = vld [vmem:[%s1 + $0x538] sm:$0xff]
  %v221 = vld [vmem:[%s1 + $0x540] sm:$0xff]
  %v222 = vld [vmem:[%s1 + $0x548] sm:$0xff]
  %v223 = vld [vmem:[%s1 + $0x550] sm:$0xff]
  %v224 = vld [vmem:[%s1 + $0x558] sm:$0xff]
  %v225 = vld [vmem:[%s1 + $0x560] sm:$0xff]
  %v226 = vld [vmem:[%s1 + $0x568] sm:$0xff]
  %v227 = vld [vmem:[%s1 + $0x570] sm:$0xff]
  %v228 = vld [vmem:[%s1 + $0x578] sm:$0xff]
  %v229 = vld [vmem:[%s1 + $0x580] sm:$0xff]
  %v230 = vld [vmem:[%s1 + $0x588] sm:$0xff]
  %v231 = vld [vmem:[%s1 + $0x590] sm:$0xff]
  %v232 = vld [vmem:[%s1 + $0x598] sm:$0xff]
  %v233 = vld [vmem:[%s1 + $0x5a0] sm:$0xff]
  %v234 = vld [vmem:[%s1 + $0x5a8] sm:$0xff]
  %v235 = vld [vmem:[%s1 + $0x5b0] sm:$0xff]
  %v236 = vld [vmem:[%s1 + $0x5b8] sm:$0xff]
  %v237 = vld [vmem:[%s1 + $0x5c0] sm:$0xff]
  %v238 = vld [vmem:[%s1 + $0x5c8] sm:$0xff]
  %v239 = vld [vmem:[%s1 + $0x5d0] sm:$0xff]
  %v240 = vld [vmem:[%s1 + $0x5d8] sm:$0xff]
  %v241 = vld [vmem:[%s1 + $0x5e0] sm:$0xff]
  %v242 = vld [vmem:[%s1 + $0x5e8] sm:$0xff]
  %v243 = vld [vmem:[%s1 + $0x5f0] sm:$0xff]
  %v244 = vld [vmem:[%s1 + $0x5f8] sm:$0xff]
  %v245 = vld [vmem:[%s1 + $0x600] sm:$0xff]
  %v246 = vld [vmem:[%s1 + $0x608] sm:$0xff]
  %v247 = vld [vmem:[%s1 + $0x610] sm:$0xff]
  %v248 = vld [vmem:[%s1 + $0x618] sm:$0xff]
  %v249 = vld [vmem:[%s1 + $0x620] sm:$0xff]
  %v250 = vld [vmem:[%s1 + $0x628] sm:$0xff]
  %v251 = vld [vmem:[%s1 + $0x630] sm:$0xff]
  %v252 = vld [vmem:[%s1 + $0x638] sm:$0xff]
  %v253 = vld [vmem:[%s1 + $0x640] sm:$0xff]
  %v254 = vld [vmem:[%s1 + $0x648] sm:$0xff]
  %v255 = vld [vmem:[%s1 + $0x650] sm:$0xff]
  %v256 = vld [vmem:[%s1 + $0x658] sm:$0xff]
  %v257 = vld [vmem:[%s1 + $0x660] sm:$0xff]
  %v258 = vld [vmem:[%s1 + $0x668] sm:$0xff]
  %v259 = vld [vmem:[%s1 + $0x670] sm:$0xff]
  %v260 = vld [vmem:[%s1 + $0x678] sm:$0xff]
  %v261 = vld [vmem:[%s1 + $0x680] sm:$0xff]
  %v262 = vld [vmem:[%s1 + $0x688] sm:$0xff]
  %v263 = vld [vmem:[%s1 + $0x690] sm:$0xff]
  %v264 = vld [vmem:[%s1 + $0x698] sm:$0xff]
  %v265 = vld [vmem:[%s1 + $0x6a0] sm:$0xff]
  %v266 = vld [vmem:[%s1 + $0x6a8] sm:$0xff]
  %v267 = vld [vmem:[%s1 + $0x6b0] sm:$0xff]
  %v268 = vld [vmem:[%s1 + $0x6b8] sm:$0xff]
  %v269 = vld [vmem:[%s1 + $0x6c0] sm:$0xff]
  %v270 = vld [vmem:[%s1 + $0x6c8] sm:$0xff]
  %v271 = vld [vmem:[%s1 + $0x6d0] sm:$0xff]
  %v272 = vld [vmem:[%s1 + $0x6d8] sm:$0xff]
  %v273 = vld [vmem:[%s1 + $0x6e0] sm:$0xff]
  %v274 = vld [vmem:[%s1 + $0x6e8] sm:$0xff]
  %v275 = vld [vmem:[%s1 + $0x6f0] sm:$0xff]
  %v276 = vld [vmem:[%s1 + $0x6f8] sm:$0xff]
  %v277 = vld [vmem:[%s1 + $0x700] sm:$0xff]
  %v278 = vld [vmem:[%s1 + $0x708] sm:$0xff]
  %v279 = vld [vmem:[%s1 + $0x710] sm:$0xff]
  %v280 = vld [vmem:[%s1 + $0x718] sm:$0xff]
  %v281 = vld [vmem:[%s1 + $0x720] sm:$0xff]
  %v282 = vld [vmem:[%s1 + $0x728] sm:$0xff]
  %v283 = vld [vmem:[%s1 + $0x730] sm:$0xff]
  %v284 = vld [vmem:[%s1 + $0x738] sm:$0xff]
  %v285 = vld [vmem:[%s1 + $0x740] sm:$0xff]
  %v286 = vld [vmem:[%s1 + $0x748] sm:$0xff]
  %v287 = vld [vmem:[%s1 + $0x750] sm:$0xff]
  %v288 = vld [vmem:[%s1 + $0x758] sm:$0xff]
  %v289 = vld [vmem:[%s1 + $0x760] sm:$0xff]
  %v290 = vld [vmem:[%s1 + $0x768] sm:$0xff]
  %v291 = vld [vmem:[%s1 + $0x770] sm:$0xff]
  %v292 = vld [vmem:[%s1 + $0x778] sm:$0xff]
  %v293 = vld [vmem:[%s1 + $0x780] sm:$0xff]
  %v294 = vld [vmem:[%s1 + $0x788] sm:$0xff]
  %v295 = vld [vmem:[%s1 + $0x790] sm:$0xff]
  %v296 = vld [vmem:[%s1 + $0x798] sm:$0xff]
  %v297 = vld [vmem:[%s1 + $0x7a0] sm:$0xff]
  %v298 = vld [vmem:[%s1 + $0x7a8] sm:$0xff]
  %v299 = vld [vmem:[%s1 + $0x7b0] sm:$0xff]
  %v300 = vld [vmem:[%s1 + $0x7b8] sm:$0xff]
  %v301 = vld [vmem:[%s1 + $0x7c0] sm:$0xff]
  %v302 = vld [vmem:[%s1 + $0x7c8] sm:$0xff]
  %v303 = vld [vmem:[%s1 + $0x7d0] sm:$0xff]
  %v304 = vld [vmem:[%s1 + $0x7d8] sm:$0xff]
  %v305 = vld [vmem:[%s1 + $0x7e0] sm:$0xff]
  %v306 = vld [vmem:[%s1 + $0x7e8] sm:$0xff]
  %v307 = vld [vmem:[%s1 + $0x7f0] sm:$0xff]
  %v308 = vld [vmem:[%s1 + $0x7f8] sm:$0xff]
  %v309 = vld [vmem:[%s1 + $0x800] sm:$0xff]
  %v310 = vld [vmem:[%s1 + $0x808] sm:$0xff]
  %v311 = vld [vmem:[%s1 + $0x810] sm:$0xff]
  %v312 = vld [vmem:[%s1 + $0x818] sm:$0xff]
  %v313 = vld [vmem:[%s1 + $0x820] sm:$0xff]
  %v314 = vld [vmem:[%s1 + $0x828] sm:$0xff]
  %v315 = vld [vmem:[%s1 + $0x830] sm:$0xff]
  %v316 = vld [vmem:[%s1 + $0x838] sm:$0xff]
  %v317 = vld [vmem:[%s1 + $0x840] sm:$0xff]
  %v318 = vld [vmem:[%s1 + $0x848] sm:$0xff]
  %v319 = vld [vmem:[%s1 + $0x850] sm:$0xff]
  %v320 = vld [vmem:[%s1 + $0x858] sm:$0xff]
  %v321 = vld [vmem:[%s1 + $0x860] sm:$0xff]
  %v322 = vld [vmem:[%s1 + $0x868] sm:$0xff]
  %v323 = vld [vmem:[%s1 + $0x870] sm:$0xff]
  %v324 = vld [vmem:[%s1 + $0x878] sm:$0xff]
  %v325 = vld [vmem:[%s1 + $0x880] sm:$0xff]
  %v326 = vld [vmem:[%s1 + $0x888] sm:$0xff]
  %v327 = vld [vmem:[%s1 + $0x890] sm:$0xff]
  %v328 = vld [vmem:[%s1 + $0x898] sm:$0xff]
  %v329 = vld [vmem:[%s1 + $0x8a0] sm:$0xff]
  %v330 = vld [vmem:[%s1 + $0x8a8] sm:$0xff]
  %v331 = vld [vmem:[%s1 + $0x8b0] sm:$0xff]
  %v332 = vld [vmem:[%s1 + $0x8b8] sm:$0xff]
  %v333 = vld [vmem:[%s1 + $0x8c0] sm:$0xff]
  %v334 = vld [vmem:[%s1 + $0x8c8] sm:$0xff]
  %v335 = vld [vmem:[%s1 + $0x8d0] sm:$0xff]
  %v336 = vld [vmem:[%s1 + $0x8d8] sm:$0xff]
  %v337 = vld [vmem:[%s1 + $0x8e0] sm:$0xff]
  %v338 = vld [vmem:[%s1 + $0x8e8] sm:$0xff]
  %v339 = vld [vmem:[%s1 + $0x8f0] sm:$0xff]
  %v340 = vld [vmem:[%s1 + $0x8f8] sm:$0xff]
  %v341 = vld [vmem:[%s1 + $0x900] sm:$0xff]
  %v342 = vld [vmem:[%s1 + $0x908] sm:$0xff]
  %v343 = vld [vmem:[%s1 + $0x910] sm:$0xff]
  %v344 = vld [vmem:[%s1 + $0x918] sm:$0xff]
  %v345 = vld [vmem:[%s1 + $0x920] sm:$0xff]
  %v346 = vld [vmem:[%s1 + $0x928] sm:$0xff]
  %v347 = vld [vmem:[%s1 + $0x930] sm:$0xff]
  %v348 = vld [vmem:[%s1 + $0x938] sm:$0xff]
  %v349 = vld [vmem:[%s1 + $0x940] sm:$0xff]
  %v350 = vld [vmem:[%s1 + $0x948] sm:$0xff]
  %v351 = vld [vmem:[%s1 + $0x950] sm:$0xff]
  %v352 = vld [vmem:[%s1 + $0x958] sm:$0xff]
  %v353 = vld [vmem:[%s1 + $0x960] sm:$0xff]
  %v354 = vld [vmem:[%s1 + $0x968] sm:$0xff]
  %v355 = vld [vmem:[%s1 + $0x970] sm:$0xff]
  %v356 = vld [vmem:[%s1 + $0x978] sm:$0xff]
  %v357 = vld [vmem:[%s1 + $0x980] sm:$0xff]
  %v358 = vld [vmem:[%s1 + $0x988] sm:$0xff]
  %v359 = vld [vmem:[%s1 + $0x990] sm:$0xff]
  %v360 = vld [vmem:[%s1 + $0x998] sm:$0xff]
  %v361 = vld [vmem:[%s1 + $0x9a0] sm:$0xff]
  %v362 = vld [vmem:[%s1 + $0x9a8] sm:$0xff]
  %v363 = vld [vmem:[%s1 + $0x9b0] sm:$0xff]
  %v364 = vld [vmem:[%s1 + $0x9b8] sm:$0xff]
  %v365 = vld [vmem:[%s1 + $0x9c0] sm:$0xff]
  %v366 = vld [vmem:[%s1 + $0x9c8] sm:$0xff]
  %v367 = vld [vmem:[%s1 + $0x9d0] sm:$0xff]
  %v368 = vld [vmem:[%s1 + $0x9d8] sm:$0xff]
  %v369 = vld [vmem:[%s1 + $0x9e0] sm:$0xff]
  %v370 = vld [vmem:[%s1 + $0x9e8] sm:$0xff]
  %v371 = vld [vmem:[%s1 + $0x9f0] sm:$0xff]
  %v372 = vld [vmem:[%s1 + $0x9f8] sm:$0xff]
  %v373 = vld [vmem:[%s1 + $0xa00] sm:$0xff]
  %v374 = vld [vmem:[%s1 + $0xa08] sm:$0xff]
  %v375 = vld [vmem:[%s1 + $0xa10] sm:$0xff]
  %v376 = vld [vmem:[%s1 + $0xa18] sm:$0xff]
  %v377 = vld [vmem:[%s1 + $0xa20] sm:$0xff]
  %v378 = vld [vmem:[%s1 + $0xa28] sm:$0xff]
  %v379 = vld [vmem:[%s1 + $0xa30] sm:$0xff]
  %v380 = vld [vmem:[%s1 + $0xa38] sm:$0xff]
  %v381 = vld [vmem:[%s1 + $0xa40] sm:$0xff]
  %v382 = vld [vmem:[%s1 + $0xa48] sm:$0xff]
  %v383 = vld [vmem:[%s1 + $0xa50] sm:$0xff]
  %v384 = vld [vmem:[%s1 + $0xa58] sm:$0xff]
  %v385 = vld [vmem:[%s1 + $0xa60] sm:$0xff]
  %v386 = vld [vmem:[%s1 + $0xa68] sm:$0xff]
  %v387 = vld [vmem:[%s1 + $0xa70] sm:$0xff]
  %v388 = vld [vmem:[%s1 + $0xa78] sm:$0xff]
  %v389 = vld [vmem:[%s1 + $0xa80] sm:$0xff]
  %v390 = vld [vmem:[%s1 + $0xa88] sm:$0xff]
  %v391 = vld [vmem:[%s1 + $0xa90] sm:$0xff]
  %v392 = vld [vmem:[%s1 + $0xa98] sm:$0xff]
  %v393 = vld [vmem:[%s1 + $0xaa0] sm:$0xff]
  %v394 = vld [vmem:[%s1 + $0xaa8] sm:$0xff]
  %v395 = vld [vmem:[%s1 + $0xab0] sm:$0xff]
  %v396 = vld [vmem:[%s1 + $0xab8] sm:$0xff]
  %v397 = vld [vmem:[%s1 + $0xac0] sm:$0xff]
  %v398 = vld [vmem:[%s1 + $0xac8] sm:$0xff]
  %v399 = vld [vmem:[%s1 + $0xad0] sm:$0xff]
  %v400 = vld [vmem:[%s1 + $0xad8] sm:$0xff]
  %v401 = vld [vmem:[%s1 + $0xae0] sm:$0xff]
  %v402 = vld [vmem:[%s1 + $0xae8] sm:$0xff]
  %v403 = vld [vmem:[%s1 + $0xaf0] sm:$0xff]
  %v404 = vld [vmem:[%s1 + $0xaf8] sm:$0xff]
  %v405 = vld [vmem:[%s1 + $0xb00] sm:$0xff]
  %v406 = vld [vmem:[%s1 + $0xb08] sm:$0xff]
  %v407 = vld [vmem:[%s1 + $0xb10] sm:$0xff]
  %v408 = vld [vmem:[%s1 + $0xb18] sm:$0xff]
  %v409 = vld [vmem:[%s1 + $0xb20] sm:$0xff]
  %v410 = vld [vmem:[%s1 + $0xb28] sm:$0xff]
  %v411 = vld [vmem:[%s1 + $0xb30] sm:$0xff]
  %v412 = vld [vmem:[%s1 + $0xb38] sm:$0xff]
  %v413 = vld [vmem:[%s1 + $0xb40] sm:$0xff]
  %v414 = vld [vmem:[%s1 + $0xb48] sm:$0xff]
  %v415 = vld [vmem:[%s1 + $0xb50] sm:$0xff]
  %v416 = vld [vmem:[%s1 + $0xb58] sm:$0xff]
  %v417 = vld [vmem:[%s1 + $0xb60] sm:$0xff]
  %v418 = vld [vmem:[%s1 + $0xb68] sm:$0xff]
  %v419 = vld [vmem:[%s1 + $0xb70] sm:$0xff]
  %v420 = vld [vmem:[%s1 + $0xb78] sm:$0xff]
  %v421 = vld [vmem:[%s1 + $0xb80] sm:$0xff]
  %v422 = vld [vmem:[%s1 + $0xb88] sm:$0xff]
  %v423 = vld [vmem:[%s1 + $0xb90] sm:$0xff]
  %v424 = vld [vmem:[%s1 + $0xb98] sm:$0xff]
  %v425 = vld [vmem:[%s1 + $0xba0] sm:$0xff]
  %v426 = vld [vmem:[%s1 + $0xba8] sm:$0xff]
  %v427 = vld [vmem:[%s1 + $0xbb0] sm:$0xff]
  %v428 = vld [vmem:[%s1 + $0xbb8] sm:$0xff]
  %v429 = vld [vmem:[%s1 + $0xbc0] sm:$0xff]
  %v430 = vld [vmem:[%s1 + $0xbc8] sm:$0xff]
  %v431 = vld [vmem:[%s1 + $0xbd0] sm:$0xff]
  %v432 = vld [vmem:[%s1 + $0xbd8] sm:$0xff]
  %v433 = vld [vmem:[%s1 + $0xbe0] sm:$0xff]
  %v434 = vld [vmem:[%s1 + $0xbe8] sm:$0xff]
  %v435 = vld [vmem:[%s1 + $0xbf0] sm:$0xff]
  %v436 = vld [vmem:[%s1 + $0xbf8] sm:$0xff]
  %v437 = vld [vmem:[%s1 + $0xc00] sm:$0xff]
  %v438 = vld [vmem:[%s1 + $0xc08] sm:$0xff]
  %v439 = vld [vmem:[%s1 + $0xc10] sm:$0xff]
  %v440 = vld [vmem:[%s1 + $0xc18] sm:$0xff]
  %v441 = vld [vmem:[%s1 + $0xc20] sm:$0xff]
  %v442 = vld [vmem:[%s1 + $0xc28] sm:$0xff]
  %v443 = vld [vmem:[%s1 + $0xc30] sm:$0xff]
  %v444 = vld [vmem:[%s1 + $0xc38] sm:$0xff]
  %v445 = vld [vmem:[%s1 + $0xc40] sm:$0xff]
  %v446 = vld [vmem:[%s1 + $0xc48] sm:$0xff]
  %v447 = vld [vmem:[%s1 + $0xc50] sm:$0xff]
  %v448 = vld [vmem:[%s1 + $0xc58] sm:$0xff]
  %v449 = vld [vmem:[%s1 + $0xc60] sm:$0xff]
  %v450 = vld [vmem:[%s1 + $0xc68] sm:$0xff]
  %v451 = vld [vmem:[%s1 + $0xc70] sm:$0xff]
  %v452 = vld [vmem:[%s1 + $0xc78] sm:$0xff]
  %v453 = vld [vmem:[%s2] sm:$0x1]
  %v455 = vlaneseq
  %v456 = vshrl.u32 %v455, 7
  %v457 = vsub.s32 0, %v456
  %v458 = vrot.slane %v453, %v457
  %460 = vmatprep.subr.mxu0 0.0
  %461 = vmatpush1.msra.mxu0 %v53
  %462 = vmatprep.subr.mxu0 0.0
  %463 = vmatpush1.msra.mxu0 %v54
  %464 = vmatprep.subr.mxu0 0.0
  %465 = vmatpush1.msra.mxu0 %v55
  %466 = vmatprep.subr.mxu0 0.0
  %467 = vmatpush1.msra.mxu0 %v56
  %468 = vmatprep.subr.mxu0 0.0
  %469 = vmatpush1.msra.mxu0 %v57
  %470 = vmatprep.subr.mxu0 0.0
  %471 = vmatpush1.msra.mxu0 %v58
  %472 = vmatprep.subr.mxu0 0.0
  %473 = vmatpush1.msra.mxu0 %v59
  %474 = vmatprep.subr.mxu0 0.0
  %475 = vmatpush1.msra.mxu0 %v60
  %476 = vmatprep.subr.mxu0 0.0
  %477 = vmatpush1.msra.mxu0 %v61
  %478 = vmatprep.subr.mxu0 0.0
  %479 = vmatpush1.msra.mxu0 %v62
  %480 = vmatprep.subr.mxu0 0.0
  %481 = vmatpush1.msra.mxu0 %v63
  %482 = vmatprep.subr.mxu0 0.0
  %483 = vmatpush1.msra.mxu0 %v64
  %484 = vmatprep.subr.mxu0 0.0
  %485 = vmatpush1.msra.mxu0 %v65
  %486 = vmatprep.subr.mxu0 0.0
  %487 = vmatpush1.msra.mxu0 %v66
  %488 = vmatprep.subr.mxu0 0.0
  %489 = vmatpush1.msra.mxu0 %v67
  %490 = vmatprep.subr.mxu0 0.0
  %491 = vmatpush1.msra.mxu0 %v68
  %492 = vmatprep.subr.mxu0 0.0
  %493 = vmatpush1.msra.mxu0 %v69
  %494 = vmatprep.subr.mxu0 0.0
  %495 = vmatpush1.msra.mxu0 %v70
  %496 = vmatprep.subr.mxu0 0.0
  %497 = vmatpush1.msra.mxu0 %v71
  %498 = vmatprep.subr.mxu0 0.0
  %499 = vmatpush1.msra.mxu0 %v72
  %500 = vmatprep.subr.mxu0 0.0
  %501 = vmatpush1.msra.mxu0 %v73
  %502 = vmatprep.subr.mxu0 0.0
  %503 = vmatpush1.msra.mxu0 %v74
  %504 = vmatprep.subr.mxu0 0.0
  %505 = vmatpush1.msra.mxu0 %v75
  %506 = vmatprep.subr.mxu0 0.0
  %507 = vmatpush1.msra.mxu0 %v76
  %508 = vmatprep.subr.mxu0 0.0
  %509 = vmatpush1.msra.mxu0 %v77
  %510 = vmatprep.subr.mxu0 0.0
  %511 = vmatpush1.msra.mxu0 %v78
  %512 = vmatprep.subr.mxu0 0.0
  %513 = vmatpush1.msra.mxu0 %v79
  %514 = vmatprep.subr.mxu0 0.0
  %515 = vmatpush1.msra.mxu0 %v80
  %516 = vmatprep.subr.mxu0 0.0
  %517 = vmatpush1.msra.mxu0 %v81
  %518 = vmatprep.subr.mxu0 0.0
  %519 = vmatpush1.msra.mxu0 %v82
  %520 = vmatprep.subr.mxu0 0.0
  %521 = vmatpush1.msra.mxu0 %v83
  %522 = vmatprep.subr.mxu0 0.0
  %523 = vmatpush1.msra.mxu0 %v84
  %524 = vmatprep.mubr.f32.mxu0 %v29
  %525 = vmatmul.mubr.f32.gmra.mrb[0].mxu0 %v28
  %v526 = vpop.f32.mrb[0].mxu0
  %v527 = vadd.f32 %v458, %v526
  %v528 = vpop.f32.mrb[0].mxu0
  %529 = vdwg.mxu0
  %530 = vmatprep.subr.mxu0 0.0
  %531 = vmatpush1.msra.mxu0 %v85
  %532 = vmatprep.subr.mxu0 0.0
  %533 = vmatpush1.msra.mxu0 %v86
  %534 = vmatprep.subr.mxu0 0.0
  %535 = vmatpush1.msra.mxu0 %v87
  %536 = vmatprep.subr.mxu0 0.0
  %537 = vmatpush1.msra.mxu0 %v88
  %538 = vmatprep.subr.mxu0 0.0
  %539 = vmatpush1.msra.mxu0 %v89
  %540 = vmatprep.subr.mxu0 0.0
  %541 = vmatpush1.msra.mxu0 %v90
  %542 = vmatprep.subr.mxu0 0.0
  %543 = vmatpush1.msra.mxu0 %v91
  %544 = vmatprep.subr.mxu0 0.0
  %545 = vmatpush1.msra.mxu0 %v92
  %546 = vmatprep.subr.mxu0 0.0
  %547 = vmatpush1.msra.mxu0 %v93
  %548 = vmatprep.subr.mxu0 0.0
  %549 = vmatpush1.msra.mxu0 %v94
  %550 = vmatprep.subr.mxu0 0.0
  %551 = vmatpush1.msra.mxu0 %v95
  %552 = vmatprep.subr.mxu0 0.0
  %553 = vmatpush1.msra.mxu0 %v96
  %554 = vmatprep.subr.mxu0 0.0
  %555 = vmatpush1.msra.mxu0 %v97
  %556 = vmatprep.subr.mxu0 0.0
  %557 = vmatpush1.msra.mxu0 %v98
  %558 = vmatprep.subr.mxu0 0.0
  %559 = vmatpush1.msra.mxu0 %v99
  %560 = vmatprep.subr.mxu0 0.0
  %561 = vmatpush1.msra.mxu0 %v100
  %562 = vmatprep.subr.mxu0 0.0
  %563 = vmatpush1.msra.mxu0 %v101
  %564 = vmatprep.subr.mxu0 0.0
  %565 = vmatpush1.msra.mxu0 %v102
  %566 = vmatprep.subr.mxu0 0.0
  %567 = vmatpush1.msra.mxu0 %v103
  %568 = vmatprep.subr.mxu0 0.0
  %569 = vmatpush1.msra.mxu0 %v104
  %570 = vmatprep.subr.mxu0 0.0
  %571 = vmatpush1.msra.mxu0 %v105
  %572 = vmatprep.subr.mxu0 0.0
  %573 = vmatpush1.msra.mxu0 %v106
  %574 = vmatprep.subr.mxu0 0.0
  %575 = vmatpush1.msra.mxu0 %v107
  %576 = vmatprep.subr.mxu0 0.0
  %577 = vmatpush1.msra.mxu0 %v108
  %578 = vmatprep.subr.mxu0 0.0
  %579 = vmatpush1.msra.mxu0 %v109
  %580 = vmatprep.subr.mxu0 0.0
  %581 = vmatpush1.msra.mxu0 %v110
  %582 = vmatprep.subr.mxu0 0.0
  %583 = vmatpush1.msra.mxu0 %v111
  %584 = vmatprep.subr.mxu0 0.0
  %585 = vmatpush1.msra.mxu0 %v112
  %586 = vmatprep.subr.mxu0 0.0
  %587 = vmatpush1.msra.mxu0 %v113
  %588 = vmatprep.subr.mxu0 0.0
  %589 = vmatpush1.msra.mxu0 %v114
  %590 = vmatprep.subr.mxu0 0.0
  %591 = vmatpush1.msra.mxu0 %v115
  %592 = vmatprep.subr.mxu0 0.0
  %593 = vmatpush1.msra.mxu0 %v116
  %594 = vmatprep.mubr.f32.mxu0 %v31
  %595 = vmatmul.mubr.f32.gmra.mrb[0].mxu0 %v30
  %v596 = vpop.f32.mrb[0].mxu0
  %v597 = vadd.f32 %v527, %v596
  %v598 = vpop.f32.mrb[0].mxu0
  %599 = vdwg.mxu0
  %600 = vmatprep.subr.mxu0 0.0
  %601 = vmatpush1.msra.mxu0 %v117
  %602 = vmatprep.subr.mxu0 0.0
  %603 = vmatpush1.msra.mxu0 %v118
  %604 = vmatprep.subr.mxu0 0.0
  %605 = vmatpush1.msra.mxu0 %v119
  %606 = vmatprep.subr.mxu0 0.0
  %607 = vmatpush1.msra.mxu0 %v120
  %608 = vmatprep.subr.mxu0 0.0
  %609 = vmatpush1.msra.mxu0 %v121
  %610 = vmatprep.subr.mxu0 0.0
  %611 = vmatpush1.msra.mxu0 %v122
  %612 = vmatprep.subr.mxu0 0.0
  %613 = vmatpush1.msra.mxu0 %v123
  %614 = vmatprep.subr.mxu0 0.0
  %615 = vmatpush1.msra.mxu0 %v124
  %616 = vmatprep.subr.mxu0 0.0
  %617 = vmatpush1.msra.mxu0 %v125
  %618 = vmatprep.subr.mxu0 0.0
  %619 = vmatpush1.msra.mxu0 %v126
  %620 = vmatprep.subr.mxu0 0.0
  %621 = vmatpush1.msra.mxu0 %v127
  %622 = vmatprep.subr.mxu0 0.0
  %623 = vmatpush1.msra.mxu0 %v128
  %624 = vmatprep.subr.mxu0 0.0
  %625 = vmatpush1.msra.mxu0 %v129
  %626 = vmatprep.subr.mxu0 0.0
  %627 = vmatpush1.msra.mxu0 %v130
  %628 = vmatprep.subr.mxu0 0.0
  %629 = vmatpush1.msra.mxu0 %v131
  %630 = vmatprep.subr.mxu0 0.0
  %631 = vmatpush1.msra.mxu0 %v132
  %632 = vmatprep.subr.mxu0 0.0
  %633 = vmatpush1.msra.mxu0 %v133
  %634 = vmatprep.subr.mxu0 0.0
  %635 = vmatpush1.msra.mxu0 %v134
  %636 = vmatprep.subr.mxu0 0.0
  %637 = vmatpush1.msra.mxu0 %v135
  %638 = vmatprep.subr.mxu0 0.0
  %639 = vmatpush1.msra.mxu0 %v136
  %640 = vmatprep.subr.mxu0 0.0
  %641 = vmatpush1.msra.mxu0 %v137
  %642 = vmatprep.subr.mxu0 0.0
  %643 = vmatpush1.msra.mxu0 %v138
  %644 = vmatprep.subr.mxu0 0.0
  %645 = vmatpush1.msra.mxu0 %v139
  %646 = vmatprep.subr.mxu0 0.0
  %647 = vmatpush1.msra.mxu0 %v140
  %648 = vmatprep.subr.mxu0 0.0
  %649 = vmatpush1.msra.mxu0 %v141
  %650 = vmatprep.subr.mxu0 0.0
  %651 = vmatpush1.msra.mxu0 %v142
  %652 = vmatprep.subr.mxu0 0.0
  %653 = vmatpush1.msra.mxu0 %v143
  %654 = vmatprep.subr.mxu0 0.0
  %655 = vmatpush1.msra.mxu0 %v144
  %656 = vmatprep.subr.mxu0 0.0
  %657 = vmatpush1.msra.mxu0 %v145
  %658 = vmatprep.subr.mxu0 0.0
  %659 = vmatpush1.msra.mxu0 %v146
  %660 = vmatprep.subr.mxu0 0.0
  %661 = vmatpush1.msra.mxu0 %v147
  %662 = vmatprep.subr.mxu0 0.0
  %663 = vmatpush1.msra.mxu0 %v148
  %664 = vmatprep.mubr.f32.mxu0 %v33
  %665 = vmatmul.mubr.f32.gmra.mrb[0].mxu0 %v32
  %v666 = vpop.f32.mrb[0].mxu0
  %v667 = vadd.f32 %v597, %v666
  %v668 = vpop.f32.mrb[0].mxu0
  %669 = vdwg.mxu0
  %670 = vmatprep.subr.mxu0 0.0
  %671 = vmatpush1.msra.mxu0 %v149
  %672 = vmatprep.subr.mxu0 0.0
  %673 = vmatpush1.msra.mxu0 %v150
  %674 = vmatprep.subr.mxu0 0.0
  %675 = vmatpush1.msra.mxu0 %v151
  %676 = vmatprep.subr.mxu0 0.0
  %677 = vmatpush1.msra.mxu0 %v152
  %678 = vmatprep.subr.mxu0 0.0
  %679 = vmatpush1.msra.mxu0 %v153
  %680 = vmatprep.subr.mxu0 0.0
  %681 = vmatpush1.msra.mxu0 %v154
  %682 = vmatprep.subr.mxu0 0.0
  %683 = vmatpush1.msra.mxu0 %v155
  %684 = vmatprep.subr.mxu0 0.0
  %685 = vmatpush1.msra.mxu0 %v156
  %686 = vmatprep.subr.mxu0 0.0
  %687 = vmatpush1.msra.mxu0 %v157
  %688 = vmatprep.subr.mxu0 0.0
  %689 = vmatpush1.msra.mxu0 %v158
  %690 = vmatprep.subr.mxu0 0.0
  %691 = vmatpush1.msra.mxu0 %v159
  %692 = vmatprep.subr.mxu0 0.0
  %693 = vmatpush1.msra.mxu0 %v160
  %694 = vmatprep.subr.mxu0 0.0
  %695 = vmatpush1.msra.mxu0 %v161
  %696 = vmatprep.subr.mxu0 0.0
  %697 = vmatpush1.msra.mxu0 %v162
  %698 = vmatprep.subr.mxu0 0.0
  %699 = vmatpush1.msra.mxu0 %v163
  %700 = vmatprep.subr.mxu0 0.0
  %701 = vmatpush1.msra.mxu0 %v164
  %702 = vmatprep.subr.mxu0 0.0
  %703 = vmatpush1.msra.mxu0 %v165
  %704 = vmatprep.subr.mxu0 0.0
  %705 = vmatpush1.msra.mxu0 %v166
  %706 = vmatprep.subr.mxu0 0.0
  %707 = vmatpush1.msra.mxu0 %v167
  %708 = vmatprep.subr.mxu0 0.0
  %709 = vmatpush1.msra.mxu0 %v168
  %710 = vmatprep.subr.mxu0 0.0
  %711 = vmatpush1.msra.mxu0 %v169
  %712 = vmatprep.subr.mxu0 0.0
  %713 = vmatpush1.msra.mxu0 %v170
  %714 = vmatprep.subr.mxu0 0.0
  %715 = vmatpush1.msra.mxu0 %v171
  %716 = vmatprep.subr.mxu0 0.0
  %717 = vmatpush1.msra.mxu0 %v172
  %718 = vmatprep.subr.mxu0 0.0
  %719 = vmatpush1.msra.mxu0 %v173
  %720 = vmatprep.subr.mxu0 0.0
  %721 = vmatpush1.msra.mxu0 %v174
  %722 = vmatprep.subr.mxu0 0.0
  %723 = vmatpush1.msra.mxu0 %v175
  %724 = vmatprep.subr.mxu0 0.0
  %725 = vmatpush1.msra.mxu0 %v176
  %726 = vmatprep.subr.mxu0 0.0
  %727 = vmatpush1.msra.mxu0 %v177
  %728 = vmatprep.subr.mxu0 0.0
  %729 = vmatpush1.msra.mxu0 %v178
  %730 = vmatprep.subr.mxu0 0.0
  %731 = vmatpush1.msra.mxu0 %v179
  %732 = vmatprep.subr.mxu0 0.0
  %733 = vmatpush1.msra.mxu0 %v180
  %734 = vmatprep.mubr.f32.mxu0 %v35
  %735 = vmatmul.mubr.f32.gmra.mrb[0].mxu0 %v34
  %v736 = vpop.f32.mrb[0].mxu0
  %v737 = vadd.f32 %v667, %v736
  %v738 = vpop.f32.mrb[0].mxu0
  %739 = vdwg.mxu0
  %740 = vmatprep.subr.mxu0 0.0
  %741 = vmatpush1.msra.mxu0 %v181
  %742 = vmatprep.subr.mxu0 0.0
  %743 = vmatpush1.msra.mxu0 %v182
  %744 = vmatprep.subr.mxu0 0.0
  %745 = vmatpush1.msra.mxu0 %v183
  %746 = vmatprep.subr.mxu0 0.0
  %747 = vmatpush1.msra.mxu0 %v184
  %748 = vmatprep.subr.mxu0 0.0
  %749 = vmatpush1.msra.mxu0 %v185
  %750 = vmatprep.subr.mxu0 0.0
  %751 = vmatpush1.msra.mxu0 %v186
  %752 = vmatprep.subr.mxu0 0.0
  %753 = vmatpush1.msra.mxu0 %v187
  %754 = vmatprep.subr.mxu0 0.0
  %755 = vmatpush1.msra.mxu0 %v188
  %756 = vmatprep.subr.mxu0 0.0
  %757 = vmatpush1.msra.mxu0 %v189
  %758 = vmatprep.subr.mxu0 0.0
  %759 = vmatpush1.msra.mxu0 %v190
  %760 = vmatprep.subr.mxu0 0.0
  %761 = vmatpush1.msra.mxu0 %v191
  %762 = vmatprep.subr.mxu0 0.0
  %763 = vmatpush1.msra.mxu0 %v192
  %764 = vmatprep.subr.mxu0 0.0
  %765 = vmatpush1.msra.mxu0 %v193
  %766 = vmatprep.subr.mxu0 0.0
  %767 = vmatpush1.msra.mxu0 %v194
  %768 = vmatprep.subr.mxu0 0.0
  %769 = vmatpush1.msra.mxu0 %v195
  %770 = vmatprep.subr.mxu0 0.0
  %771 = vmatpush1.msra.mxu0 %v196
  %772 = vmatprep.subr.mxu0 0.0
  %773 = vmatpush1.msra.mxu0 %v197
  %774 = vmatprep.subr.mxu0 0.0
  %775 = vmatpush1.msra.mxu0 %v198
  %776 = vmatprep.subr.mxu0 0.0
  %777 = vmatpush1.msra.mxu0 %v199
  %778 = vmatprep.subr.mxu0 0.0
  %779 = vmatpush1.msra.mxu0 %v200
  %780 = vmatprep.subr.mxu0 0.0
  %781 = vmatpush1.msra.mxu0 %v201
  %782 = vmatprep.subr.mxu0 0.0
  %783 = vmatpush1.msra.mxu0 %v202
  %784 = vmatprep.subr.mxu0 0.0
  %785 = vmatpush1.msra.mxu0 %v203
  %786 = vmatprep.subr.mxu0 0.0
  %787 = vmatpush1.msra.mxu0 %v204
  %788 = vmatprep.subr.mxu0 0.0
  %789 = vmatpush1.msra.mxu0 %v205
  %790 = vmatprep.subr.mxu0 0.0
  %791 = vmatpush1.msra.mxu0 %v206
  %792 = vmatprep.subr.mxu0 0.0
  %793 = vmatpush1.msra.mxu0 %v207
  %794 = vmatprep.subr.mxu0 0.0
  %795 = vmatpush1.msra.mxu0 %v208
  %796 = vmatprep.subr.mxu0 0.0
  %797 = vmatpush1.msra.mxu0 %v209
  %798 = vmatprep.subr.mxu0 0.0
  %799 = vmatpush1.msra.mxu0 %v210
  %800 = vmatprep.subr.mxu0 0.0
  %801 = vmatpush1.msra.mxu0 %v211
  %802 = vmatprep.subr.mxu0 0.0
  %803 = vmatpush1.msra.mxu0 %v212
  %804 = vmatprep.mubr.f32.mxu0 %v37
  %805 = vmatmul.mubr.f32.gmra.mrb[0].mxu0 %v36
  %v806 = vpop.f32.mrb[0].mxu0
  %v807 = vadd.f32 %v737, %v806
  %v808 = vpop.f32.mrb[0].mxu0
  %809 = vdwg.mxu0
  %810 = vmatprep.subr.mxu0 0.0
  %811 = vmatpush1.msra.mxu0 %v213
  %812 = vmatprep.subr.mxu0 0.0
  %813 = vmatpush1.msra.mxu0 %v214
  %814 = vmatprep.subr.mxu0 0.0
  %815 = vmatpush1.msra.mxu0 %v215
  %816 = vmatprep.subr.mxu0 0.0
  %817 = vmatpush1.msra.mxu0 %v216
  %818 = vmatprep.subr.mxu0 0.0
  %819 = vmatpush1.msra.mxu0 %v217
  %820 = vmatprep.subr.mxu0 0.0
  %821 = vmatpush1.msra.mxu0 %v218
  %822 = vmatprep.subr.mxu0 0.0
  %823 = vmatpush1.msra.mxu0 %v219
  %824 = vmatprep.subr.mxu0 0.0
  %825 = vmatpush1.msra.mxu0 %v220
  %826 = vmatprep.subr.mxu0 0.0
  %827 = vmatpush1.msra.mxu0 %v221
  %828 = vmatprep.subr.mxu0 0.0
  %829 = vmatpush1.msra.mxu0 %v222
  %830 = vmatprep.subr.mxu0 0.0
  %831 = vmatpush1.msra.mxu0 %v223
  %832 = vmatprep.subr.mxu0 0.0
  %833 = vmatpush1.msra.mxu0 %v224
  %834 = vmatprep.subr.mxu0 0.0
  %835 = vmatpush1.msra.mxu0 %v225
  %836 = vmatprep.subr.mxu0 0.0
  %837 = vmatpush1.msra.mxu0 %v226
  %838 = vmatprep.subr.mxu0 0.0
  %839 = vmatpush1.msra.mxu0 %v227
  %840 = vmatprep.subr.mxu0 0.0
  %841 = vmatpush1.msra.mxu0 %v228
  %842 = vmatprep.subr.mxu0 0.0
  %843 = vmatpush1.msra.mxu0 %v229
  %844 = vmatprep.subr.mxu0 0.0
  %845 = vmatpush1.msra.mxu0 %v230
  %846 = vmatprep.subr.mxu0 0.0
  %847 = vmatpush1.msra.mxu0 %v231
  %848 = vmatprep.subr.mxu0 0.0
  %849 = vmatpush1.msra.mxu0 %v232
  %850 = vmatprep.subr.mxu0 0.0
  %851 = vmatpush1.msra.mxu0 %v233
  %852 = vmatprep.subr.mxu0 0.0
  %853 = vmatpush1.msra.mxu0 %v234
  %854 = vmatprep.subr.mxu0 0.0
  %855 = vmatpush1.msra.mxu0 %v235
  %856 = vmatprep.subr.mxu0 0.0
  %857 = vmatpush1.msra.mxu0 %v236
  %858 = vmatprep.subr.mxu0 0.0
  %859 = vmatpush1.msra.mxu0 %v237
  %860 = vmatprep.subr.mxu0 0.0
  %861 = vmatpush1.msra.mxu0 %v238
  %862 = vmatprep.subr.mxu0 0.0
  %863 = vmatpush1.msra.mxu0 %v239
  %864 = vmatprep.subr.mxu0 0.0
  %865 = vmatpush1.msra.mxu0 %v240
  %866 = vmatprep.subr.mxu0 0.0
  %867 = vmatpush1.msra.mxu0 %v241
  %868 = vmatprep.subr.mxu0 0.0
  %869 = vmatpush1.msra.mxu0 %v242
  %870 = vmatprep.subr.mxu0 0.0
  %871 = vmatpush1.msra.mxu0 %v243
  %872 = vmatprep.subr.mxu0 0.0
  %873 = vmatpush1.msra.mxu0 %v244
  %874 = vmatprep.mubr.f32.mxu0 %v39
  %875 = vmatmul.mubr.f32.gmra.mrb[0].mxu0 %v38
  %v876 = vpop.f32.mrb[0].mxu0
  %v877 = vadd.f32 %v807, %v876
  %v878 = vpop.f32.mrb[0].mxu0
  %879 = vdwg.mxu0
  %880 = vmatprep.subr.mxu0 0.0
  %881 = vmatpush1.msra.mxu0 %v245
  %882 = vmatprep.subr.mxu0 0.0
  %883 = vmatpush1.msra.mxu0 %v246
  %884 = vmatprep.subr.mxu0 0.0
  %885 = vmatpush1.msra.mxu0 %v247
  %886 = vmatprep.subr.mxu0 0.0
  %887 = vmatpush1.msra.mxu0 %v248
  %888 = vmatprep.subr.mxu0 0.0
  %889 = vmatpush1.msra.mxu0 %v249
  %890 = vmatprep.subr.mxu0 0.0
  %891 = vmatpush1.msra.mxu0 %v250
  %892 = vmatprep.subr.mxu0 0.0
  %893 = vmatpush1.msra.mxu0 %v251
  %894 = vmatprep.subr.mxu0 0.0
  %895 = vmatpush1.msra.mxu0 %v252
  %896 = vmatprep.subr.mxu0 0.0
  %897 = vmatpush1.msra.mxu0 %v253
  %898 = vmatprep.subr.mxu0 0.0
  %899 = vmatpush1.msra.mxu0 %v254
  %900 = vmatprep.subr.mxu0 0.0
  %901 = vmatpush1.msra.mxu0 %v255
  %902 = vmatprep.subr.mxu0 0.0
  %903 = vmatpush1.msra.mxu0 %v256
  %904 = vmatprep.subr.mxu0 0.0
  %905 = vmatpush1.msra.mxu0 %v257
  %906 = vmatprep.subr.mxu0 0.0
  %907 = vmatpush1.msra.mxu0 %v258
  %908 = vmatprep.subr.mxu0 0.0
  %909 = vmatpush1.msra.mxu0 %v259
  %910 = vmatprep.subr.mxu0 0.0
  %911 = vmatpush1.msra.mxu0 %v260
  %912 = vmatprep.subr.mxu0 0.0
  %913 = vmatpush1.msra.mxu0 %v261
  %914 = vmatprep.subr.mxu0 0.0
  %915 = vmatpush1.msra.mxu0 %v262
  %916 = vmatprep.subr.mxu0 0.0
  %917 = vmatpush1.msra.mxu0 %v263
  %918 = vmatprep.subr.mxu0 0.0
  %919 = vmatpush1.msra.mxu0 %v264
  %920 = vmatprep.subr.mxu0 0.0
  %921 = vmatpush1.msra.mxu0 %v265
  %922 = vmatprep.subr.mxu0 0.0
  %923 = vmatpush1.msra.mxu0 %v266
  %924 = vmatprep.subr.mxu0 0.0
  %925 = vmatpush1.msra.mxu0 %v267
  %926 = vmatprep.subr.mxu0 0.0
  %927 = vmatpush1.msra.mxu0 %v268
  %928 = vmatprep.subr.mxu0 0.0
  %929 = vmatpush1.msra.mxu0 %v269
  %930 = vmatprep.subr.mxu0 0.0
  %931 = vmatpush1.msra.mxu0 %v270
  %932 = vmatprep.subr.mxu0 0.0
  %933 = vmatpush1.msra.mxu0 %v271
  %934 = vmatprep.subr.mxu0 0.0
  %935 = vmatpush1.msra.mxu0 %v272
  %936 = vmatprep.subr.mxu0 0.0
  %937 = vmatpush1.msra.mxu0 %v273
  %938 = vmatprep.subr.mxu0 0.0
  %939 = vmatpush1.msra.mxu0 %v274
  %940 = vmatprep.subr.mxu0 0.0
  %941 = vmatpush1.msra.mxu0 %v275
  %942 = vmatprep.subr.mxu0 0.0
  %943 = vmatpush1.msra.mxu0 %v276
  %944 = vmatprep.mubr.f32.mxu0 %v41
  %945 = vmatmul.mubr.f32.gmra.mrb[0].mxu0 %v40
  %v946 = vpop.f32.mrb[0].mxu0
  %v947 = vadd.f32 %v877, %v946
  %v948 = vpop.f32.mrb[0].mxu0
  %949 = vdwg.mxu0
  %950 = vmatprep.subr.mxu0 0.0
  %951 = vmatpush1.msra.mxu0 %v277
  %952 = vmatprep.subr.mxu0 0.0
  %953 = vmatpush1.msra.mxu0 %v278
  %954 = vmatprep.subr.mxu0 0.0
  %955 = vmatpush1.msra.mxu0 %v279
  %956 = vmatprep.subr.mxu0 0.0
  %957 = vmatpush1.msra.mxu0 %v280
  %958 = vmatprep.subr.mxu0 0.0
  %959 = vmatpush1.msra.mxu0 %v281
  %960 = vmatprep.subr.mxu0 0.0
  %961 = vmatpush1.msra.mxu0 %v282
  %962 = vmatprep.subr.mxu0 0.0
  %963 = vmatpush1.msra.mxu0 %v283
  %964 = vmatprep.subr.mxu0 0.0
  %965 = vmatpush1.msra.mxu0 %v284
  %966 = vmatprep.subr.mxu0 0.0
  %967 = vmatpush1.msra.mxu0 %v285
  %968 = vmatprep.subr.mxu0 0.0
  %969 = vmatpush1.msra.mxu0 %v286
  %970 = vmatprep.subr.mxu0 0.0
  %971 = vmatpush1.msra.mxu0 %v287
  %972 = vmatprep.subr.mxu0 0.0
  %973 = vmatpush1.msra.mxu0 %v288
  %974 = vmatprep.subr.mxu0 0.0
  %975 = vmatpush1.msra.mxu0 %v289
  %976 = vmatprep.subr.mxu0 0.0
  %977 = vmatpush1.msra.mxu0 %v290
  %978 = vmatprep.subr.mxu0 0.0
  %979 = vmatpush1.msra.mxu0 %v291
  %980 = vmatprep.subr.mxu0 0.0
  %981 = vmatpush1.msra.mxu0 %v292
  %982 = vmatprep.subr.mxu0 0.0
  %983 = vmatpush1.msra.mxu0 %v293
  %984 = vmatprep.subr.mxu0 0.0
  %985 = vmatpush1.msra.mxu0 %v294
  %986 = vmatprep.subr.mxu0 0.0
  %987 = vmatpush1.msra.mxu0 %v295
  %988 = vmatprep.subr.mxu0 0.0
  %989 = vmatpush1.msra.mxu0 %v296
  %990 = vmatprep.subr.mxu0 0.0
  %991 = vmatpush1.msra.mxu0 %v297
  %992 = vmatprep.subr.mxu0 0.0
  %993 = vmatpush1.msra.mxu0 %v298
  %994 = vmatprep.subr.mxu0 0.0
  %995 = vmatpush1.msra.mxu0 %v299
  %996 = vmatprep.subr.mxu0 0.0
  %997 = vmatpush1.msra.mxu0 %v300
  %998 = vmatprep.subr.mxu0 0.0
  %999 = vmatpush1.msra.mxu0 %v301
  %1000 = vmatprep.subr.mxu0 0.0
  %1001 = vmatpush1.msra.mxu0 %v302
  %1002 = vmatprep.subr.mxu0 0.0
  %1003 = vmatpush1.msra.mxu0 %v303
  %1004 = vmatprep.subr.mxu0 0.0
  %1005 = vmatpush1.msra.mxu0 %v304
  %1006 = vmatprep.subr.mxu0 0.0
  %1007 = vmatpush1.msra.mxu0 %v305
  %1008 = vmatprep.subr.mxu0 0.0
  %1009 = vmatpush1.msra.mxu0 %v306
  %1010 = vmatprep.subr.mxu0 0.0
  %1011 = vmatpush1.msra.mxu0 %v307
  %1012 = vmatprep.subr.mxu0 0.0
  %1013 = vmatpush1.msra.mxu0 %v308
  %1014 = vmatprep.mubr.f32.mxu0 %v43
  %1015 = vmatmul.mubr.f32.gmra.mrb[0].mxu0 %v42
  %v1016 = vpop.f32.mrb[0].mxu0
  %v1017 = vadd.f32 %v947, %v1016
  %v1018 = vpop.f32.mrb[0].mxu0
  %1019 = vdwg.mxu0
  %1020 = vmatprep.subr.mxu0 0.0
  %1021 = vmatpush1.msra.mxu0 %v309
  %1022 = vmatprep.subr.mxu0 0.0
  %1023 = vmatpush1.msra.mxu0 %v310
  %1024 = vmatprep.subr.mxu0 0.0
  %1025 = vmatpush1.msra.mxu0 %v311
  %1026 = vmatprep.subr.mxu0 0.0
  %1027 = vmatpush1.msra.mxu0 %v312
  %1028 = vmatprep.subr.mxu0 0.0
  %1029 = vmatpush1.msra.mxu0 %v313
  %1030 = vmatprep.subr.mxu0 0.0
  %1031 = vmatpush1.msra.mxu0 %v314
  %1032 = vmatprep.subr.mxu0 0.0
  %1033 = vmatpush1.msra.mxu0 %v315
  %1034 = vmatprep.subr.mxu0 0.0
  %1035 = vmatpush1.msra.mxu0 %v316
  %1036 = vmatprep.subr.mxu0 0.0
  %1037 = vmatpush1.msra.mxu0 %v317
  %1038 = vmatprep.subr.mxu0 0.0
  %1039 = vmatpush1.msra.mxu0 %v318
  %1040 = vmatprep.subr.mxu0 0.0
  %1041 = vmatpush1.msra.mxu0 %v319
  %1042 = vmatprep.subr.mxu0 0.0
  %1043 = vmatpush1.msra.mxu0 %v320
  %1044 = vmatprep.subr.mxu0 0.0
  %1045 = vmatpush1.msra.mxu0 %v321
  %1046 = vmatprep.subr.mxu0 0.0
  %1047 = vmatpush1.msra.mxu0 %v322
  %1048 = vmatprep.subr.mxu0 0.0
  %1049 = vmatpush1.msra.mxu0 %v323
  %1050 = vmatprep.subr.mxu0 0.0
  %1051 = vmatpush1.msra.mxu0 %v324
  %1052 = vmatprep.subr.mxu0 0.0
  %1053 = vmatpush1.msra.mxu0 %v325
  %1054 = vmatprep.subr.mxu0 0.0
  %1055 = vmatpush1.msra.mxu0 %v326
  %1056 = vmatprep.subr.mxu0 0.0
  %1057 = vmatpush1.msra.mxu0 %v327
  %1058 = vmatprep.subr.mxu0 0.0
  %1059 = vmatpush1.msra.mxu0 %v328
  %1060 = vmatprep.subr.mxu0 0.0
  %1061 = vmatpush1.msra.mxu0 %v329
  %1062 = vmatprep.subr.mxu0 0.0
  %1063 = vmatpush1.msra.mxu0 %v330
  %1064 = vmatprep.subr.mxu0 0.0
  %1065 = vmatpush1.msra.mxu0 %v331
  %1066 = vmatprep.subr.mxu0 0.0
  %1067 = vmatpush1.msra.mxu0 %v332
  %1068 = vmatprep.subr.mxu0 0.0
  %1069 = vmatpush1.msra.mxu0 %v333
  %1070 = vmatprep.subr.mxu0 0.0
  %1071 = vmatpush1.msra.mxu0 %v334
  %1072 = vmatprep.subr.mxu0 0.0
  %1073 = vmatpush1.msra.mxu0 %v335
  %1074 = vmatprep.subr.mxu0 0.0
  %1075 = vmatpush1.msra.mxu0 %v336
  %1076 = vmatprep.subr.mxu0 0.0
  %1077 = vmatpush1.msra.mxu0 %v337
  %1078 = vmatprep.subr.mxu0 0.0
  %1079 = vmatpush1.msra.mxu0 %v338
  %1080 = vmatprep.subr.mxu0 0.0
  %1081 = vmatpush1.msra.mxu0 %v339
  %1082 = vmatprep.subr.mxu0 0.0
  %1083 = vmatpush1.msra.mxu0 %v340
  %1084 = vmatprep.mubr.f32.mxu0 %v45
  %1085 = vmatmul.mubr.f32.gmra.mrb[0].mxu0 %v44
  %v1086 = vpop.f32.mrb[0].mxu0
  %v1087 = vadd.f32 %v1017, %v1086
  %v1088 = vpop.f32.mrb[0].mxu0
  %1089 = vdwg.mxu0
  %1090 = vmatprep.subr.mxu0 0.0
  %1091 = vmatpush1.msra.mxu0 %v341
  %1092 = vmatprep.subr.mxu0 0.0
  %1093 = vmatpush1.msra.mxu0 %v342
  %1094 = vmatprep.subr.mxu0 0.0
  %1095 = vmatpush1.msra.mxu0 %v343
  %1096 = vmatprep.subr.mxu0 0.0
  %1097 = vmatpush1.msra.mxu0 %v344
  %1098 = vmatprep.subr.mxu0 0.0
  %1099 = vmatpush1.msra.mxu0 %v345
  %1100 = vmatprep.subr.mxu0 0.0
  %1101 = vmatpush1.msra.mxu0 %v346
  %1102 = vmatprep.subr.mxu0 0.0
  %1103 = vmatpush1.msra.mxu0 %v347
  %1104 = vmatprep.subr.mxu0 0.0
  %1105 = vmatpush1.msra.mxu0 %v348
  %1106 = vmatprep.subr.mxu0 0.0
  %1107 = vmatpush1.msra.mxu0 %v349
  %1108 = vmatprep.subr.mxu0 0.0
  %1109 = vmatpush1.msra.mxu0 %v350
  %1110 = vmatprep.subr.mxu0 0.0
  %1111 = vmatpush1.msra.mxu0 %v351
  %1112 = vmatprep.subr.mxu0 0.0
  %1113 = vmatpush1.msra.mxu0 %v352
  %1114 = vmatprep.subr.mxu0 0.0
  %1115 = vmatpush1.msra.mxu0 %v353
  %1116 = vmatprep.subr.mxu0 0.0
  %1117 = vmatpush1.msra.mxu0 %v354
  %1118 = vmatprep.subr.mxu0 0.0
  %1119 = vmatpush1.msra.mxu0 %v355
  %1120 = vmatprep.subr.mxu0 0.0
  %1121 = vmatpush1.msra.mxu0 %v356
  %1122 = vmatprep.subr.mxu0 0.0
  %1123 = vmatpush1.msra.mxu0 %v357
  %1124 = vmatprep.subr.mxu0 0.0
  %1125 = vmatpush1.msra.mxu0 %v358
  %1126 = vmatprep.subr.mxu0 0.0
  %1127 = vmatpush1.msra.mxu0 %v359
  %1128 = vmatprep.subr.mxu0 0.0
  %1129 = vmatpush1.msra.mxu0 %v360
  %1130 = vmatprep.subr.mxu0 0.0
  %1131 = vmatpush1.msra.mxu0 %v361
  %1132 = vmatprep.subr.mxu0 0.0
  %1133 = vmatpush1.msra.mxu0 %v362
  %1134 = vmatprep.subr.mxu0 0.0
  %1135 = vmatpush1.msra.mxu0 %v363
  %1136 = vmatprep.subr.mxu0 0.0
  %1137 = vmatpush1.msra.mxu0 %v364
  %1138 = vmatprep.subr.mxu0 0.0
  %1139 = vmatpush1.msra.mxu0 %v365
  %1140 = vmatprep.subr.mxu0 0.0
  %1141 = vmatpush1.msra.mxu0 %v366
  %1142 = vmatprep.subr.mxu0 0.0
  %1143 = vmatpush1.msra.mxu0 %v367
  %1144 = vmatprep.subr.mxu0 0.0
  %1145 = vmatpush1.msra.mxu0 %v368
  %1146 = vmatprep.subr.mxu0 0.0
  %1147 = vmatpush1.msra.mxu0 %v369
  %1148 = vmatprep.subr.mxu0 0.0
  %1149 = vmatpush1.msra.mxu0 %v370
  %1150 = vmatprep.subr.mxu0 0.0
  %1151 = vmatpush1.msra.mxu0 %v371
  %1152 = vmatprep.subr.mxu0 0.0
  %1153 = vmatpush1.msra.mxu0 %v372
  %1154 = vmatprep.mubr.f32.mxu0 %v47
  %1155 = vmatmul.mubr.f32.gmra.mrb[0].mxu0 %v46
  %v1156 = vpop.f32.mrb[0].mxu0
  %v1157 = vadd.f32 %v1087, %v1156
  %v1158 = vpop.f32.mrb[0].mxu0
  %1159 = vdwg.mxu0
  %1160 = vmatprep.subr.mxu0 0.0
  %1161 = vmatpush1.msra.mxu0 %v373
  %1162 = vmatprep.subr.mxu0 0.0
  %1163 = vmatpush1.msra.mxu0 %v374
  %1164 = vmatprep.subr.mxu0 0.0
  %1165 = vmatpush1.msra.mxu0 %v375
  %1166 = vmatprep.subr.mxu0 0.0
  %1167 = vmatpush1.msra.mxu0 %v376
  %1168 = vmatprep.subr.mxu0 0.0
  %1169 = vmatpush1.msra.mxu0 %v377
  %1170 = vmatprep.subr.mxu0 0.0
  %1171 = vmatpush1.msra.mxu0 %v378
  %1172 = vmatprep.subr.mxu0 0.0
  %1173 = vmatpush1.msra.mxu0 %v379
  %1174 = vmatprep.subr.mxu0 0.0
  %1175 = vmatpush1.msra.mxu0 %v380
  %1176 = vmatprep.subr.mxu0 0.0
  %1177 = vmatpush1.msra.mxu0 %v381
  %1178 = vmatprep.subr.mxu0 0.0
  %1179 = vmatpush1.msra.mxu0 %v382
  %1180 = vmatprep.subr.mxu0 0.0
  %1181 = vmatpush1.msra.mxu0 %v383
  %1182 = vmatprep.subr.mxu0 0.0
  %1183 = vmatpush1.msra.mxu0 %v384
  %1184 = vmatprep.subr.mxu0 0.0
  %1185 = vmatpush1.msra.mxu0 %v385
  %1186 = vmatprep.subr.mxu0 0.0
  %1187 = vmatpush1.msra.mxu0 %v386
  %1188 = vmatprep.subr.mxu0 0.0
  %1189 = vmatpush1.msra.mxu0 %v387
  %1190 = vmatprep.subr.mxu0 0.0
  %1191 = vmatpush1.msra.mxu0 %v388
  %1192 = vmatprep.subr.mxu0 0.0
  %1193 = vmatpush1.msra.mxu0 %v389
  %1194 = vmatprep.subr.mxu0 0.0
  %1195 = vmatpush1.msra.mxu0 %v390
  %1196 = vmatprep.subr.mxu0 0.0
  %1197 = vmatpush1.msra.mxu0 %v391
  %1198 = vmatprep.subr.mxu0 0.0
  %1199 = vmatpush1.msra.mxu0 %v392
  %1200 = vmatprep.subr.mxu0 0.0
  %1201 = vmatpush1.msra.mxu0 %v393
  %1202 = vmatprep.subr.mxu0 0.0
  %1203 = vmatpush1.msra.mxu0 %v394
  %1204 = vmatprep.subr.mxu0 0.0
  %1205 = vmatpush1.msra.mxu0 %v395
  %1206 = vmatprep.subr.mxu0 0.0
  %1207 = vmatpush1.msra.mxu0 %v396
  %1208 = vmatprep.subr.mxu0 0.0
  %1209 = vmatpush1.msra.mxu0 %v397
  %1210 = vmatprep.subr.mxu0 0.0
  %1211 = vmatpush1.msra.mxu0 %v398
  %1212 = vmatprep.subr.mxu0 0.0
  %1213 = vmatpush1.msra.mxu0 %v399
  %1214 = vmatprep.subr.mxu0 0.0
  %1215 = vmatpush1.msra.mxu0 %v400
  %1216 = vmatprep.subr.mxu0 0.0
  %1217 = vmatpush1.msra.mxu0 %v401
  %1218 = vmatprep.subr.mxu0 0.0
  %1219 = vmatpush1.msra.mxu0 %v402
  %1220 = vmatprep.subr.mxu0 0.0
  %1221 = vmatpush1.msra.mxu0 %v403
  %1222 = vmatprep.subr.mxu0 0.0
  %1223 = vmatpush1.msra.mxu0 %v404
  %1224 = vmatprep.mubr.f32.mxu0 %v49
  %1225 = vmatmul.mubr.f32.gmra.mrb[0].mxu0 %v48
  %v1226 = vpop.f32.mrb[0].mxu0
  %v1227 = vadd.f32 %v1157, %v1226
  %v1228 = vpop.f32.mrb[0].mxu0
  %1229 = vdwg.mxu0
  %1230 = vmatprep.subr.mxu0 0.0
  %1231 = vmatpush1.msra.mxu0 %v405
  %1232 = vmatprep.subr.mxu0 0.0
  %1233 = vmatpush1.msra.mxu0 %v406
  %1234 = vmatprep.subr.mxu0 0.0
  %1235 = vmatpush1.msra.mxu0 %v407
  %1236 = vmatprep.subr.mxu0 0.0
  %1237 = vmatpush1.msra.mxu0 %v408
  %1238 = vmatprep.subr.mxu0 0.0
  %1239 = vmatpush1.msra.mxu0 %v409
  %1240 = vmatprep.subr.mxu0 0.0
  %1241 = vmatpush1.msra.mxu0 %v410
  %1242 = vmatprep.subr.mxu0 0.0
  %1243 = vmatpush1.msra.mxu0 %v411
  %1244 = vmatprep.subr.mxu0 0.0
  %1245 = vmatpush1.msra.mxu0 %v412
  %1246 = vmatprep.subr.mxu0 0.0
  %1247 = vmatpush1.msra.mxu0 %v413
  %1248 = vmatprep.subr.mxu0 0.0
  %1249 = vmatpush1.msra.mxu0 %v414
  %1250 = vmatprep.subr.mxu0 0.0
  %1251 = vmatpush1.msra.mxu0 %v415
  %1252 = vmatprep.subr.mxu0 0.0
  %1253 = vmatpush1.msra.mxu0 %v416
  %1254 = vmatprep.subr.mxu0 0.0
  %1255 = vmatpush1.msra.mxu0 %v417
  %1256 = vmatprep.subr.mxu0 0.0
  %1257 = vmatpush1.msra.mxu0 %v418
  %1258 = vmatprep.subr.mxu0 0.0
  %1259 = vmatpush1.msra.mxu0 %v419
  %1260 = vmatprep.subr.mxu0 0.0
  %1261 = vmatpush1.msra.mxu0 %v420
  %1262 = vmatprep.subr.mxu0 0.0
  %1263 = vmatpush1.msra.mxu0 %v421
  %1264 = vmatprep.subr.mxu0 0.0
  %1265 = vmatpush1.msra.mxu0 %v422
  %1266 = vmatprep.subr.mxu0 0.0
  %1267 = vmatpush1.msra.mxu0 %v423
  %1268 = vmatprep.subr.mxu0 0.0
  %1269 = vmatpush1.msra.mxu0 %v424
  %1270 = vmatprep.subr.mxu0 0.0
  %1271 = vmatpush1.msra.mxu0 %v425
  %1272 = vmatprep.subr.mxu0 0.0
  %1273 = vmatpush1.msra.mxu0 %v426
  %1274 = vmatprep.subr.mxu0 0.0
  %1275 = vmatpush1.msra.mxu0 %v427
  %1276 = vmatprep.subr.mxu0 0.0
  %1277 = vmatpush1.msra.mxu0 %v428
  %1278 = vmatprep.subr.mxu0 0.0
  %1279 = vmatpush1.msra.mxu0 %v429
  %1280 = vmatprep.subr.mxu0 0.0
  %1281 = vmatpush1.msra.mxu0 %v430
  %1282 = vmatprep.subr.mxu0 0.0
  %1283 = vmatpush1.msra.mxu0 %v431
  %1284 = vmatprep.subr.mxu0 0.0
  %1285 = vmatpush1.msra.mxu0 %v432
  %1286 = vmatprep.subr.mxu0 0.0
  %1287 = vmatpush1.msra.mxu0 %v433
  %1288 = vmatprep.subr.mxu0 0.0
  %1289 = vmatpush1.msra.mxu0 %v434
  %1290 = vmatprep.subr.mxu0 0.0
  %1291 = vmatpush1.msra.mxu0 %v435
  %1292 = vmatprep.subr.mxu0 0.0
  %1293 = vmatpush1.msra.mxu0 %v436
  %1294 = vmatprep.mubr.f32.mxu0 %v51
  %1295 = vmatmul.mubr.f32.gmra.mrb[0].mxu0 %v50
  %v1296 = vpop.f32.mrb[0].mxu0
  %v1297 = vadd.f32 %v1227, %v1296
  %v1298 = vpop.f32.mrb[0].mxu0
  %1299 = vdwg.mxu0
  %1300 = vmatprep.subr.mxu0 0.0
  %1301 = vmatpush1.msra.mxu0 %v437
  %1302 = vmatprep.subr.mxu0 0.0
  %1303 = vmatpush1.msra.mxu0 %v438
  %1304 = vmatprep.subr.mxu0 0.0
  %1305 = vmatpush1.msra.mxu0 %v439
  %1306 = vmatprep.subr.mxu0 0.0
  %1307 = vmatpush1.msra.mxu0 %v440
  %1308 = vmatprep.subr.mxu0 0.0
  %1309 = vmatpush1.msra.mxu0 %v441
  %1310 = vmatprep.subr.mxu0 0.0
  %1311 = vmatpush1.msra.mxu0 %v442
  %1312 = vmatprep.subr.mxu0 0.0
  %1313 = vmatpush1.msra.mxu0 %v443
  %1314 = vmatprep.subr.mxu0 0.0
  %1315 = vmatpush1.msra.mxu0 %v444
  %1316 = vmatprep.subr.mxu0 0.0
  %1317 = vmatpush1.msra.mxu0 %v445
  %1318 = vmatprep.subr.mxu0 0.0
  %1319 = vmatpush1.msra.mxu0 %v446
  %1320 = vmatprep.subr.mxu0 0.0
  %1321 = vmatpush1.msra.mxu0 %v447
  %1322 = vmatprep.subr.mxu0 0.0
  %1323 = vmatpush1.msra.mxu0 %v448
  %1324 = vmatprep.subr.mxu0 0.0
  %1325 = vmatpush1.msra.mxu0 %v449
  %1326 = vmatprep.subr.mxu0 0.0
  %1327 = vmatpush1.msra.mxu0 %v450
  %1328 = vmatprep.subr.mxu0 0.0
  %1329 = vmatpush1.msra.mxu0 %v451
  %1330 = vmatprep.subr.mxu0 0.0
  %1331 = vmatpush1.msra.mxu0 %v452
  %1332 = vmatprep.subr.mxu0 0.0
  %1333 = vmatpush1.msra.mxu0 0.0
  %1334 = vmatprep.subr.mxu0 0.0
  %1335 = vmatpush1.msra.mxu0 0.0
  %1336 = vmatprep.subr.mxu0 0.0
  %1337 = vmatpush1.msra.mxu0 0.0
  %1338 = vmatprep.subr.mxu0 0.0
  %1339 = vmatpush1.msra.mxu0 0.0
  %1340 = vmatprep.subr.mxu0 0.0
  %1341 = vmatpush1.msra.mxu0 0.0
  %1342 = vmatprep.subr.mxu0 0.0
  %1343 = vmatpush1.msra.mxu0 0.0
  %1344 = vmatprep.subr.mxu0 0.0
  %1345 = vmatpush1.msra.mxu0 0.0
  %1346 = vmatprep.subr.mxu0 0.0
  %1347 = vmatpush1.msra.mxu0 0.0
  %1348 = vmatprep.subr.mxu0 0.0
  %1349 = vmatpush1.msra.mxu0 0.0
  %1350 = vmatprep.subr.mxu0 0.0
  %1351 = vmatpush1.msra.mxu0 0.0
  %1352 = vmatprep.subr.mxu0 0.0
  %1353 = vmatpush1.msra.mxu0 0.0
  %1354 = vmatprep.subr.mxu0 0.0
  %1355 = vmatpush1.msra.mxu0 0.0
  %1356 = vmatprep.subr.mxu0 0.0
  %1357 = vmatpush1.msra.mxu0 0.0
  %1358 = vmatprep.subr.mxu0 0.0
  %1359 = vmatpush1.msra.mxu0 0.0
  %1360 = vmatprep.subr.mxu0 0.0
  %1361 = vmatpush1.msra.mxu0 0.0
  %1362 = vmatprep.subr.mxu0 0.0
  %1363 = vmatpush1.msra.mxu0 0.0
  %1364 = vmatprep.mubr.f32.mxu0 0.0
  %1365 = vmatmul.mubr.f32.gmra.mrb[0].mxu0 %v52
  %v1366 = vpop.f32.mrb[0].mxu0
  %v1367 = vadd.f32 %v1297, %v1366
  %v1368 = vpop.f32.mrb[0].mxu0
  %1369 = vdwg.mxu0
  %v1370 = vmax.f32 %v1367, 0.0
  %1371 = vst [vmem:[%s8] sm:$0xff] %v1370
  %v1372 = vld [vmem:[%s3] sm:$0xff]
  %v1373 = vld [vmem:[%s3 + $0x8] sm:$0xff]
  %v1374 = vld [vmem:[%s3 + $0x10] sm:$0xff]
  %v1375 = vld [vmem:[%s3 + $0x18] sm:$0xff]
  %v1376 = vld [vmem:[%s3 + $0x20] sm:$0xff]
  %v1377 = vld [vmem:[%s3 + $0x28] sm:$0xff]
  %v1378 = vld [vmem:[%s3 + $0x30] sm:$0xff]
  %v1379 = vld [vmem:[%s3 + $0x38] sm:$0xff]
  %v1380 = vld [vmem:[%s3 + $0x40] sm:$0xff]
  %v1381 = vld [vmem:[%s3 + $0x48] sm:$0xff]
  %v1382 = vld [vmem:[%s3 + $0x50] sm:$0xff]
  %v1383 = vld [vmem:[%s3 + $0x58] sm:$0xff]
  %v1384 = vld [vmem:[%s3 + $0x60] sm:$0xff]
  %v1385 = vld [vmem:[%s3 + $0x68] sm:$0xff]
  %v1386 = vld [vmem:[%s3 + $0x70] sm:$0xff]
  %v1387 = vld [vmem:[%s3 + $0x78] sm:$0xff]
  %v1388 = vld [vmem:[%s4] sm:$0x1]
  %v1390 = vlaneseq
  %v1391 = vshrl.u32 %v1390, 7
  %v1392 = vsub.s32 0, %v1391
  %v1393 = vrot.slane %v1388, %v1392
  %1395 = vmatprep.subr.mxu0 0.0
  %1396 = vmatpush1.msra.mxu0 %v1372
  %1397 = vmatprep.subr.mxu0 0.0
  %1398 = vmatpush1.msra.mxu0 %v1373
  %1399 = vmatprep.subr.mxu0 0.0
  %1400 = vmatpush1.msra.mxu0 %v1374
  %1401 = vmatprep.subr.mxu0 0.0
  %1402 = vmatpush1.msra.mxu0 %v1375
  %1403 = vmatprep.subr.mxu0 0.0
  %1404 = vmatpush1.msra.mxu0 %v1376
  %1405 = vmatprep.subr.mxu0 0.0
  %1406 = vmatpush1.msra.mxu0 %v1377
  %1407 = vmatprep.subr.mxu0 0.0
  %1408 = vmatpush1.msra.mxu0 %v1378
  %1409 = vmatprep.subr.mxu0 0.0
  %1410 = vmatpush1.msra.mxu0 %v1379
  %1411 = vmatprep.subr.mxu0 0.0
  %1412 = vmatpush1.msra.mxu0 %v1380
  %1413 = vmatprep.subr.mxu0 0.0
  %1414 = vmatpush1.msra.mxu0 %v1381
  %1415 = vmatprep.subr.mxu0 0.0
  %1416 = vmatpush1.msra.mxu0 %v1382
  %1417 = vmatprep.subr.mxu0 0.0
  %1418 = vmatpush1.msra.mxu0 %v1383
  %1419 = vmatprep.subr.mxu0 0.0
  %1420 = vmatpush1.msra.mxu0 %v1384
  %1421 = vmatprep.subr.mxu0 0.0
  %1422 = vmatpush1.msra.mxu0 %v1385
  %1423 = vmatprep.subr.mxu0 0.0
  %1424 = vmatpush1.msra.mxu0 %v1386
  %1425 = vmatprep.subr.mxu0 0.0
  %1426 = vmatpush1.msra.mxu0 %v1387
  %1427 = vmatprep.subr.mxu0 0.0
  %1428 = vmatpush1.msra.mxu0 0.0
  %1429 = vmatprep.subr.mxu0 0.0
  %1430 = vmatpush1.msra.mxu0 0.0
  %1431 = vmatprep.subr.mxu0 0.0
  %1432 = vmatpush1.msra.mxu0 0.0
  %1433 = vmatprep.subr.mxu0 0.0
  %1434 = vmatpush1.msra.mxu0 0.0
  %1435 = vmatprep.subr.mxu0 0.0
  %1436 = vmatpush1.msra.mxu0 0.0
  %1437 = vmatprep.subr.mxu0 0.0
  %1438 = vmatpush1.msra.mxu0 0.0
  %1439 = vmatprep.subr.mxu0 0.0
  %1440 = vmatpush1.msra.mxu0 0.0
  %1441 = vmatprep.subr.mxu0 0.0
  %1442 = vmatpush1.msra.mxu0 0.0
  %1443 = vmatprep.subr.mxu0 0.0
  %1444 = vmatpush1.msra.mxu0 0.0
  %1445 = vmatprep.subr.mxu0 0.0
  %1446 = vmatpush1.msra.mxu0 0.0
  %1447 = vmatprep.subr.mxu0 0.0
  %1448 = vmatpush1.msra.mxu0 0.0
  %1449 = vmatprep.subr.mxu0 0.0
  %1450 = vmatpush1.msra.mxu0 0.0
  %1451 = vmatprep.subr.mxu0 0.0
  %1452 = vmatpush1.msra.mxu0 0.0
  %1453 = vmatprep.subr.mxu0 0.0
  %1454 = vmatpush1.msra.mxu0 0.0
  %1455 = vmatprep.subr.mxu0 0.0
  %1456 = vmatpush1.msra.mxu0 0.0
  %1457 = vmatprep.subr.mxu0 0.0
  %1458 = vmatpush1.msra.mxu0 0.0
  %1459 = vmatprep.mubr.f32.mxu0 0.0
  %1460 = vmatmul.mubr.f32.gmra.mrb[0].mxu0 %v1370
  %v1461 = vpop.f32.mrb[0].mxu0
  %v1462 = vadd.f32 %v1393, %v1461
  %v1463 = vpop.f32.mrb[0].mxu0
  %1464 = vdwg.mxu0
  %v1465 = vmax.f32 %v1462, 0.0
  %v1466 = vld [vmem:[%s5] sm:$0xff]
  %v1467 = vld [vmem:[%s5 + $0x8] sm:$0xff]
  %v1468 = vld [vmem:[%s5 + $0x10] sm:$0xff]
  %v1469 = vld [vmem:[%s5 + $0x18] sm:$0xff]
  %v1470 = vld [vmem:[%s5 + $0x20] sm:$0xff]
  %v1471 = vld [vmem:[%s5 + $0x28] sm:$0xff]
  %v1472 = vld [vmem:[%s5 + $0x30] sm:$0xff]
  %v1473 = vld [vmem:[%s5 + $0x38] sm:$0xff]
  %v1474 = vld [vmem:[%s5 + $0x40] sm:$0xff]
  %v1475 = vld [vmem:[%s5 + $0x48] sm:$0xff]
  %v1476 = vld [vmem:[%s5 + $0x50] sm:$0xff]
  %v1477 = vld [vmem:[%s5 + $0x58] sm:$0xff]
  %v1478 = vld [vmem:[%s5 + $0x60] sm:$0xff]
  %v1479 = vld [vmem:[%s5 + $0x68] sm:$0xff]
  %v1480 = vld [vmem:[%s5 + $0x70] sm:$0xff]
  %v1481 = vld [vmem:[%s5 + $0x78] sm:$0xff]
  %v1482 = vld [vmem:[%s6] sm:$0x1]
  %v1484 = vlaneseq
  %v1485 = vshrl.u32 %v1484, 7
  %v1486 = vsub.s32 0, %v1485
  %v1487 = vrot.slane %v1482, %v1486
  %1489 = vmatprep.subr.mxu0 0.0
  %1490 = vmatpush1.msra.mxu0 %v1466
  %1491 = vmatprep.subr.mxu0 0.0
  %1492 = vmatpush1.msra.mxu0 %v1467
  %1493 = vmatprep.subr.mxu0 0.0
  %1494 = vmatpush1.msra.mxu0 %v1468
  %1495 = vmatprep.subr.mxu0 0.0
  %1496 = vmatpush1.msra.mxu0 %v1469
  %1497 = vmatprep.subr.mxu0 0.0
  %1498 = vmatpush1.msra.mxu0 %v1470
  %1499 = vmatprep.subr.mxu0 0.0
  %1500 = vmatpush1.msra.mxu0 %v1471
  %1501 = vmatprep.subr.mxu0 0.0
  %1502 = vmatpush1.msra.mxu0 %v1472
  %1503 = vmatprep.subr.mxu0 0.0
  %1504 = vmatpush1.msra.mxu0 %v1473
  %1505 = vmatprep.subr.mxu0 0.0
  %1506 = vmatpush1.msra.mxu0 %v1474
  %1507 = vmatprep.subr.mxu0 0.0
  %1508 = vmatpush1.msra.mxu0 %v1475
  %1509 = vmatprep.subr.mxu0 0.0
  %1510 = vmatpush1.msra.mxu0 %v1476
  %1511 = vmatprep.subr.mxu0 0.0
  %1512 = vmatpush1.msra.mxu0 %v1477
  %1513 = vmatprep.subr.mxu0 0.0
  %1514 = vmatpush1.msra.mxu0 %v1478
  %1515 = vmatprep.subr.mxu0 0.0
  %1516 = vmatpush1.msra.mxu0 %v1479
  %1517 = vmatprep.subr.mxu0 0.0
  %1518 = vmatpush1.msra.mxu0 %v1480
  %1519 = vmatprep.subr.mxu0 0.0
  %1520 = vmatpush1.msra.mxu0 %v1481
  %1521 = vmatprep.subr.mxu0 0.0
  %1522 = vmatpush1.msra.mxu0 0.0
  %1523 = vmatprep.subr.mxu0 0.0
  %1524 = vmatpush1.msra.mxu0 0.0
  %1525 = vmatprep.subr.mxu0 0.0
  %1526 = vmatpush1.msra.mxu0 0.0
  %1527 = vmatprep.subr.mxu0 0.0
  %1528 = vmatpush1.msra.mxu0 0.0
  %1529 = vmatprep.subr.mxu0 0.0
  %1530 = vmatpush1.msra.mxu0 0.0
  %1531 = vmatprep.subr.mxu0 0.0
  %1532 = vmatpush1.msra.mxu0 0.0
  %1533 = vmatprep.subr.mxu0 0.0
  %1534 = vmatpush1.msra.mxu0 0.0
  %1535 = vmatprep.subr.mxu0 0.0
  %1536 = vmatpush1.msra.mxu0 0.0
  %1537 = vmatprep.subr.mxu0 0.0
  %1538 = vmatpush1.msra.mxu0 0.0
  %1539 = vmatprep.subr.mxu0 0.0
  %1540 = vmatpush1.msra.mxu0 0.0
  %1541 = vmatprep.subr.mxu0 0.0
  %1542 = vmatpush1.msra.mxu0 0.0
  %1543 = vmatprep.subr.mxu0 0.0
  %1544 = vmatpush1.msra.mxu0 0.0
  %1545 = vmatprep.subr.mxu0 0.0
  %1546 = vmatpush1.msra.mxu0 0.0
  %1547 = vmatprep.subr.mxu0 0.0
  %1548 = vmatpush1.msra.mxu0 0.0
  %1549 = vmatprep.subr.mxu0 0.0
  %1550 = vmatpush1.msra.mxu0 0.0
  %1551 = vmatprep.subr.mxu0 0.0
  %1552 = vmatpush1.msra.mxu0 0.0
  %1553 = vmatprep.mubr.f32.mxu0 0.0
  %1554 = vmatmul.mubr.f32.gmra.mrb[0].mxu0 %v1465
  %v1555 = vpop.f32.mrb[0].mxu0
  %v1556 = vadd.f32 %v1487, %v1555
  %v1557 = vpop.f32.mrb[0].mxu0
  %1558 = vdwg.mxu0
  %1559 = vmax.xlane.f32.xlu0 %v1556
  %v1560 = vpop.xlane.xlu0 %1559
  %v1561 = vsub.f32 %v1556, %v1560
  %v1562 = vmul.f32 %v1561, 1.442695
  %v1563 = vpow.pop %v1562
  %1564 = vadd.xlane.f32.xlu0 %v1563
  %v1565 = vpop.xlane.xlu0 %1564
  %v1566 = vlog2.pop %v1565
  %v1567 = vmul.f32 %v1566, 0.6931472
  %v1568 = vadd.f32 %v1567, %v1560
  %v1569 = vsub.f32 %v1556, %v1568
  %1570 = vst [vmem:[%s7] sm:$0xff] %v1569
  // Predicated region
  $region30: #{cnn_cifar_forward.5} parent=0 // pred_check
    _
  $region31: #{cnn_cifar_forward.5} parent=0 // pred_check_branch
    %1572 = sbr.rel (0) target = $region33
  $region32: #{cnn_cifar_forward.5} parent=0 // pred_region
    _
  $region33: #{cnn_cifar_forward.5} parent=0 // pred_fallthru
    _
  // Predicated region
  $region34: #{cnn_cifar_forward.5} parent=0 // pred_check
    _
  $region35: #{cnn_cifar_forward.5} parent=0 // pred_check_branch
    %1574 = sbr.rel (0) target = $region37
  $region36: #{cnn_cifar_forward.5} parent=0 // pred_region
    _
  $region37: #{cnn_cifar_forward.5} parent=0 // pred_fallthru
    _
  // Predicated region
  $region38: #{cnn_cifar_forward.5} parent=0 // pred_check
    _
  $region39: #{cnn_cifar_forward.5} parent=0 // pred_check_branch
    %1576 = sbr.rel (0) target = $region41
  $region40: #{cnn_cifar_forward.5} parent=0 // pred_region
    _
  $region41: #{cnn_cifar_forward.5} parent=0 // pred_fallthru
    _
  // Predicated region
  $region42: #{cnn_cifar_forward.5} parent=0 // pred_check
    _
  $region43: #{cnn_cifar_forward.5} parent=0 // pred_check_branch
    %1578 = sbr.rel (0) target = $region45
  $region44: #{cnn_cifar_forward.5} parent=0 // pred_region
    _
  $region45: #{cnn_cifar_forward.5} parent=0 // pred_fallthru
    _

</llo_original>
